<compile_context>
chip_gen: v7x
topology: tpu7x:2x2x1
jax: 0.10.0
libtpu: 0.0.40
codegen_flags: <defaults>
</compile_context>

<pallas_src>
import jax
import jax.numpy as jnp
from jax.experimental import pallas as pl
from jax.experimental.pallas import tpu as pltpu

_BN_EPS = 1e-5


# ----------------------------------------------------------------------------
# Kernel 1: stride-1 valid conv as tap-accumulated MXU matmuls with in-VMEM
# patch construction, fused per-channel partial BatchNorm statistics.
# Grid is over batch images; one image (plus halo) lives in VMEM per step.
# TODO(synk): for very large spatial inputs, tile over output-row bands with a
# manual halo DMA instead of whole-image VMEM blocks.
# ----------------------------------------------------------------------------
def _make_conv_kernel(th, tw, ho, wo, cpe, ceff):
    def kernel(x_ref, w_ref, y_ref, stats_ref):
        acc = None
        for dh in range(th):
            for dw in range(tw):
                patch = x_ref[0, pl.ds(dh, ho), pl.ds(dw, wo), :]
                patch = patch.reshape(ho * wo, cpe)            # in-VMEM im2col row block
                part = jnp.dot(patch, w_ref[dh * tw + dw],
                               preferred_element_type=jnp.float32)
                acc = part if acc is None else acc + part
        # Small-Cout stores are lane-masked; acceptable because the block is
        # HBM-bound and the epilogue kernel does its pass lane-dense.
        y_ref[0] = acc.astype(y_ref.dtype)
        s0 = jnp.sum(acc, axis=0, keepdims=True)
        s1 = jnp.sum(acc * acc, axis=0, keepdims=True)
        stats_ref[0] = jnp.concatenate([s0, s1], axis=0)       # rows: sum, sumsq
    return kernel


def pallas_conv_stride1(x_prep, w_eff, ho, wo, th, tw):
    """x_prep:(N,Hp,Wp,Cpe) bf16, w_eff:(th*tw,Cpe,Ceff) bf16 ->
       y:(N,ho*wo,Ceff) bf16, stats:(N,2,Ceff) f32 (per-image col sum/sumsq)."""
    n, hp, wp, cpe = x_prep.shape
    taps, _, ceff = w_eff.shape
    assert taps == th * tw and hp >= ho + th - 1 and wp >= wo + tw - 1
    return pl.pallas_call(
        _make_conv_kernel(th, tw, ho, wo, cpe, ceff),
        out_shape=(jax.ShapeDtypeStruct((n, ho * wo, ceff), jnp.bfloat16),
                   jax.ShapeDtypeStruct((n, 2, ceff), jnp.float32)),
        grid_spec=pltpu.PrefetchScalarGridSpec(
            num_scalar_prefetch=0,
            grid=(n,),
            in_specs=[
                pl.BlockSpec((1, hp, wp, cpe), lambda i: (i, 0, 0, 0)),
                pl.BlockSpec((taps, cpe, ceff), lambda i: (0, 0, 0)),  # grid-invariant weight
            ],
            out_specs=(
                pl.BlockSpec((1, ho * wo, ceff), lambda i: (i, 0, 0)),
                pl.BlockSpec((1, 2, ceff), lambda i: (i, 0, 0)),
            ),
        ),
        compiler_params=pltpu.CompilerParams(
            dimension_semantics=("parallel",),          # independent images (megacore)
            vmem_limit_bytes=32 * 1024 * 1024),          # raise v5e's 16 MiB default
    )(x_prep, w_eff)


# ----------------------------------------------------------------------------
# Kernel 2: lane-dense BN affine + activation (+ optional Dropout(0.5)).
# Output is bf16 (halves store traffic of this memory-bound pass).
# ----------------------------------------------------------------------------
def _make_affine_act_kernel(act, use_dropout, tr, cols):
    def kernel(seed_ref, x_ref, scale_ref, shift_ref, o_ref):
        y = x_ref[...].astype(jnp.float32) * scale_ref[...] + shift_ref[...]
        if act == "leaky":
            y = jnp.where(y >= 0, y, 0.2 * y)
        else:
            y = jnp.maximum(y, 0.0)
        if use_dropout:
            # Dropout(p=0.5): counter-based hash PRNG (pure uint32 VPU ops,
            # works on TPU and in interpret mode).  Streams are a hash of
            # (seed, flat element index) -> per-block seeding is race-free
            # under a "parallel" grid.
            r = jax.lax.broadcasted_iota(jnp.uint32, y.shape, 0)
            c = jax.lax.broadcasted_iota(jnp.uint32, y.shape, 1)
            base = pl.program_id(0).astype(jnp.uint32) * jnp.uint32(tr)
            ctr = (base + r) * jnp.uint32(cols) + c
            h = ctr ^ (seed_ref[0].astype(jnp.uint32) * jnp.uint32(0x9E3779B9))
            h = h ^ (h >> 16)
            h = h * jnp.uint32(0x7FEB352D)
            h = h ^ (h >> 15)
            h = h * jnp.uint32(0x846CA68B)
            h = h ^ (h >> 16)
            keep = (h >> 31) == 0
            y = jnp.where(keep, 2.0 * y, 0.0)              # survivors scaled by 1/(1-p)
        o_ref[...] = y.astype(o_ref.dtype)
    return kernel


def pallas_affine_act(y2, scale, shift, act, *, use_dropout=False, dropout_seed=0):
    """out = act(y2 * scale + shift) [, Dropout(0.5)]; per-column scale/shift.
    Uses the widest lane-dense view (cols in {1024,...,128}) so stores are
    full-lane vst; scale/shift are tiled across lanes to match."""
    m, c = y2.shape
    total = m * c
    cols = None
    for cand in (1024, 512, 256, 128):                     # prefer rows % 8 == 0
        if cand % c == 0 and total % cand == 0 and (total // cand) % 8 == 0:
            cols = cand
            break
    if cols is None:
        for cand in (1024, 512, 256, 128):
            if cand % c == 0 and total % cand == 0:
                cols = cand
                break
    if cols is not None:
        rows = total // cols
        x = y2.reshape(rows, cols)                         # free: same linear layout
        s = jnp.tile(scale, cols // c)
        t = jnp.tile(shift, cols // c)
    else:                                                  # fallback: natural layout
        rows, cols = m, c
        x, s, t = y2, scale, shift

    # Row tile: largest power-of-two divisor of rows, capped ~4 MiB f32/block;
    # fall back to the full dim (always legal) for awkward row counts.
    cap = max(8, min(1024, (4 * 1024 * 1024) // (4 * cols)))
    tr = rows
    for cand in (1024, 512, 256, 128, 64, 32, 16, 8):
        if cand <= cap and rows % cand == 0:
            tr = cand
            break

    seed = jnp.asarray([dropout_seed], dtype=jnp.int32)
    out = pl.pallas_call(
        _make_affine_act_kernel(act, use_dropout, tr, cols),
        out_shape=jax.ShapeDtypeStruct((rows, cols), jnp.bfloat16),
        grid_spec=pltpu.PrefetchScalarGridSpec(
            num_scalar_prefetch=1,                          # dropout seed lands in SMEM
            grid=(rows // tr,),
            in_specs=[
                pl.BlockSpec((tr, cols), lambda i, sref: (i, 0)),
                pl.BlockSpec((1, cols), lambda i, sref: (0, 0)),
                pl.BlockSpec((1, cols), lambda i, sref: (0, 0)),
            ],
            out_specs=pl.BlockSpec((tr, cols), lambda i, sref: (i, 0)),
        ),
        compiler_params=pltpu.CompilerParams(
            dimension_semantics=("parallel",)),             # megacore-shardable on v7x
    )(seed, x, s.reshape(1, cols).astype(jnp.float32),
      t.reshape(1, cols).astype(jnp.float32))
    return out.reshape(m, c)


# ------------------------- weight re-arrangement (XLA) -----------------------

def _down_effective_weight(w):
    """Conv2d(k=4,s=2,p=1) on the pad-1 input == 2x2 stride-1 conv over the
    2x2 space-to-depth of that padded input.  w: (Cout, Cin, 4, 4).
    Returns (4, 4*Cin, Cout) per-tap weight; tap = 2*dR + dC, K index =
    (rp*2+cp)*Cin + ci (matches the space-to-depth channel layout)."""
    cout, cin = w.shape[0], w.shape[1]
    wt = jnp.transpose(w, (2, 3, 1, 0))                       # (kh, kw, Cin, Cout)
    wt = wt.reshape(2, 2, 2, 2, cin, cout)                    # (dR, rp, dC, cp, Cin, Cout)
    return wt.transpose(0, 2, 1, 3, 4, 5).reshape(4, 4 * cin, cout)


def _deconv_effective_weight(w):
    """ConvTranspose2d(k=4,s=2,p=1) == 3x3 stride-1 conv on the pad-1 input
    producing 4*Cout phase channels (phase = 2*row_parity + col_parity),
    followed by a 2x2 pixel shuffle.  w: PyTorch layout (Cin, Cout, 4, 4).
    Returns (9, Cin, 4*Cout) per-tap weight; tap = 3*dh + dw."""
    cin, cout = w.shape[0], w.shape[1]
    tap = ({0: 3, 1: 1}, {1: 2, 2: 0})   # parity -> {tap offset d: kernel index}
    zero = jnp.zeros((cin, cout), w.dtype)
    rows = []
    for dh in range(3):
        cols_ = []
        for dw in range(3):
            phases = []
            for rp in range(2):
                for cp in range(2):
                    kh = tap[rp].get(dh)
                    kw = tap[cp].get(dw)
                    phases.append(zero if (kh is None or kw is None)
                                  else w[:, :, kh, kw])
            cols_.append(jnp.concatenate(phases, axis=1))      # (Cin, 4*Cout)
        rows.append(jnp.stack(cols_, axis=0))                  # (3, Cin, 4*Cout)
    return jnp.stack(rows, axis=0).reshape(9, cin, 4 * cout)


# ----------------------------- SamplingBlock ---------------------------------

def sampling_block_forward_nhwc(x, params, *, down=True, act_fn="leaky",
                                use_dropout=False, dropout_seed=0):
    """SamplingBlock forward, NHWC in -> NHWC bf16 out (chain blocks in NHWC;
    convert layout/dtype only at the model boundary).  norm='batch' with
    training-mode batch statistics (PyTorch module default)."""
    # TODO(synk): norm='instance' (InstanceNorm2d) variant is not implemented.
    act = "leaky" if act_fn == "leaky" else "relu"
    x = x.astype(jnp.bfloat16)
    n, h, w_, cin = x.shape
    xp = jnp.pad(x, ((0, 0), (1, 1), (1, 1), (0, 0)))          # only ~1x input-bytes prep

    if down:                                   # Conv2d(k=4, s=2, p=1)
        assert h % 2 == 0 and w_ % 2 == 0
        cout = params["w"].shape[0]
        ho, wo = h // 2, w_ // 2
        hc, wc = (h + 2) // 2, (w_ + 2) // 2
        # 2x2 space-to-depth of the padded input: channel = (rp*2+cp)*Cin + ci
        x_prep = (xp.reshape(n, hc, 2, wc, 2, cin)
                    .transpose(0, 1, 3, 2, 4, 5)
                    .reshape(n, hc, wc, 4 * cin))
        w_eff = _down_effective_weight(params["w"])
        th = tw = 2
        phases = 1
    else:                                      # ConvTranspose2d(k=4, s=2, p=1), sub-pixel form
        cout = params["w"].shape[1]
        ho, wo = h, w_                          # pre-pixel-shuffle spatial size
        x_prep = xp
        w_eff = _deconv_effective_weight(params["w"])
        th = tw = 3
        phases = 4

    # Conv bias omitted: it cancels exactly in training-mode BatchNorm.
    y, stats = pallas_conv_stride1(x_prep, w_eff.astype(jnp.bfloat16), ho, wo, th, tw)

    ceff = phases * cout
    m = n * ho * wo
    count = float(m * phases)
    ch_sum = jnp.sum(stats[:, 0, :], axis=0).reshape(phases, cout).sum(axis=0)
    ch_sq = jnp.sum(stats[:, 1, :], axis=0).reshape(phases, cout).sum(axis=0)
    mean = ch_sum / count
    var = jnp.maximum(ch_sq / count - mean * mean, 0.0)        # clamp single-pass variance
    scale_c = params["gamma"] / jnp.sqrt(var + _BN_EPS)
    shift_c = params["beta"] - mean * scale_c

    out2 = pallas_affine_act(y.reshape(m, ceff),
                             jnp.tile(scale_c, phases), jnp.tile(shift_c, phases),
                             act, use_dropout=use_dropout, dropout_seed=dropout_seed)

    if down:
        return out2.reshape(n, ho, wo, cout)
    out = out2.reshape(n, ho, wo, 2, 2, cout)                  # pixel shuffle (rp, cp phases)
    return out.transpose(0, 1, 3, 2, 4, 5).reshape(n, 2 * ho, 2 * wo, cout)


def sampling_block_forward(x_nchw, params, *, down=True, act_fn="leaky",
                           use_dropout=False, dropout_seed=0):
    """NCHW f32 wrapper around the NHWC fast path (single-block use)."""
    x = jnp.transpose(x_nchw, (0, 2, 3, 1))
    out = sampling_block_forward_nhwc(x, params, down=down, act_fn=act_fn,
                                      use_dropout=use_dropout,
                                      dropout_seed=dropout_seed)
    return jnp.transpose(out, (0, 3, 1, 2)).astype(jnp.float32)


def init_sampling_block_params(key, in_channels, out_channels, *, down=True):
    kw_, kb = jax.random.split(key)
    std = (in_channels * 16) ** -0.5
    shape = (out_channels, in_channels, 4, 4) if down else (in_channels, out_channels, 4, 4)
    return dict(
        w=std * jax.random.normal(kw_, shape, jnp.float32),
        b=0.01 * jax.random.normal(kb, (out_channels,), jnp.float32),  # unused: cancels in BN
        gamma=jnp.ones((out_channels,), jnp.float32),
        beta=jnp.zeros((out_channels,), jnp.float32),
    )


# ----------------------------------- main ------------------------------------

if __name__ == "__main__":
    n, cin, h, w = 2, 4, 16, 16
    cmid = 8
    key = jax.random.PRNGKey(0)
    kx, kd, ku = jax.random.split(key, 3)
    x = jax.random.normal(kx, (n, cin, h, w), jnp.float32)
    down_p = init_sampling_block_params(kd, cin, cmid, down=True)
    up_p = init_sampling_block_params(ku, cmid, cin, down=False)

    @jax.jit
    def run(x, down_p, up_p):
        # Chain blocks in NHWC/bf16; NCHW <-> NHWC only at the model boundary.
        x_nhwc = jnp.transpose(x, (0, 2, 3, 1))
        hid = sampling_block_forward_nhwc(x_nhwc, down_p, down=True, act_fn="leaky")
        out = sampling_block_forward_nhwc(hid, up_p, down=False, act_fn="relu")
        return (jnp.transpose(hid, (0, 3, 1, 2)).astype(jnp.float32),
                jnp.transpose(out, (0, 3, 1, 2)).astype(jnp.float32))

    hid, out = run(x, down_p, up_p)
    jax.block_until_ready((hid, out))
    assert hid.shape == (n, cmid, h // 2, w // 2)
    assert out.shape == (n, cin, h, w)
    assert bool(jnp.all(jnp.isfinite(hid))) and bool(jnp.all(jnp.isfinite(out)))

    @jax.jit
    def run_dropout(x, down_p):
        return sampling_block_forward(x, down_p, down=True, act_fn="leaky",
                                      use_dropout=True, dropout_seed=1234)

    hd = run_dropout(x, down_p)
    jax.block_until_ready(hd)
    assert hd.shape == (n, cmid, h // 2, w // 2)
    assert bool(jnp.all(jnp.isfinite(hd)))

    print("KERNEL_OK")
</pallas_src>

<mosaic_0001>
module attributes {stable_mosaic.version = 11 : i64} {
  func.func @kernel(%arg0: i32, %arg1: memref<1x9x9x16xbf16, #tpu.memory_space<vmem>>, %arg2: memref<4x16x8xbf16, #tpu.memory_space<vmem>>, %arg3: memref<1x64x8xbf16, #tpu.memory_space<vmem>>, %arg4: memref<1x2x8xf32, #tpu.memory_space<vmem>>) attributes {dimension_semantics = [#tpu.dimension_semantics<parallel>], iteration_bounds = array<i64: 2>, scalar_prefetch = 0 : i64, scratch_operands = 0 : i64, tpu.core_type = #tpu.core_type<tc>, window_params = [{transform_indices = @transform_0, window_bounds = array<i64: 1, 9, 9, 16>}, {pipeline_mode = #tpu.pipeline_mode<synchronous>, transform_indices = @transform_1, window_bounds = array<i64: 4, 16, 8>}, {transform_indices = @transform_2, window_bounds = array<i64: 1, 64, 8>}, {transform_indices = @transform_3, window_bounds = array<i64: 1, 2, 8>}]} {
    %c0 = arith.constant 0 : index
    %c0_0 = arith.constant 0 : index
    %c0_1 = arith.constant 0 : index
    %c0_2 = arith.constant 0 : index
    %0 = vector.load %arg1[%c0, %c0_0, %c0_1, %c0_2] : memref<1x9x9x16xbf16, #tpu.memory_space<vmem>>, vector<1x8x8x16xbf16>
    %1 = vector.shape_cast %0 : vector<1x8x8x16xbf16> to vector<8x8x16xbf16>
    %2 = vector.shape_cast %1 : vector<8x8x16xbf16> to vector<64x16xbf16>
    %c0_3 = arith.constant 0 : index
    %c0_4 = arith.constant 0 : index
    %c0_5 = arith.constant 0 : index
    %3 = vector.load %arg2[%c0_3, %c0_4, %c0_5] : memref<4x16x8xbf16, #tpu.memory_space<vmem>>, vector<1x16x8xbf16>
    %4 = vector.shape_cast %3 : vector<1x16x8xbf16> to vector<16x8xbf16>
    %cst = arith.constant dense<0.000000e+00> : vector<64x8xf32>
    %5 = tpu.matmul %2, %4, %cst {dimension_numbers = #tpu.dot_dimension_numbers<[1], [0], [0], [1], [0, 0, 1, 1], [], []>} : vector<64x16xbf16>, vector<16x8xbf16>, vector<64x8xf32> -> vector<64x8xf32>
    %c0_6 = arith.constant 0 : index
    %c0_7 = arith.constant 0 : index
    %c1 = arith.constant 1 : index
    %c0_8 = arith.constant 0 : index
    %6 = vector.load %arg1[%c0_6, %c0_7, %c1, %c0_8] : memref<1x9x9x16xbf16, #tpu.memory_space<vmem>>, vector<1x8x8x16xbf16>
    %7 = vector.shape_cast %6 : vector<1x8x8x16xbf16> to vector<8x8x16xbf16>
    %8 = vector.shape_cast %7 : vector<8x8x16xbf16> to vector<64x16xbf16>
    %c1_9 = arith.constant 1 : index
    %c0_10 = arith.constant 0 : index
    %c0_11 = arith.constant 0 : index
    %9 = vector.load %arg2[%c1_9, %c0_10, %c0_11] : memref<4x16x8xbf16, #tpu.memory_space<vmem>>, vector<1x16x8xbf16>
    %10 = vector.shape_cast %9 : vector<1x16x8xbf16> to vector<16x8xbf16>
    %cst_12 = arith.constant dense<0.000000e+00> : vector<64x8xf32>
    %11 = tpu.matmul %8, %10, %cst_12 {dimension_numbers = #tpu.dot_dimension_numbers<[1], [0], [0], [1], [0, 0, 1, 1], [], []>} : vector<64x16xbf16>, vector<16x8xbf16>, vector<64x8xf32> -> vector<64x8xf32>
    %12 = arith.addf %5, %11 : vector<64x8xf32>
    %c0_13 = arith.constant 0 : index
    %c1_14 = arith.constant 1 : index
    %c0_15 = arith.constant 0 : index
    %c0_16 = arith.constant 0 : index
    %13 = vector.load %arg1[%c0_13, %c1_14, %c0_15, %c0_16] : memref<1x9x9x16xbf16, #tpu.memory_space<vmem>>, vector<1x8x8x16xbf16>
    %14 = vector.shape_cast %13 : vector<1x8x8x16xbf16> to vector<8x8x16xbf16>
    %15 = vector.shape_cast %14 : vector<8x8x16xbf16> to vector<64x16xbf16>
    %c2 = arith.constant 2 : index
    %c0_17 = arith.constant 0 : index
    %c0_18 = arith.constant 0 : index
    %16 = vector.load %arg2[%c2, %c0_17, %c0_18] : memref<4x16x8xbf16, #tpu.memory_space<vmem>>, vector<1x16x8xbf16>
    %17 = vector.shape_cast %16 : vector<1x16x8xbf16> to vector<16x8xbf16>
    %cst_19 = arith.constant dense<0.000000e+00> : vector<64x8xf32>
    %18 = tpu.matmul %15, %17, %cst_19 {dimension_numbers = #tpu.dot_dimension_numbers<[1], [0], [0], [1], [0, 0, 1, 1], [], []>} : vector<64x16xbf16>, vector<16x8xbf16>, vector<64x8xf32> -> vector<64x8xf32>
    %19 = arith.addf %12, %18 : vector<64x8xf32>
    %c0_20 = arith.constant 0 : index
    %c1_21 = arith.constant 1 : index
    %c1_22 = arith.constant 1 : index
    %c0_23 = arith.constant 0 : index
    %20 = vector.load %arg1[%c0_20, %c1_21, %c1_22, %c0_23] : memref<1x9x9x16xbf16, #tpu.memory_space<vmem>>, vector<1x8x8x16xbf16>
    %21 = vector.shape_cast %20 : vector<1x8x8x16xbf16> to vector<8x8x16xbf16>
    %22 = vector.shape_cast %21 : vector<8x8x16xbf16> to vector<64x16xbf16>
    %c3 = arith.constant 3 : index
    %c0_24 = arith.constant 0 : index
    %c0_25 = arith.constant 0 : index
    %23 = vector.load %arg2[%c3, %c0_24, %c0_25] : memref<4x16x8xbf16, #tpu.memory_space<vmem>>, vector<1x16x8xbf16>
    %24 = vector.shape_cast %23 : vector<1x16x8xbf16> to vector<16x8xbf16>
    %cst_26 = arith.constant dense<0.000000e+00> : vector<64x8xf32>
    %25 = tpu.matmul %22, %24, %cst_26 {dimension_numbers = #tpu.dot_dimension_numbers<[1], [0], [0], [1], [0, 0, 1, 1], [], []>} : vector<64x16xbf16>, vector<16x8xbf16>, vector<64x8xf32> -> vector<64x8xf32>
    %26 = arith.addf %19, %25 : vector<64x8xf32>
    %27 = arith.truncf %26 : vector<64x8xf32> to vector<64x8xbf16>
    %c0_27 = arith.constant 0 : index
    %c0_28 = arith.constant 0 : index
    %c0_29 = arith.constant 0 : index
    %28 = vector.load %arg3[%c0_27, %c0_28, %c0_29] : memref<1x64x8xbf16, #tpu.memory_space<vmem>>, vector<1x64x8xbf16>
    %29 = vector.shape_cast %28 : vector<1x64x8xbf16> to vector<64x8xbf16>
    %30 = vector.shape_cast %27 : vector<64x8xbf16> to vector<1x64x8xbf16>
    tpu.vector_store %arg3[%c0_27, %c0_28, %c0_29], %30 {strides = array<i32>} : memref<1x64x8xbf16, #tpu.memory_space<vmem>>, vector<1x64x8xbf16>,
    %cst_30 = arith.constant dense<0.000000e+00> : vector<8xf32>
    %31 = vector.multi_reduction <add>, %26, %cst_30 [0] : vector<64x8xf32> to vector<8xf32>
    %32 = vector.shape_cast %31 : vector<8xf32> to vector<1x8xf32>
    %33 = arith.mulf %26, %26 : vector<64x8xf32>
    %cst_31 = arith.constant dense<0.000000e+00> : vector<8xf32>
    %34 = vector.multi_reduction <add>, %33, %cst_31 [0] : vector<64x8xf32> to vector<8xf32>
    %35 = vector.shape_cast %34 : vector<8xf32> to vector<1x8xf32>
    %36 = tpu.concatenate %32, %35 in 0 : vector<1x8xf32>, vector<1x8xf32> -> vector<2x8xf32>
    %c0_32 = arith.constant 0 : index
    %c0_33 = arith.constant 0 : index
    %c0_34 = arith.constant 0 : index
    %37 = vector.load %arg4[%c0_32, %c0_33, %c0_34] : memref<1x2x8xf32, #tpu.memory_space<vmem>>, vector<1x2x8xf32>
    %38 = vector.shape_cast %37 : vector<1x2x8xf32> to vector<2x8xf32>
    %39 = vector.shape_cast %36 : vector<2x8xf32> to vector<1x2x8xf32>
    tpu.vector_store %arg4[%c0_32, %c0_33, %c0_34], %39 {strides = array<i32>} : memref<1x2x8xf32, #tpu.memory_space<vmem>>, vector<1x2x8xf32>,
    return
  }
  func.func @transform_0(%arg0: i32) -> (i32, i32, i32, i32) {
    %c0_i32 = arith.constant 0 : i32
    %c0_i32_0 = arith.constant 0 : i32
    %c0_i32_1 = arith.constant 0 : i32
    %c0_i32_2 = arith.constant 0 : i32
    return %arg0, %c0_i32, %c0_i32_0, %c0_i32_1 : i32, i32, i32, i32
  }
  func.func @transform_1(%arg0: i32) -> (i32, i32, i32) {
    %c0_i32 = arith.constant 0 : i32
    %c0_i32_0 = arith.constant 0 : i32
    %c0_i32_1 = arith.constant 0 : i32
    %c0_i32_2 = arith.constant 0 : i32
    return %c0_i32, %c0_i32_0, %c0_i32_1 : i32, i32, i32
  }
  func.func @transform_2(%arg0: i32) -> (i32, i32, i32) {
    %c0_i32 = arith.constant 0 : i32
    %c0_i32_0 = arith.constant 0 : i32
    %c0_i32_1 = arith.constant 0 : i32
    return %arg0, %c0_i32, %c0_i32_0 : i32, i32, i32
  }
  func.func @transform_3(%arg0: i32) -> (i32, i32, i32) {
    %c0_i32 = arith.constant 0 : i32
    %c0_i32_0 = arith.constant 0 : i32
    %c0_i32_1 = arith.constant 0 : i32
    return %arg0, %c0_i32, %c0_i32_0 : i32, i32, i32
  }
}

module attributes {stable_mosaic.version = 11 : i64} {
  func.func @kernel(%arg0: i32, %arg1: memref<1xi32, #tpu.memory_space<smem>>, %arg2: memref<8x128xbf16, #tpu.memory_space<vmem>>, %arg3: memref<1x128xf32, #tpu.memory_space<vmem>>, %arg4: memref<1x128xf32, #tpu.memory_space<vmem>>, %arg5: memref<8x128xbf16, #tpu.memory_space<vmem>>) attributes {dimension_semantics = [#tpu.dimension_semantics<parallel>], iteration_bounds = array<i64: 1>, scalar_prefetch = 1 : i64, scratch_operands = 0 : i64, tpu.core_type = #tpu.core_type<tc>, window_params = [{transform_indices = @transform_0, window_bounds = array<i64: 8, 128>}, {pipeline_mode = #tpu.pipeline_mode<synchronous>, transform_indices = @transform_1, window_bounds = array<i64: 1, 128>}, {pipeline_mode = #tpu.pipeline_mode<synchronous>, transform_indices = @transform_2, window_bounds = array<i64: 1, 128>}, {transform_indices = @transform_3, window_bounds = array<i64: 8, 128>}]} {
    %c0 = arith.constant 0 : index
    %c0_0 = arith.constant 0 : index
    %0 = vector.load %arg2[%c0, %c0_0] : memref<8x128xbf16, #tpu.memory_space<vmem>>, vector<8x128xbf16>
    %1 = arith.extf %0 : vector<8x128xbf16> to vector<8x128xf32>
    %c0_1 = arith.constant 0 : index
    %c0_2 = arith.constant 0 : index
    %2 = vector.load %arg3[%c0_1, %c0_2] : memref<1x128xf32, #tpu.memory_space<vmem>>, vector<1x128xf32>
    %3 = vector.broadcast %2 : vector<1x128xf32> to vector<8x128xf32>
    %4 = arith.mulf %1, %3 : vector<8x128xf32>
    %c0_3 = arith.constant 0 : index
    %c0_4 = arith.constant 0 : index
    %5 = vector.load %arg4[%c0_3, %c0_4] : memref<1x128xf32, #tpu.memory_space<vmem>>, vector<1x128xf32>
    %6 = vector.broadcast %5 : vector<1x128xf32> to vector<8x128xf32>
    %7 = arith.addf %4, %6 : vector<8x128xf32>
    %cst = arith.constant 0.000000e+00 : f32
    %8 = vector.broadcast %cst : f32 to vector<8x128xf32>
    %9 = arith.cmpf oge, %7, %8 : vector<8x128xf32>
    %cst_5 = arith.constant 2.000000e-01 : f32
    %10 = vector.broadcast %cst_5 : f32 to vector<8x128xf32>
    %11 = arith.mulf %10, %7 : vector<8x128xf32>
    %12 = arith.select %9, %7, %11 : vector<8x128xi1>, vector<8x128xf32>
    %13 = arith.truncf %12 : vector<8x128xf32> to vector<8x128xbf16>
    %c0_6 = arith.constant 0 : index
    %c0_7 = arith.constant 0 : index
    %14 = vector.load %arg5[%c0_6, %c0_7] : memref<8x128xbf16, #tpu.memory_space<vmem>>, vector<8x128xbf16>
    tpu.vector_store %arg5[%c0_6, %c0_7], %13 {strides = array<i32>} : memref<8x128xbf16, #tpu.memory_space<vmem>>, vector<8x128xbf16>,
    return
  }
  func.func @transform_0(%arg0: i32, %arg1: memref<1xi32, #tpu.memory_space<smem>>) -> (i32, i32) {
    %c0_i32 = arith.constant 0 : i32
    %c0_i32_0 = arith.constant 0 : i32
    return %arg0, %c0_i32 : i32, i32
  }
  func.func @transform_1(%arg0: i32, %arg1: memref<1xi32, #tpu.memory_space<smem>>) -> (i32, i32) {
    %c0_i32 = arith.constant 0 : i32
    %c0_i32_0 = arith.constant 0 : i32
    %c0_i32_1 = arith.constant 0 : i32
    return %c0_i32, %c0_i32_0 : i32, i32
  }
  func.func @transform_2(%arg0: i32, %arg1: memref<1xi32, #tpu.memory_space<smem>>) -> (i32, i32) {
    %c0_i32 = arith.constant 0 : i32
    %c0_i32_0 = arith.constant 0 : i32
    %c0_i32_1 = arith.constant 0 : i32
    return %c0_i32, %c0_i32_0 : i32, i32
  }
  func.func @transform_3(%arg0: i32, %arg1: memref<1xi32, #tpu.memory_space<smem>>) -> (i32, i32) {
    %c0_i32 = arith.constant 0 : i32
    %c0_i32_0 = arith.constant 0 : i32
    return %arg0, %c0_i32 : i32, i32
  }
}

module attributes {stable_mosaic.version = 11 : i64} {
  func.func @kernel(%arg0: i32, %arg1: memref<1x10x10x8xbf16, #tpu.memory_space<vmem>>, %arg2: memref<9x8x16xbf16, #tpu.memory_space<vmem>>, %arg3: memref<1x64x16xbf16, #tpu.memory_space<vmem>>, %arg4: memref<1x2x16xf32, #tpu.memory_space<vmem>>) attributes {dimension_semantics = [#tpu.dimension_semantics<parallel>], iteration_bounds = array<i64: 2>, scalar_prefetch = 0 : i64, scratch_operands = 0 : i64, tpu.core_type = #tpu.core_type<tc>, window_params = [{transform_indices = @transform_0, window_bounds = array<i64: 1, 10, 10, 8>}, {pipeline_mode = #tpu.pipeline_mode<synchronous>, transform_indices = @transform_1, window_bounds = array<i64: 9, 8, 16>}, {transform_indices = @transform_2, window_bounds = array<i64: 1, 64, 16>}, {transform_indices = @transform_3, window_bounds = array<i64: 1, 2, 16>}]} {
    %c0 = arith.constant 0 : index
    %c0_0 = arith.constant 0 : index
    %c0_1 = arith.constant 0 : index
    %c0_2 = arith.constant 0 : index
    %0 = vector.load %arg1[%c0, %c0_0, %c0_1, %c0_2] : memref<1x10x10x8xbf16, #tpu.memory_space<vmem>>, vector<1x8x8x8xbf16>
    %1 = vector.shape_cast %0 : vector<1x8x8x8xbf16> to vector<8x8x8xbf16>
    %2 = vector.shape_cast %1 : vector<8x8x8xbf16> to vector<64x8xbf16>
    %c0_3 = arith.constant 0 : index
    %c0_4 = arith.constant 0 : index
    %c0_5 = arith.constant 0 : index
    %3 = vector.load %arg2[%c0_3, %c0_4, %c0_5] : memref<9x8x16xbf16, #tpu.memory_space<vmem>>, vector<1x8x16xbf16>
    %4 = vector.shape_cast %3 : vector<1x8x16xbf16> to vector<8x16xbf16>
    %cst = arith.constant dense<0.000000e+00> : vector<64x16xf32>
    %5 = tpu.matmul %2, %4, %cst {dimension_numbers = #tpu.dot_dimension_numbers<[1], [0], [0], [1], [0, 0, 1, 1], [], []>} : vector<64x8xbf16>, vector<8x16xbf16>, vector<64x16xf32> -> vector<64x16xf32>
    %c0_6 = arith.constant 0 : index
    %c0_7 = arith.constant 0 : index
    %c1 = arith.constant 1 : index
    %c0_8 = arith.constant 0 : index
    %6 = vector.load %arg1[%c0_6, %c0_7, %c1, %c0_8] : memref<1x10x10x8xbf16, #tpu.memory_space<vmem>>, vector<1x8x8x8xbf16>
    %7 = vector.shape_cast %6 : vector<1x8x8x8xbf16> to vector<8x8x8xbf16>
    %8 = vector.shape_cast %7 : vector<8x8x8xbf16> to vector<64x8xbf16>
    %c1_9 = arith.constant 1 : index
    %c0_10 = arith.constant 0 : index
    %c0_11 = arith.constant 0 : index
    %9 = vector.load %arg2[%c1_9, %c0_10, %c0_11] : memref<9x8x16xbf16, #tpu.memory_space<vmem>>, vector<1x8x16xbf16>
    %10 = vector.shape_cast %9 : vector<1x8x16xbf16> to vector<8x16xbf16>
    %cst_12 = arith.constant dense<0.000000e+00> : vector<64x16xf32>
    %11 = tpu.matmul %8, %10, %cst_12 {dimension_numbers = #tpu.dot_dimension_numbers<[1], [0], [0], [1], [0, 0, 1, 1], [], []>} : vector<64x8xbf16>, vector<8x16xbf16>, vector<64x16xf32> -> vector<64x16xf32>
    %12 = arith.addf %5, %11 : vector<64x16xf32>
    %c0_13 = arith.constant 0 : index
    %c0_14 = arith.constant 0 : index
    %c2 = arith.constant 2 : index
    %c0_15 = arith.constant 0 : index
    %13 = vector.load %arg1[%c0_13, %c0_14, %c2, %c0_15] : memref<1x10x10x8xbf16, #tpu.memory_space<vmem>>, vector<1x8x8x8xbf16>
    %14 = vector.shape_cast %13 : vector<1x8x8x8xbf16> to vector<8x8x8xbf16>
    %15 = vector.shape_cast %14 : vector<8x8x8xbf16> to vector<64x8xbf16>
    %c2_16 = arith.constant 2 : index
    %c0_17 = arith.constant 0 : index
    %c0_18 = arith.constant 0 : index
    %16 = vector.load %arg2[%c2_16, %c0_17, %c0_18] : memref<9x8x16xbf16, #tpu.memory_space<vmem>>, vector<1x8x16xbf16>
    %17 = vector.shape_cast %16 : vector<1x8x16xbf16> to vector<8x16xbf16>
    %cst_19 = arith.constant dense<0.000000e+00> : vector<64x16xf32>
    %18 = tpu.matmul %15, %17, %cst_19 {dimension_numbers = #tpu.dot_dimension_numbers<[1], [0], [0], [1], [0, 0, 1, 1], [], []>} : vector<64x8xbf16>, vector<8x16xbf16>, vector<64x16xf32> -> vector<64x16xf32>
    %19 = arith.addf %12, %18 : vector<64x16xf32>
    %c0_20 = arith.constant 0 : index
    %c1_21 = arith.constant 1 : index
    %c0_22 = arith.constant 0 : index
    %c0_23 = arith.constant 0 : index
    %20 = vector.load %arg1[%c0_20, %c1_21, %c0_22, %c0_23] : memref<1x10x10x8xbf16, #tpu.memory_space<vmem>>, vector<1x8x8x8xbf16>
    %21 = vector.shape_cast %20 : vector<1x8x8x8xbf16> to vector<8x8x8xbf16>
    %22 = vector.shape_cast %21 : vector<8x8x8xbf16> to vector<64x8xbf16>
    %c3 = arith.constant 3 : index
    %c0_24 = arith.constant 0 : index
    %c0_25 = arith.constant 0 : index
    %23 = vector.load %arg2[%c3, %c0_24, %c0_25] : memref<9x8x16xbf16, #tpu.memory_space<vmem>>, vector<1x8x16xbf16>
    %24 = vector.shape_cast %23 : vector<1x8x16xbf16> to vector<8x16xbf16>
    %cst_26 = arith.constant dense<0.000000e+00> : vector<64x16xf32>
    %25 = tpu.matmul %22, %24, %cst_26 {dimension_numbers = #tpu.dot_dimension_numbers<[1], [0], [0], [1], [0, 0, 1, 1], [], []>} : vector<64x8xbf16>, vector<8x16xbf16>, vector<64x16xf32> -> vector<64x16xf32>
    %26 = arith.addf %19, %25 : vector<64x16xf32>
    %c0_27 = arith.constant 0 : index
    %c1_28 = arith.constant 1 : index
    %c1_29 = arith.constant 1 : index
    %c0_30 = arith.constant 0 : index
    %27 = vector.load %arg1[%c0_27, %c1_28, %c1_29, %c0_30] : memref<1x10x10x8xbf16, #tpu.memory_space<vmem>>, vector<1x8x8x8xbf16>
    %28 = vector.shape_cast %27 : vector<1x8x8x8xbf16> to vector<8x8x8xbf16>
    %29 = vector.shape_cast %28 : vector<8x8x8xbf16> to vector<64x8xbf16>
    %c4 = arith.constant 4 : index
    %c0_31 = arith.constant 0 : index
    %c0_32 = arith.constant 0 : index
    %30 = vector.load %arg2[%c4, %c0_31, %c0_32] : memref<9x8x16xbf16, #tpu.memory_space<vmem>>, vector<1x8x16xbf16>
    %31 = vector.shape_cast %30 : vector<1x8x16xbf16> to vector<8x16xbf16>
    %cst_33 = arith.constant dense<0.000000e+00> : vector<64x16xf32>
    %32 = tpu.matmul %29, %31, %cst_33 {dimension_numbers = #tpu.dot_dimension_numbers<[1], [0], [0], [1], [0, 0, 1, 1], [], []>} : vector<64x8xbf16>, vector<8x16xbf16>, vector<64x16xf32> -> vector<64x16xf32>
    %33 = arith.addf %26, %32 : vector<64x16xf32>
    %c0_34 = arith.constant 0 : index
    %c1_35 = arith.constant 1 : index
    %c2_36 = arith.constant 2 : index
    %c0_37 = arith.constant 0 : index
    %34 = vector.load %arg1[%c0_34, %c1_35, %c2_36, %c0_37] : memref<1x10x10x8xbf16, #tpu.memory_space<vmem>>, vector<1x8x8x8xbf16>
    %35 = vector.shape_cast %34 : vector<1x8x8x8xbf16> to vector<8x8x8xbf16>
    %36 = vector.shape_cast %35 : vector<8x8x8xbf16> to vector<64x8xbf16>
    %c5 = arith.constant 5 : index
    %c0_38 = arith.constant 0 : index
    %c0_39 = arith.constant 0 : index
    %37 = vector.load %arg2[%c5, %c0_38, %c0_39] : memref<9x8x16xbf16, #tpu.memory_space<vmem>>, vector<1x8x16xbf16>
    %38 = vector.shape_cast %37 : vector<1x8x16xbf16> to vector<8x16xbf16>
    %cst_40 = arith.constant dense<0.000000e+00> : vector<64x16xf32>
    %39 = tpu.matmul %36, %38, %cst_40 {dimension_numbers = #tpu.dot_dimension_numbers<[1], [0], [0], [1], [0, 0, 1, 1], [], []>} : vector<64x8xbf16>, vector<8x16xbf16>, vector<64x16xf32> -> vector<64x16xf32>
    %40 = arith.addf %33, %39 : vector<64x16xf32>
    %c0_41 = arith.constant 0 : index
    %c2_42 = arith.constant 2 : index
    %c0_43 = arith.constant 0 : index
    %c0_44 = arith.constant 0 : index
    %41 = vector.load %arg1[%c0_41, %c2_42, %c0_43, %c0_44] : memref<1x10x10x8xbf16, #tpu.memory_space<vmem>>, vector<1x8x8x8xbf16>
    %42 = vector.shape_cast %41 : vector<1x8x8x8xbf16> to vector<8x8x8xbf16>
    %43 = vector.shape_cast %42 : vector<8x8x8xbf16> to vector<64x8xbf16>
    %c6 = arith.constant 6 : index
    %c0_45 = arith.constant 0 : index
    %c0_46 = arith.constant 0 : index
    %44 = vector.load %arg2[%c6, %c0_45, %c0_46] : memref<9x8x16xbf16, #tpu.memory_space<vmem>>, vector<1x8x16xbf16>
    %45 = vector.shape_cast %44 : vector<1x8x16xbf16> to vector<8x16xbf16>
    %cst_47 = arith.constant dense<0.000000e+00> : vector<64x16xf32>
    %46 = tpu.matmul %43, %45, %cst_47 {dimension_numbers = #tpu.dot_dimension_numbers<[1], [0], [0], [1], [0, 0, 1, 1], [], []>} : vector<64x8xbf16>, vector<8x16xbf16>, vector<64x16xf32> -> vector<64x16xf32>
    %47 = arith.addf %40, %46 : vector<64x16xf32>
    %c0_48 = arith.constant 0 : index
    %c2_49 = arith.constant 2 : index
    %c1_50 = arith.constant 1 : index
    %c0_51 = arith.constant 0 : index
    %48 = vector.load %arg1[%c0_48, %c2_49, %c1_50, %c0_51] : memref<1x10x10x8xbf16, #tpu.memory_space<vmem>>, vector<1x8x8x8xbf16>
    %49 = vector.shape_cast %48 : vector<1x8x8x8xbf16> to vector<8x8x8xbf16>
    %50 = vector.shape_cast %49 : vector<8x8x8xbf16> to vector<64x8xbf16>
    %c7 = arith.constant 7 : index
    %c0_52 = arith.constant 0 : index
    %c0_53 = arith.constant 0 : index
    %51 = vector.load %arg2[%c7, %c0_52, %c0_53] : memref<9x8x16xbf16, #tpu.memory_space<vmem>>, vector<1x8x16xbf16>
    %52 = vector.shape_cast %51 : vector<1x8x16xbf16> to vector<8x16xbf16>
    %cst_54 = arith.constant dense<0.000000e+00> : vector<64x16xf32>
    %53 = tpu.matmul %50, %52, %cst_54 {dimension_numbers = #tpu.dot_dimension_numbers<[1], [0], [0], [1], [0, 0, 1, 1], [], []>} : vector<64x8xbf16>, vector<8x16xbf16>, vector<64x16xf32> -> vector<64x16xf32>
    %54 = arith.addf %47, %53 : vector<64x16xf32>
    %c0_55 = arith.constant 0 : index
    %c2_56 = arith.constant 2 : index
    %c2_57 = arith.constant 2 : index
    %c0_58 = arith.constant 0 : index
    %55 = vector.load %arg1[%c0_55, %c2_56, %c2_57, %c0_58] : memref<1x10x10x8xbf16, #tpu.memory_space<vmem>>, vector<1x8x8x8xbf16>
    %56 = vector.shape_cast %55 : vector<1x8x8x8xbf16> to vector<8x8x8xbf16>
    %57 = vector.shape_cast %56 : vector<8x8x8xbf16> to vector<64x8xbf16>
    %c8 = arith.constant 8 : index
    %c0_59 = arith.constant 0 : index
    %c0_60 = arith.constant 0 : index
    %58 = vector.load %arg2[%c8, %c0_59, %c0_60] : memref<9x8x16xbf16, #tpu.memory_space<vmem>>, vector<1x8x16xbf16>
    %59 = vector.shape_cast %58 : vector<1x8x16xbf16> to vector<8x16xbf16>
    %cst_61 = arith.constant dense<0.000000e+00> : vector<64x16xf32>
    %60 = tpu.matmul %57, %59, %cst_61 {dimension_numbers = #tpu.dot_dimension_numbers<[1], [0], [0], [1], [0, 0, 1, 1], [], []>} : vector<64x8xbf16>, vector<8x16xbf16>, vector<64x16xf32> -> vector<64x16xf32>
    %61 = arith.addf %54, %60 : vector<64x16xf32>
    %62 = arith.truncf %61 : vector<64x16xf32> to vector<64x16xbf16>
    %c0_62 = arith.constant 0 : index
    %c0_63 = arith.constant 0 : index
    %c0_64 = arith.constant 0 : index
    %63 = vector.load %arg3[%c0_62, %c0_63, %c0_64] : memref<1x64x16xbf16, #tpu.memory_space<vmem>>, vector<1x64x16xbf16>
    %64 = vector.shape_cast %63 : vector<1x64x16xbf16> to vector<64x16xbf16>
    %65 = vector.shape_cast %62 : vector<64x16xbf16> to vector<1x64x16xbf16>
    tpu.vector_store %arg3[%c0_62, %c0_63, %c0_64], %65 {strides = array<i32>} : memref<1x64x16xbf16, #tpu.memory_space<vmem>>, vector<1x64x16xbf16>,
    %cst_65 = arith.constant dense<0.000000e+00> : vector<16xf32>
    %66 = vector.multi_reduction <add>, %61, %cst_65 [0] : vector<64x16xf32> to vector<16xf32>
    %67 = vector.shape_cast %66 : vector<16xf32> to vector<1x16xf32>
    %68 = arith.mulf %61, %61 : vector<64x16xf32>
    %cst_66 = arith.constant dense<0.000000e+00> : vector<16xf32>
    %69 = vector.multi_reduction <add>, %68, %cst_66 [0] : vector<64x16xf32> to vector<16xf32>
    %70 = vector.shape_cast %69 : vector<16xf32> to vector<1x16xf32>
    %71 = tpu.concatenate %67, %70 in 0 : vector<1x16xf32>, vector<1x16xf32> -> vector<2x16xf32>
    %c0_67 = arith.constant 0 : index
    %c0_68 = arith.constant 0 : index
    %c0_69 = arith.constant 0 : index
    %72 = vector.load %arg4[%c0_67, %c0_68, %c0_69] : memref<1x2x16xf32, #tpu.memory_space<vmem>>, vector<1x2x16xf32>
    %73 = vector.shape_cast %72 : vector<1x2x16xf32> to vector<2x16xf32>
    %74 = vector.shape_cast %71 : vector<2x16xf32> to vector<1x2x16xf32>
    tpu.vector_store %arg4[%c0_67, %c0_68, %c0_69], %74 {strides = array<i32>} : memref<1x2x16xf32, #tpu.memory_space<vmem>>, vector<1x2x16xf32>,
    return
  }
  func.func @transform_0(%arg0: i32) -> (i32, i32, i32, i32) {
    %c0_i32 = arith.constant 0 : i32
    %c0_i32_0 = arith.constant 0 : i32
    %c0_i32_1 = arith.constant 0 : i32
    %c0_i32_2 = arith.constant 0 : i32
    return %arg0, %c0_i32, %c0_i32_0, %c0_i32_1 : i32, i32, i32, i32
  }
  func.func @transform_1(%arg0: i32) -> (i32, i32, i32) {
    %c0_i32 = arith.constant 0 : i32
    %c0_i32_0 = arith.constant 0 : i32
    %c0_i32_1 = arith.constant 0 : i32
    %c0_i32_2 = arith.constant 0 : i32
    return %c0_i32, %c0_i32_0, %c0_i32_1 : i32, i32, i32
  }
  func.func @transform_2(%arg0: i32) -> (i32, i32, i32) {
    %c0_i32 = arith.constant 0 : i32
    %c0_i32_0 = arith.constant 0 : i32
    %c0_i32_1 = arith.constant 0 : i32
    return %arg0, %c0_i32, %c0_i32_0 : i32, i32, i32
  }
  func.func @transform_3(%arg0: i32) -> (i32, i32, i32) {
    %c0_i32 = arith.constant 0 : i32
    %c0_i32_0 = arith.constant 0 : i32
    %c0_i32_1 = arith.constant 0 : i32
    return %arg0, %c0_i32, %c0_i32_0 : i32, i32, i32
  }
}

module attributes {stable_mosaic.version = 11 : i64} {
  func.func @kernel(%arg0: i32, %arg1: memref<1xi32, #tpu.memory_space<smem>>, %arg2: memref<8x256xbf16, #tpu.memory_space<vmem>>, %arg3: memref<1x256xf32, #tpu.memory_space<vmem>>, %arg4: memref<1x256xf32, #tpu.memory_space<vmem>>, %arg5: memref<8x256xbf16, #tpu.memory_space<vmem>>) attributes {dimension_semantics = [#tpu.dimension_semantics<parallel>], iteration_bounds = array<i64: 1>, scalar_prefetch = 1 : i64, scratch_operands = 0 : i64, tpu.core_type = #tpu.core_type<tc>, window_params = [{transform_indices = @transform_0, window_bounds = array<i64: 8, 256>}, {pipeline_mode = #tpu.pipeline_mode<synchronous>, transform_indices = @transform_1, window_bounds = array<i64: 1, 256>}, {pipeline_mode = #tpu.pipeline_mode<synchronous>, transform_indices = @transform_2, window_bounds = array<i64: 1, 256>}, {transform_indices = @transform_3, window_bounds = array<i64: 8, 256>}]} {
    %c0 = arith.constant 0 : index
    %c0_0 = arith.constant 0 : index
    %0 = vector.load %arg2[%c0, %c0_0] : memref<8x256xbf16, #tpu.memory_space<vmem>>, vector<8x256xbf16>
    %1 = arith.extf %0 : vector<8x256xbf16> to vector<8x256xf32>
    %c0_1 = arith.constant 0 : index
    %c0_2 = arith.constant 0 : index
    %2 = vector.load %arg3[%c0_1, %c0_2] : memref<1x256xf32, #tpu.memory_space<vmem>>, vector<1x256xf32>
    %3 = vector.broadcast %2 : vector<1x256xf32> to vector<8x256xf32>
    %4 = arith.mulf %1, %3 : vector<8x256xf32>
    %c0_3 = arith.constant 0 : index
    %c0_4 = arith.constant 0 : index
    %5 = vector.load %arg4[%c0_3, %c0_4] : memref<1x256xf32, #tpu.memory_space<vmem>>, vector<1x256xf32>
    %6 = vector.broadcast %5 : vector<1x256xf32> to vector<8x256xf32>
    %7 = arith.addf %4, %6 : vector<8x256xf32>
    %cst = arith.constant 0.000000e+00 : f32
    %8 = vector.broadcast %cst : f32 to vector<8x256xf32>
    %9 = arith.maximumf %7, %8 : vector<8x256xf32>
    %10 = arith.truncf %9 : vector<8x256xf32> to vector<8x256xbf16>
    %c0_5 = arith.constant 0 : index
    %c0_6 = arith.constant 0 : index
    %11 = vector.load %arg5[%c0_5, %c0_6] : memref<8x256xbf16, #tpu.memory_space<vmem>>, vector<8x256xbf16>
    tpu.vector_store %arg5[%c0_5, %c0_6], %10 {strides = array<i32>} : memref<8x256xbf16, #tpu.memory_space<vmem>>, vector<8x256xbf16>,
    return
  }
  func.func @transform_0(%arg0: i32, %arg1: memref<1xi32, #tpu.memory_space<smem>>) -> (i32, i32) {
    %c0_i32 = arith.constant 0 : i32
    %c0_i32_0 = arith.constant 0 : i32
    return %arg0, %c0_i32 : i32, i32
  }
  func.func @transform_1(%arg0: i32, %arg1: memref<1xi32, #tpu.memory_space<smem>>) -> (i32, i32) {
    %c0_i32 = arith.constant 0 : i32
    %c0_i32_0 = arith.constant 0 : i32
    %c0_i32_1 = arith.constant 0 : i32
    return %c0_i32, %c0_i32_0 : i32, i32
  }
  func.func @transform_2(%arg0: i32, %arg1: memref<1xi32, #tpu.memory_space<smem>>) -> (i32, i32) {
    %c0_i32 = arith.constant 0 : i32
    %c0_i32_0 = arith.constant 0 : i32
    %c0_i32_1 = arith.constant 0 : i32
    return %c0_i32, %c0_i32_0 : i32, i32
  }
  func.func @transform_3(%arg0: i32, %arg1: memref<1xi32, #tpu.memory_space<smem>>) -> (i32, i32) {
    %c0_i32 = arith.constant 0 : i32
    %c0_i32_0 = arith.constant 0 : i32
    return %arg0, %c0_i32 : i32, i32
  }
}

</mosaic_0001>

<llo_original>
// kernel: tile.32
$region0: #{tile.32}
  #allocation0 [shape = 's32[1]{0}', space=sflag, size = 0x4, scoped, tag = 'scoped memory for tile.32']
  %s0 = inlined_call_operand.vmem [shape: f32[8], index: 0, kind: input, shape index: {}]
  %s1 = inlined_call_operand.vmem [shape: f32[16,8], index: 1, kind: output, shape index: {}]
  // Predicated region
  $region2: #{tile.32} parent=0 // pred_check
    _
  $region3: #{tile.32} parent=0 // pred_check_branch
    %3 = sbr.rel (0) target = $region5
  $region4: #{tile.32} parent=0 // pred_region
    _
  $region5: #{tile.32} parent=0 // pred_fallthru
    _
  %v4 = vld [vmem:[%s0] ss:$0 sm:$0xff]
  %5 = vst [vmem:[%s1] sm:$0xff] %v4
  %s6 = scalar_lea.vmem %s1, 8
  %7 = vst [vmem:[%s6] sm:$0xff] %v4

// kernel: tile.36
$region0: #{tile.36}
  %s0 = inlined_call_operand.vmem [shape: f32[16,8], index: 0, kind: input, shape index: {}]
  %s1 = inlined_call_operand.vmem [shape: f32[1,128], index: 1, kind: output, shape index: {}]
  $region1: #{tile.36} parent=0
    #allocation0 [shape = 'u8[4096]{0}', space=vmem, size = 0x1000, scoped, tag = 'scoped mem for output reshape']
    %v2 = vld [vmem:[%s0] sm:$0x1]
    %vm3 = vcmask 64512
    %4 = vst.msk [vmem:[#allocation0] sm:$0x1] %vm3, %v2
    %s5 = scalar_lea.vmem %s0, 15
    %v6 = vld [vmem:[%s5] sm:$0x1]
    %7 = vrot.lane.b32.xlu0 %v6, 120
    %v8 = vpop.permute.xlu0 %7
    %vm9 = vcmask 1048512
    %10 = vst.msk [vmem:[#allocation0] sm:$0x1] %vm9, %v8
    %s11 = scalar_lea.vmem %s0, 14
    %v12 = vld [vmem:[%s11] sm:$0x1]
    %13 = vrot.lane.b32.xlu0 %v12, 112
    %v14 = vpop.permute.xlu0 %13
    %vm15 = vcmask 982912
    %16 = vst.msk [vmem:[#allocation0] sm:$0x1] %vm15, %v14
    %s17 = scalar_lea.vmem %s0, 13
    %v18 = vld [vmem:[%s17] sm:$0x1]
    %19 = vrot.lane.b32.xlu0 %v18, 104
    %v20 = vpop.permute.xlu0 %19
    %vm21 = vcmask 917312
    %22 = vst.msk [vmem:[#allocation0] sm:$0x1] %vm21, %v20
    %s23 = scalar_lea.vmem %s0, 12
    %v24 = vld [vmem:[%s23] sm:$0x1]
    %25 = vrot.lane.b32.xlu0 %v24, 96
    %v26 = vpop.permute.xlu0 %25
    %vm27 = vcmask 851712
    %28 = vst.msk [vmem:[#allocation0] sm:$0x1] %vm27, %v26
    %s29 = scalar_lea.vmem %s0, 11
    %v30 = vld [vmem:[%s29] sm:$0x1]
    %31 = vrot.lane.b32.xlu0 %v30, 88
    %v32 = vpop.permute.xlu0 %31
    %vm33 = vcmask 786112
    %34 = vst.msk [vmem:[#allocation0] sm:$0x1] %vm33, %v32
    %s35 = scalar_lea.vmem %s0, 10
    %v36 = vld [vmem:[%s35] sm:$0x1]
    %37 = vrot.lane.b32.xlu0 %v36, 80
    %v38 = vpop.permute.xlu0 %37
    %vm39 = vcmask 720512
    %40 = vst.msk [vmem:[#allocation0] sm:$0x1] %vm39, %v38
    %s41 = scalar_lea.vmem %s0, 9
    %v42 = vld [vmem:[%s41] sm:$0x1]
    %43 = vrot.lane.b32.xlu0 %v42, 72
    %v44 = vpop.permute.xlu0 %43
    %vm45 = vcmask 654912
    %46 = vst.msk [vmem:[#allocation0] sm:$0x1] %vm45, %v44
    %s47 = scalar_lea.vmem %s0, 8
    %v48 = vld [vmem:[%s47] sm:$0x1]
    %49 = vrot.lane.b32.xlu0 %v48, 64
    %v50 = vpop.permute.xlu0 %49
    %vm51 = vcmask 589312
    %52 = vst.msk [vmem:[#allocation0] sm:$0x1] %vm51, %v50
    %s53 = scalar_lea.vmem %s0, 7
    %v54 = vld [vmem:[%s53] sm:$0x1]
    %55 = vrot.lane.b32.xlu0 %v54, 56
    %v56 = vpop.permute.xlu0 %55
    %vm57 = vcmask 523712
    %58 = vst.msk [vmem:[#allocation0] sm:$0x1] %vm57, %v56
    %s59 = scalar_lea.vmem %s0, 6
    %v60 = vld [vmem:[%s59] sm:$0x1]
    %61 = vrot.lane.b32.xlu0 %v60, 48
    %v62 = vpop.permute.xlu0 %61
    %vm63 = vcmask 458112
    %64 = vst.msk [vmem:[#allocation0] sm:$0x1] %vm63, %v62
    %s65 = scalar_lea.vmem %s0, 5
    %v66 = vld [vmem:[%s65] sm:$0x1]
    %67 = vrot.lane.b32.xlu0 %v66, 40
    %v68 = vpop.permute.xlu0 %67
    %vm69 = vcmask 392512
    %70 = vst.msk [vmem:[#allocation0] sm:$0x1] %vm69, %v68
    %s71 = scalar_lea.vmem %s0, 4
    %v72 = vld [vmem:[%s71] sm:$0x1]
    %73 = vrot.lane.b32.xlu0 %v72, 32
    %v74 = vpop.permute.xlu0 %73
    %vm75 = vcmask 326912
    %76 = vst.msk [vmem:[#allocation0] sm:$0x1] %vm75, %v74
    %s77 = scalar_lea.vmem %s0, 3
    %v78 = vld [vmem:[%s77] sm:$0x1]
    %79 = vrot.lane.b32.xlu0 %v78, 24
    %v80 = vpop.permute.xlu0 %79
    %vm81 = vcmask 261312
    %82 = vst.msk [vmem:[#allocation0] sm:$0x1] %vm81, %v80
    %s83 = scalar_lea.vmem %s0, 2
    %v84 = vld [vmem:[%s83] sm:$0x1]
    %85 = vrot.lane.b32.xlu0 %v84, 16
    %v86 = vpop.permute.xlu0 %85
    %vm87 = vcmask 195712
    %88 = vst.msk [vmem:[#allocation0] sm:$0x1] %vm87, %v86
    %s89 = scalar_lea.vmem %s0, 1
    %v90 = vld [vmem:[%s89] sm:$0x1]
    %91 = vrot.lane.b32.xlu0 %v90, 8
    %v92 = vpop.permute.xlu0 %91
    %vm93 = vcmask 130112
    %94 = vst.msk [vmem:[#allocation0] sm:$0x1] %vm93, %v92
    %s96 = sshllo.u32 0, 1
    %v98 = vld [vmem:[#allocation0] sm:%s96]
    %s99 = sshllo.u32 0, 1
    %100 = vst [vmem:[%s1] sm:%s99] %v98

// kernel: run.5
$region0: #{run.5}
  #allocation0 [shape = 'u32[]', space=smem, size = 0x4, offset = 0x4, fixed_abs, tag = 'smem constant byte address 0x4 - core index']
  #allocation1 [shape = 'u32[144,128]{1,0:T(1,128)}', space=vmem, size = 0x12000, scoped, tag = 'internal scratch']
  #allocation2 [shape = 's32[1]{0}', space=sflag, size = 0x4, scoped, tag = 'scoped memory for run.5']
  #allocation3 [shape = 's32[1]{0:T(128)S(6)}', space=smem, size = 0x200, scoped, tag = 'prefetched SMEM operand 0']
  %s0 = inlined_call_operand.<no memory space> [shape: s32[1], index: 0, kind: input, shape index: {}]
  %s1 = inlined_call_operand.vmem [shape: bf16[8,128], index: 1, kind: input, shape index: {}]
  %s2 = inlined_call_operand.vmem [shape: f32[1,128], index: 2, kind: input, shape index: {}]
  %s3 = inlined_call_operand.vmem [shape: f32[1,128], index: 3, kind: input, shape index: {}]
  %s4 = inlined_call_operand.vmem [shape: bf16[8,128], index: 4, kind: output, shape index: {}]
  %s5 = sld [smem:[#allocation0]]
  $region22: #{run.5} parent=0
    _
  %s7 = ssub.s32 1, %s5
  %s8 = scalar_select 0, %s7, %s5
  %9 = sst [smem:[#allocation3]] %s0
  // Predicated region
  $region2: #{run.5} parent=0 // pred_check
    _
  $region3: #{run.5} parent=0 // pred_check_branch
    %11 = sbr.rel (0) target = $region5
  $region4: #{run.5} parent=0 // pred_region
    _
  $region5: #{run.5} parent=0 // pred_fallthru
    _
  // Predicated region
  $region6: #{run.5} parent=0 // pred_check
    _
  $region7: #{run.5} parent=0 // pred_check_branch
    %13 = sbr.rel (0) target = $region9
  $region8: #{run.5} parent=0 // pred_region
    _
  $region9: #{run.5} parent=0 // pred_fallthru
    _
  // Predicated region
  $region10: #{run.5} parent=0 // pred_check
    _
  $region11: #{run.5} parent=0 // pred_check_branch
    %15 = sbr.rel (0) target = $region13
  $region12: #{run.5} parent=0 // pred_region
    _
  $region13: #{run.5} parent=0 // pred_fallthru
    _
  %v16 = vld [vmem:[%s1] sm:$0xf]
  %v17 = vunpack.c.l.bf16 %v16
  %v18 = vld [vmem:[%s2] sm:$0x1]
  %v20 = vlaneseq
  %v21 = vshrl.u32 %v20, 7
  %v22 = vsub.s32 0, %v21
  %v23 = vrot.slane %v18, %v22
  %v25 = vmul.f32 %v17, %v23
  %v26 = vld [vmem:[%s3] sm:$0x1]
  %v28 = vlaneseq
  %v29 = vshrl.u32 %v28, 7
  %v30 = vsub.s32 0, %v29
  %v31 = vrot.slane %v26, %v30
  %v33 = vadd.f32 %v25, %v31
  %vm34 = vcmp.ge.f32.partialorder %v33, 0.0
  %v35 = vmul.f32 %v33, 0.2
  %v36 = vsel %vm34, %v33, %v35
  %v37 = vpack.c.bf16 %v36, %v36
  %38 = vst [vmem:[%s4] sm:$0xf] %v37
  // Predicated region
  $region14: #{run.5} parent=0 // pred_check
    _
  $region15: #{run.5} parent=0 // pred_check_branch
    %40 = sbr.rel (0) target = $region17
  $region16: #{run.5} parent=0 // pred_region
    _
  $region17: #{run.5} parent=0 // pred_fallthru
    _
  // Predicated region
  $region18: #{run.5} parent=0 // pred_check
    _
  $region19: #{run.5} parent=0 // pred_check_branch
    %42 = sbr.rel (0) target = $region21
  $region20: #{run.5} parent=0 // pred_region
    _
  $region21: #{run.5} parent=0 // pred_fallthru
    _

// kernel: tile.41
$region0: #{tile.41}
  #allocation0 [shape = 's32[1]{0}', space=sflag, size = 0x4, scoped, tag = 'scoped memory for tile.41']
  %s0 = inlined_call_operand.vmem [shape: f32[4], index: 0, kind: input, shape index: {}]
  %s1 = inlined_call_operand.vmem [shape: f32[4,4], index: 1, kind: output, shape index: {}]
  // Predicated region
  $region2: #{tile.41} parent=0 // pred_check
    _
  $region3: #{tile.41} parent=0 // pred_check_branch
    %3 = sbr.rel (0) target = $region5
  $region4: #{tile.41} parent=0 // pred_region
    _
  $region5: #{tile.41} parent=0 // pred_fallthru
    _
  %v4 = vld [vmem:[%s0] ss:$0 sm:$0xff]
  %5 = vst [vmem:[%s1] sm:$0xf] %v4

// kernel: tile.48
$region0: #{tile.48}
  %s0 = inlined_call_operand.vmem [shape: f32[4,4], index: 0, kind: input, shape index: {}]
  %s1 = inlined_call_operand.vmem [shape: f32[16], index: 1, kind: output, shape index: {}]
  $region1: #{tile.48} parent=0
    #allocation0 [shape = 'u8[4096]{0}', space=vmem, size = 0x1000, scoped, tag = 'scoped mem for output reshape']
    #allocation1 [shape = 'u8[4096]{0}', space=vmem, size = 0x1000, scoped, tag = 'scoped mem for input reshape']
    %s3 = sshllo.u32 0, 4
    %v4 = vld [vmem:[%s0] sm:%s3]
    %5 = vst [vmem:[#allocation1] sm:%s3] %v4
    %v6 = vld [vmem:[#allocation1] sm:$0x1]
    %vm7 = vcmask 31744
    %8 = vst.msk [vmem:[#allocation0] sm:$0x1] %vm7, %v6
    %s9 = scalar_lea.vmem [#allocation1], 3
    %v10 = vld [vmem:[%s9] sm:$0x1]
    %11 = vrot.lane.b32.xlu0 %v10, 12
    %v12 = vpop.permute.xlu0 %11
    %vm13 = vcmask 130144
    %14 = vst.msk [vmem:[#allocation0] sm:$0x1] %vm13, %v12
    %s15 = scalar_lea.vmem [#allocation1], 2
    %v16 = vld [vmem:[%s15] sm:$0x1]
    %17 = vrot.lane.b32.xlu0 %v16, 8
    %v18 = vpop.permute.xlu0 %17
    %vm19 = vcmask 97344
    %20 = vst.msk [vmem:[#allocation0] sm:$0x1] %vm19, %v18
    %s21 = scalar_lea.vmem [#allocation1], 1
    %v22 = vld [vmem:[%s21] sm:$0x1]
    %23 = vrot.lane.b32.xlu0 %v22, 4
    %v24 = vpop.permute.xlu0 %23
    %vm25 = vcmask 64544
    %26 = vst.msk [vmem:[#allocation0] sm:$0x1] %vm25, %v24
    %s28 = sshllo.u32 0, 1
    %v30 = vld [vmem:[#allocation0] sm:%s28]
    %s31 = sshllo.u32 0, 1
    %32 = vst [vmem:[%s1] sm:%s31] %v30

// kernel: tile.49
$region0: #{tile.49}
  #allocation0 [shape = 's32[1]{0}', space=sflag, size = 0x4, scoped, tag = 'scoped memory for tile.49']
  %s0 = inlined_call_operand.vmem [shape: f32[16], index: 0, kind: input, shape index: {}]
  %s1 = inlined_call_operand.vmem [shape: f32[16,16], index: 1, kind: output, shape index: {}]
  // Predicated region
  $region2: #{tile.49} parent=0 // pred_check
    _
  $region3: #{tile.49} parent=0 // pred_check_branch
    %3 = sbr.rel (0) target = $region5
  $region4: #{tile.49} parent=0 // pred_region
    _
  $region5: #{tile.49} parent=0 // pred_fallthru
    _
  %v4 = vld [vmem:[%s0] ss:$0 sm:$0xff]
  %5 = vst [vmem:[%s1] sm:$0xff] %v4
  %s6 = scalar_lea.vmem %s1, 8
  %7 = vst [vmem:[%s6] sm:$0xff] %v4

// kernel: tile.54
$region0: #{tile.54}
  %s0 = inlined_call_operand.vmem [shape: f32[16,16], index: 0, kind: input, shape index: {}]
  %s1 = inlined_call_operand.vmem [shape: f32[1,256], index: 1, kind: output, shape index: {}]
  $region1: #{tile.54} parent=0
    #allocation0 [shape = 'u8[8192]{0}', space=vmem, size = 0x2000, scoped, tag = 'scoped mem for output reshape']
    %s2 = smov 3
    %v3 = vld [vmem:[%s0] ss:$8 sm:%s2]
    %vm4 = vcmask 130048
    %5 = vst.msk [vmem:[#allocation0] ss:$8 sm:$0x3] %vm4, %v3
    %s6 = scalar_lea.vmem %s0, 7
    %s7 = smov 3
    %v8 = vld [vmem:[%s6] ss:$8 sm:%s7]
    %9 = vrot.lane.b32.xlu0 %v8, 112
    %v10 = vpop.permute.xlu0 %9
    %vm11 = vcmask 1048448
    %12 = vst.msk [vmem:[#allocation0] ss:$8 sm:$0x3] %vm11, %v10
    %s13 = scalar_lea.vmem %s0, 6
    %s14 = smov 3
    %v15 = vld [vmem:[%s13] ss:$8 sm:%s14]
    %16 = vrot.lane.b32.xlu0 %v15, 96
    %v17 = vpop.permute.xlu0 %16
    %vm18 = vcmask 917248
    %19 = vst.msk [vmem:[#allocation0] ss:$8 sm:$0x3] %vm18, %v17
    %s20 = scalar_lea.vmem %s0, 5
    %s21 = smov 3
    %v22 = vld [vmem:[%s20] ss:$8 sm:%s21]
    %23 = vrot.lane.b32.xlu0 %v22, 80
    %v24 = vpop.permute.xlu0 %23
    %vm25 = vcmask 786048
    %26 = vst.msk [vmem:[#allocation0] ss:$8 sm:$0x3] %vm25, %v24
    %s27 = scalar_lea.vmem %s0, 4
    %s28 = smov 3
    %v29 = vld [vmem:[%s27] ss:$8 sm:%s28]
    %30 = vrot.lane.b32.xlu0 %v29, 64
    %v31 = vpop.permute.xlu0 %30
    %vm32 = vcmask 654848
    %33 = vst.msk [vmem:[#allocation0] ss:$8 sm:$0x3] %vm32, %v31
    %s34 = scalar_lea.vmem %s0, 3
    %s35 = smov 3
    %v36 = vld [vmem:[%s34] ss:$8 sm:%s35]
    %37 = vrot.lane.b32.xlu0 %v36, 48
    %v38 = vpop.permute.xlu0 %37
    %vm39 = vcmask 523648
    %40 = vst.msk [vmem:[#allocation0] ss:$8 sm:$0x3] %vm39, %v38
    %s41 = scalar_lea.vmem %s0, 2
    %s42 = smov 3
    %v43 = vld [vmem:[%s41] ss:$8 sm:%s42]
    %44 = vrot.lane.b32.xlu0 %v43, 32
    %v45 = vpop.permute.xlu0 %44
    %vm46 = vcmask 392448
    %47 = vst.msk [vmem:[#allocation0] ss:$8 sm:$0x3] %vm46, %v45
    %s48 = scalar_lea.vmem %s0, 1
    %s49 = smov 3
    %v50 = vld [vmem:[%s48] ss:$8 sm:%s49]
    %51 = vrot.lane.b32.xlu0 %v50, 16
    %v52 = vpop.permute.xlu0 %51
    %vm53 = vcmask 261248
    %54 = vst.msk [vmem:[#allocation0] ss:$8 sm:$0x3] %vm53, %v52
    %s56 = sshllo.u32 0, 1
    %v58 = vld [vmem:[#allocation0] sm:%s56]
    %s59 = sshllo.u32 0, 1
    %60 = vst [vmem:[%s1] sm:%s59] %v58
    %s61 = scalar_lea.vmem [#allocation0], 8
    %v62 = vld [vmem:[%s61] sm:%s56]
    %s63 = sshllo.u32 0, 1
    %s64 = scalar_lea.vmem %s1, 1
    %65 = vst [vmem:[%s64] sm:%s63] %v62

// kernel: run.4
$region0: #{run.4}
  #allocation0 [shape = 'u32[]', space=smem, size = 0x4, offset = 0x4, fixed_abs, tag = 'smem constant byte address 0x4 - core index']
  #allocation1 [shape = 'u32[144,128]{1,0:T(1,128)}', space=vmem, size = 0x12000, scoped, tag = 'internal scratch']
  %s0 = inlined_call_operand.vmem [shape: bf16[2,9,9,16], index: 0, kind: input, shape index: {}]
  %s1 = inlined_call_operand.vmem [shape: bf16[4,16,8], index: 1, kind: input, shape index: {}]
  %s2 = inlined_call_operand.vmem [shape: bf16[2,64,8], index: 2, kind: output, shape index: {0}]
  %s3 = inlined_call_operand.vmem [shape: f32[2,2,8], index: 3, kind: output, shape index: {1}]
  %4 = xla_tuple %s2, %s3
  %s5 = sld [smem:[#allocation0]]
  $region49: #{run.4} parent=0
    _
  %s7 = ssub.s32 1, %s5
  %s8 = scalar_select 0, %s7, %s5
  loop: start=0, step=1, limit=4
  $region2: #{run.4} parent=0 // loop_pre_header
    _
  $region3: #{run.4} parent=0 // loop_header
    %s10 = sphi 0, %s14
    %p11 = scmp.ge.s32.totalorder %s10, 4
    %s20 = sphi 0, %s22
    %s23 = sphi 0, %s20
    %s24 = sphi 0, %s23
    %s40 = sphi 0, %s24
    %s44 = sphi 0, %s44
    %s46 = sphi 0, %s44
    %s47 = sphi 0, %s46
    %s61 = sphi 0, %s47
    %s67 = sphi 0, %s69
    %s70 = sphi 0, %s67
    %s71 = sphi 0, %s70
    %s87 = sphi 0, %s71
    %s93 = sphi 0, %s95
    %s96 = sphi 0, %s93
    %s97 = sphi 0, %s96
    %s113 = sphi 0, %s97
  $region4: #{run.4} parent=0 // loop_header_branch
    %13 = sbr.rel (%p11) target = $region8
  $region5: #{run.4} parent=0 // loop_body
    %s15 = ssub.s32 %s10, 1
    %s16 = ssub.s32 %s10, 2
    %s17 = sadd.s32 %s10, 1
    %s18 = ssub.s32 %s10, %s17
    %p19 = scmp.eq.s32.totalorder %s18, 0
    %s21 = sadd.s32 %s20, 1
    %s22 = scalar_select %p19, %s20, %s21
    %p25 = pneg %p19
    %p26 = scmp.eq.s32.totalorder %s10, 1
    %p27 = por %p25, %p26
    %p28 = scmp.ne.s32.totalorder %s20, %s23
    %p29 = scmp.eq.s32.totalorder %s10, 0
    %p30 = por %p28, %p29
    %p31 = scmp.ne.s32.totalorder %s20, %s23
    %p32 = scmp.eq.s32.totalorder %s15, 1
    %p33 = por %p31, %p32
    %p34 = scmp.ne.s32.totalorder %s23, %s24
    %p35 = scmp.eq.s32.totalorder %s15, 0
    %p36 = por %p34, %p35
    %p37 = scmp.ne.s32.totalorder %s23, %s24
    %p38 = scmp.eq.s32.totalorder %s16, 1
    %p39 = por %p37, %p38
    %p41 = scmp.ne.s32.totalorder %s24, %s40
    %p42 = scmp.eq.s32.totalorder %s16, 0
    %p43 = por %p41, %p42
    %s45 = sadd.s32 %s44, 1
    %p48 = scmp.eq.s32.totalorder %s10, 1
    %p49 = scmp.ne.s32.totalorder %s44, %s46
    %p50 = scmp.eq.s32.totalorder %s10, 0
    %p51 = por %p49, %p50
    %p52 = scmp.ne.s32.totalorder %s44, %s46
    %p53 = scmp.eq.s32.totalorder %s15, 1
    %p54 = por %p52, %p53
    %p55 = scmp.ne.s32.totalorder %s46, %s47
    %p56 = scmp.eq.s32.totalorder %s15, 0
    %p57 = por %p55, %p56
    %p58 = scmp.ne.s32.totalorder %s46, %s47
    %p59 = scmp.eq.s32.totalorder %s16, 1
    %p60 = por %p58, %p59
    %p62 = scmp.ne.s32.totalorder %s47, %s61
    %p63 = scmp.eq.s32.totalorder %s16, 0
    %p64 = por %p62, %p63
    %s65 = ssub.s32 %s10, %s17
    %p66 = scmp.eq.s32.totalorder %s65, 0
    %s68 = sadd.s32 %s67, 1
    %s69 = scalar_select %p66, %s67, %s68
    %p72 = pneg %p66
    %p73 = scmp.eq.s32.totalorder %s10, 1
    %p74 = por %p72, %p73
    %p75 = scmp.ne.s32.totalorder %s67, %s70
    %p76 = scmp.eq.s32.totalorder %s10, 0
    %p77 = por %p75, %p76
    %p78 = scmp.ne.s32.totalorder %s67, %s70
    %p79 = scmp.eq.s32.totalorder %s15, 1
    %p80 = por %p78, %p79
    %p81 = scmp.ne.s32.totalorder %s70, %s71
    %p82 = scmp.eq.s32.totalorder %s15, 0
    %p83 = por %p81, %p82
    %p84 = scmp.ne.s32.totalorder %s70, %s71
    %p85 = scmp.eq.s32.totalorder %s16, 1
    %p86 = por %p84, %p85
    %p88 = scmp.ne.s32.totalorder %s71, %s87
    %p89 = scmp.eq.s32.totalorder %s16, 0
    %p90 = por %p88, %p89
    %s91 = ssub.s32 %s10, %s17
    %p92 = scmp.eq.s32.totalorder %s91, 0
    %s94 = sadd.s32 %s93, 1
    %s95 = scalar_select %p92, %s93, %s94
    %p98 = pneg %p92
    %p99 = scmp.eq.s32.totalorder %s10, 1
    %p100 = por %p98, %p99
    %p101 = scmp.ne.s32.totalorder %s93, %s96
    %p102 = scmp.eq.s32.totalorder %s10, 0
    %p103 = por %p101, %p102
    %p104 = scmp.ne.s32.totalorder %s93, %s96
    %p105 = scmp.eq.s32.totalorder %s15, 1
    %p106 = por %p104, %p105
    %p107 = scmp.ne.s32.totalorder %s96, %s97
    %p108 = scmp.eq.s32.totalorder %s15, 0
    %p109 = por %p107, %p108
    %p110 = scmp.ne.s32.totalorder %s96, %s97
    %p111 = scmp.eq.s32.totalorder %s16, 1
    %p112 = por %p110, %p111
    %p114 = scmp.ne.s32.totalorder %s97, %s113
    %p115 = scmp.eq.s32.totalorder %s16, 0
    %p116 = por %p114, %p115
    %p117 = scmp.le.s32.totalorder 1, %s10
    %p118 = scmp.lt.s32.totalorder %s10, 3
    %p119 = pnand %p117, %p118
    %p120 = pneg %p119
    // Predicated region
    $region9: #{run.4} parent=5 // pred_check
      _
    $region10: #{run.4} parent=5 // pred_check_branch
      %122 = sbr.rel (%p119) target = $region12
    $region11: #{run.4} parent=5 // pred_region
      %s123 = ssub.s32 %s10, 1
      // Predicated region
      $region13: #{run.4} parent=11 // pred_check
        %p124 = pneg %p57
      $region14: #{run.4} parent=11 // pred_check_branch
        %126 = sbr.rel (%p124) target = $region16
      $region15: #{run.4} parent=11 // pred_region
        _
      $region16: #{run.4} parent=11 // pred_fallthru
        _
    $region12: #{run.4} parent=5 // pred_fallthru
      _
    %p127 = scmp.lt.s32.totalorder %s10, 2
    // Predicated region
    $region17: #{run.4} parent=5 // pred_check
      %p128 = pneg %p127
    $region18: #{run.4} parent=5 // pred_check_branch
      %130 = sbr.rel (%p128) target = $region20
    $region19: #{run.4} parent=5 // pred_region
      // Predicated region
      $region21: #{run.4} parent=19 // pred_check
        %p131 = pneg %p30
      $region22: #{run.4} parent=19 // pred_check_branch
        %133 = sbr.rel (%p131) target = $region24
      $region23: #{run.4} parent=19 // pred_region
        %p134 = scmp.lt.s32.totalorder %s10, 1
        %s135 = scalar_select %p134, %s10, 1
        %s136 = smul.addr %s135, 18
        %s137 = smul.addr %s136, 4
        %s138 = scalar_lea.vmem %s0, %s137
      $region24: #{run.4} parent=19 // pred_fallthru
        _
    $region20: #{run.4} parent=5 // pred_fallthru
      _
    %p139 = scmp.le.s32.totalorder 1, %s10
    %p140 = scmp.lt.s32.totalorder %s10, 3
    %p141 = pnand %p139, %p140
    %p142 = pneg %p141
    // Predicated region
    $region25: #{run.4} parent=5 // pred_check
      _
    $region26: #{run.4} parent=5 // pred_check_branch
      %144 = sbr.rel (%p141) target = $region28
    $region27: #{run.4} parent=5 // pred_region
      %s145 = ssub.s32 %s10, 1
      %p146 = scmp.lt.s32.totalorder %s15, 1
      %s147 = scalar_select %p146, %s15, 1
      %s148 = smul.addr %s147, 18
      %s149 = smul.addr %s148, 4
      %s150 = scalar_lea.vmem %s0, %s149
      %p151 = pneg %p36
      %p152 = pneg %p33
      %p153 = pneg %p57
      %p154 = pneg %p54
      %p155 = pneg %p83
      %p156 = pneg %p80
      %p157 = scmp.lt.s32.totalorder %s15, 1
      %s158 = scalar_select %p157, %s15, 1
      %s159 = smul.addr %s158, 8
      %s160 = smul.addr %s159, 4
      %s161 = scalar_lea.vmem %s2, %s160
      %p162 = pneg %p109
      %p163 = pneg %p106
      %p164 = scmp.lt.s32.totalorder %s15, 1
      %s165 = scalar_select %p164, %s15, 1
      %s166 = smul.addr %s165, 2
      %s167 = scalar_lea.vmem %s3, %s166
      %p168 = scmp.lt.s32.totalorder %s15, 1
      %s169 = scalar_select %p168, %s15, 1
      %s170 = smul.addr %s169, 18
      %s171 = smul.addr %s170, 4
      %s172 = scalar_lea.vmem %s0, %s171
      %p173 = scmp.lt.s32.totalorder %s15, 1
      %s174 = scalar_select %p173, %s15, 1
      %s175 = smul.addr %s174, 8
      %s176 = smul.addr %s175, 4
      %s177 = scalar_lea.vmem %s2, %s176
      %p178 = scmp.lt.s32.totalorder %s15, 1
      %s179 = scalar_select %p178, %s15, 1
      %s180 = smul.addr %s179, 2
      %s181 = scalar_lea.vmem %s3, %s180
      %v183 = vld [vmem:[%s172] sm:$0xf]
      %v184 = vld [vmem:[%s172 + $0x8] sm:$0xf]
      %v185 = vld [vmem:[%s172 + $0x10] sm:$0xf]
      %v186 = vld [vmem:[%s172 + $0x18] sm:$0xf]
      %v187 = vld [vmem:[%s172 + $0x20] sm:$0xf]
      %v188 = vld [vmem:[%s172 + $0x28] sm:$0xf]
      %v189 = vld [vmem:[%s172 + $0x30] sm:$0xf]
      %v190 = vld [vmem:[%s172 + $0x38] sm:$0xf]
      %v191 = vld [vmem:[%s1] sm:$0xf]
      %v192 = vld [vmem:[%s1 + $0x4] sm:$0xf]
      %v193 = vld [vmem:[%s172 + $0x4] sm:$0x1]
      %v194 = vld [vmem:[%s172 + $0xc] sm:$0x1]
      %v195 = vld [vmem:[%s172 + $0x14] sm:$0x1]
      %v196 = vld [vmem:[%s172 + $0x1c] sm:$0x1]
      %v197 = vld [vmem:[%s172 + $0x24] sm:$0x1]
      %v198 = vld [vmem:[%s172 + $0x2c] sm:$0x1]
      %v199 = vld [vmem:[%s172 + $0x34] sm:$0x1]
      %v200 = vld [vmem:[%s172 + $0x3c] sm:$0x1]
      %vm201 = vsmask.f32 3328
      %vm202 = vsmask.f32 7440
      %vm203 = vmor %vm201, %vm202
      %v205 = vshrl.u32 %v183, 16
      %v207 = vrot.slane %v205, 4
      %v208 = vshll.u32 %v183, 16
      %v210 = vrot.slane %v208, 5
      %v211 = vor.u32 %v207, %v210
      %v212 = vrot.slane %v211, 4
      %v214 = vshll.u32 %v193, 16
      %v216 = vrot.slane %v214, 5
      %v217 = vsel %vm203, %v212, %v216
      %v219 = vshrl.u32 %v184, 16
      %v221 = vrot.slane %v219, 4
      %v222 = vshll.u32 %v184, 16
      %v224 = vrot.slane %v222, 5
      %v225 = vor.u32 %v221, %v224
      %v226 = vrot.slane %v225, 4
      %v228 = vshll.u32 %v194, 16
      %v230 = vrot.slane %v228, 5
      %v231 = vsel %vm203, %v226, %v230
      %v233 = vshrl.u32 %v185, 16
      %v235 = vrot.slane %v233, 4
      %v236 = vshll.u32 %v185, 16
      %v238 = vrot.slane %v236, 5
      %v239 = vor.u32 %v235, %v238
      %v240 = vrot.slane %v239, 4
      %v242 = vshll.u32 %v195, 16
      %v244 = vrot.slane %v242, 5
      %v245 = vsel %vm203, %v240, %v244
      %v247 = vshrl.u32 %v186, 16
      %v249 = vrot.slane %v247, 4
      %v250 = vshll.u32 %v186, 16
      %v252 = vrot.slane %v250, 5
      %v253 = vor.u32 %v249, %v252
      %v254 = vrot.slane %v253, 4
      %v256 = vshll.u32 %v196, 16
      %v258 = vrot.slane %v256, 5
      %v259 = vsel %vm203, %v254, %v258
      %v261 = vshrl.u32 %v187, 16
      %v263 = vrot.slane %v261, 4
      %v264 = vshll.u32 %v187, 16
      %v266 = vrot.slane %v264, 5
      %v267 = vor.u32 %v263, %v266
      %v268 = vrot.slane %v267, 4
      %v270 = vshll.u32 %v197, 16
      %v272 = vrot.slane %v270, 5
      %v273 = vsel %vm203, %v268, %v272
      %v275 = vshrl.u32 %v188, 16
      %v277 = vrot.slane %v275, 4
      %v278 = vshll.u32 %v188, 16
      %v280 = vrot.slane %v278, 5
      %v281 = vor.u32 %v277, %v280
      %v282 = vrot.slane %v281, 4
      %v284 = vshll.u32 %v198, 16
      %v286 = vrot.slane %v284, 5
      %v287 = vsel %vm203, %v282, %v286
      %v289 = vshrl.u32 %v189, 16
      %v291 = vrot.slane %v289, 4
      %v292 = vshll.u32 %v189, 16
      %v294 = vrot.slane %v292, 5
      %v295 = vor.u32 %v291, %v294
      %v296 = vrot.slane %v295, 4
      %v298 = vshll.u32 %v199, 16
      %v300 = vrot.slane %v298, 5
      %v301 = vsel %vm203, %v296, %v300
      %v303 = vshrl.u32 %v190, 16
      %v305 = vrot.slane %v303, 4
      %v306 = vshll.u32 %v190, 16
      %v308 = vrot.slane %v306, 5
      %v309 = vor.u32 %v305, %v308
      %v310 = vrot.slane %v309, 4
      %v312 = vshll.u32 %v200, 16
      %v314 = vrot.slane %v312, 5
      %v315 = vsel %vm203, %v310, %v314
      %s316 = scalar_lea.vmem %s1, 8
      %v317 = vld [vmem:[%s316] sm:$0xf]
      %v318 = vld [vmem:[%s316 + $0x4] sm:$0xf]
      %v319 = vunpack.c.l.b16 %v217
      %v320 = vunpack.c.l.b16 %v231
      %v321 = vunpack.c.l.b16 %v245
      %v322 = vunpack.c.l.b16 %v259
      %v323 = vunpack.c.l.b16 %v273
      %v324 = vunpack.c.l.b16 %v287
      %v325 = vunpack.c.l.b16 %v301
      %v326 = vunpack.c.l.b16 %v315
      %v327 = vpack.c.b16 %v320, %v319
      %v328 = vpack.c.b16 %v322, %v321
      %v329 = vpack.c.b16 %v324, %v323
      %v330 = vpack.c.b16 %v326, %v325
      %v333 = vunpack.c.l.b16 %v317
      %v334 = vunpack.c.l.b16 %v318
      %v335 = vpack.c.b16 %v334, %v333
      %vm337 = vcmask 130048
      %v339 = vsel %vm337, %v327, 0
      %v342 = vsel %vm337, %v328, 0
      %v345 = vsel %vm337, %v329, 0
      %v348 = vsel %vm337, %v330, 0
      %350 = vmatprep.subr.bf16.mxu0 0
      %351 = vmatpush1.bf16.msra.mxu0 %v335
      %352 = vmatprep.subr.bf16.mxu0 0
      %353 = vmatpush1.bf16.msra.mxu0 0
      %354 = vmatprep.subr.bf16.mxu0 0
      %355 = vmatpush1.bf16.msra.mxu0 0
      %356 = vmatprep.subr.bf16.mxu0 0
      %357 = vmatpush1.bf16.msra.mxu0 0
      %358 = vmatprep.subr.bf16.mxu0 0
      %359 = vmatpush1.bf16.msra.mxu0 0
      %360 = vmatprep.subr.bf16.mxu0 0
      %361 = vmatpush1.bf16.msra.mxu0 0
      %362 = vmatprep.subr.bf16.mxu0 0
      %363 = vmatpush1.bf16.msra.mxu0 0
      %364 = vmatprep.subr.bf16.mxu0 0
      %365 = vmatpush1.bf16.msra.mxu0 0
      %366 = vmatprep.subr.bf16.mxu0 0
      %367 = vmatpush1.bf16.msra.mxu0 0
      %368 = vmatprep.subr.bf16.mxu0 0
      %369 = vmatpush1.bf16.msra.mxu0 0
      %370 = vmatprep.subr.bf16.mxu0 0
      %371 = vmatpush1.bf16.msra.mxu0 0
      %372 = vmatprep.subr.bf16.mxu0 0
      %373 = vmatpush1.bf16.msra.mxu0 0
      %374 = vmatprep.subr.bf16.mxu0 0
      %375 = vmatpush1.bf16.msra.mxu0 0
      %376 = vmatprep.subr.bf16.mxu0 0
      %377 = vmatpush1.bf16.msra.mxu0 0
      %378 = vmatprep.subr.bf16.mxu0 0
      %379 = vmatpush1.bf16.msra.mxu0 0
      %380 = vmatprep.subr.bf16.mxu0 0
      %381 = vmatpush1.bf16.msra.mxu0 0
      %382 = vmatprep.mubr.bf16.mxu0 0
      %383 = vmatmul.mubr.bf16.gmra.mrb[0].mxu0 %v339
      %v384 = vpop.f32.mrb[0].mxu0
      %v385 = vadd.f32 0.0, %v384
      %v386 = vpop.f32.mrb[0].mxu0
      %v387 = vpop.f32.mrb[0].mxu0
      %v388 = vadd.f32 0.0, %v387
      %v389 = vpop.f32.mrb[0].mxu0
      %390 = vmatprep.mubr.bf16.mxu0 0
      %391 = vmatmul.mubr.bf16.gmra.mrb[0].mxu0 %v342
      %v392 = vpop.f32.mrb[0].mxu0
      %v393 = vadd.f32 0.0, %v392
      %v394 = vpop.f32.mrb[0].mxu0
      %v395 = vpop.f32.mrb[0].mxu0
      %v396 = vadd.f32 0.0, %v395
      %v397 = vpop.f32.mrb[0].mxu0
      %398 = vmatprep.mubr.bf16.mxu0 0
      %399 = vmatmul.mubr.bf16.gmra.mrb[0].mxu0 %v345
      %v400 = vpop.f32.mrb[0].mxu0
      %v401 = vadd.f32 0.0, %v400
      %v402 = vpop.f32.mrb[0].mxu0
      %v403 = vpop.f32.mrb[0].mxu0
      %v404 = vadd.f32 0.0, %v403
      %v405 = vpop.f32.mrb[0].mxu0
      %406 = vmatprep.mubr.bf16.mxu0 0
      %407 = vmatmul.mubr.bf16.gmra.mrb[0].mxu0 %v348
      %v408 = vpop.f32.mrb[0].mxu0
      %v409 = vadd.f32 0.0, %v408
      %v410 = vpop.f32.mrb[0].mxu0
      %v411 = vpop.f32.mrb[0].mxu0
      %v412 = vadd.f32 0.0, %v411
      %v413 = vpop.f32.mrb[0].mxu0
      %414 = vdwg.mxu0
      %v423 = vunpack.c.l.b16 %v183
      %v424 = vunpack.c.l.b16 %v184
      %v425 = vunpack.c.l.b16 %v185
      %v426 = vunpack.c.l.b16 %v186
      %v427 = vunpack.c.l.b16 %v187
      %v428 = vunpack.c.l.b16 %v188
      %v429 = vunpack.c.l.b16 %v189
      %v430 = vunpack.c.l.b16 %v190
      %v431 = vpack.c.b16 %v424, %v423
      %v432 = vpack.c.b16 %v426, %v425
      %v433 = vpack.c.b16 %v428, %v427
      %v434 = vpack.c.b16 %v430, %v429
      %v437 = vunpack.c.l.b16 %v191
      %v438 = vunpack.c.l.b16 %v192
      %v439 = vpack.c.b16 %v438, %v437
      %v442 = vsel %vm337, %v431, 0
      %v445 = vsel %vm337, %v432, 0
      %v448 = vsel %vm337, %v433, 0
      %v451 = vsel %vm337, %v434, 0
      %453 = vmatprep.subr.bf16.mxu0 0
      %454 = vmatpush1.bf16.msra.mxu0 %v439
      %455 = vmatprep.subr.bf16.mxu0 0
      %456 = vmatpush1.bf16.msra.mxu0 0
      %457 = vmatprep.subr.bf16.mxu0 0
      %458 = vmatpush1.bf16.msra.mxu0 0
      %459 = vmatprep.subr.bf16.mxu0 0
      %460 = vmatpush1.bf16.msra.mxu0 0
      %461 = vmatprep.subr.bf16.mxu0 0
      %462 = vmatpush1.bf16.msra.mxu0 0
      %463 = vmatprep.subr.bf16.mxu0 0
      %464 = vmatpush1.bf16.msra.mxu0 0
      %465 = vmatprep.subr.bf16.mxu0 0
      %466 = vmatpush1.bf16.msra.mxu0 0
      %467 = vmatprep.subr.bf16.mxu0 0
      %468 = vmatpush1.bf16.msra.mxu0 0
      %469 = vmatprep.subr.bf16.mxu0 0
      %470 = vmatpush1.bf16.msra.mxu0 0
      %471 = vmatprep.subr.bf16.mxu0 0
      %472 = vmatpush1.bf16.msra.mxu0 0
      %473 = vmatprep.subr.bf16.mxu0 0
      %474 = vmatpush1.bf16.msra.mxu0 0
      %475 = vmatprep.subr.bf16.mxu0 0
      %476 = vmatpush1.bf16.msra.mxu0 0
      %477 = vmatprep.subr.bf16.mxu0 0
      %478 = vmatpush1.bf16.msra.mxu0 0
      %479 = vmatprep.subr.bf16.mxu0 0
      %480 = vmatpush1.bf16.msra.mxu0 0
      %481 = vmatprep.subr.bf16.mxu0 0
      %482 = vmatpush1.bf16.msra.mxu0 0
      %483 = vmatprep.subr.bf16.mxu0 0
      %484 = vmatpush1.bf16.msra.mxu0 0
      %485 = vmatprep.mubr.bf16.mxu0 0
      %486 = vmatmul.mubr.bf16.gmra.mrb[0].mxu0 %v442
      %v487 = vpop.f32.mrb[0].mxu0
      %v488 = vadd.f32 %v385, %v487
      %v489 = vpop.f32.mrb[0].mxu0
      %v490 = vpop.f32.mrb[0].mxu0
      %v491 = vadd.f32 %v388, %v490
      %v492 = vpop.f32.mrb[0].mxu0
      %493 = vmatprep.mubr.bf16.mxu0 0
      %494 = vmatmul.mubr.bf16.gmra.mrb[0].mxu0 %v445
      %v495 = vpop.f32.mrb[0].mxu0
      %v496 = vadd.f32 %v393, %v495
      %v497 = vpop.f32.mrb[0].mxu0
      %v498 = vpop.f32.mrb[0].mxu0
      %v499 = vadd.f32 %v396, %v498
      %v500 = vpop.f32.mrb[0].mxu0
      %501 = vmatprep.mubr.bf16.mxu0 0
      %502 = vmatmul.mubr.bf16.gmra.mrb[0].mxu0 %v448
      %v503 = vpop.f32.mrb[0].mxu0
      %v504 = vadd.f32 %v401, %v503
      %v505 = vpop.f32.mrb[0].mxu0
      %v506 = vpop.f32.mrb[0].mxu0
      %v507 = vadd.f32 %v404, %v506
      %v508 = vpop.f32.mrb[0].mxu0
      %509 = vmatprep.mubr.bf16.mxu0 0
      %510 = vmatmul.mubr.bf16.gmra.mrb[0].mxu0 %v451
      %v511 = vpop.f32.mrb[0].mxu0
      %v512 = vadd.f32 %v409, %v511
      %v513 = vpop.f32.mrb[0].mxu0
      %v514 = vpop.f32.mrb[0].mxu0
      %v515 = vadd.f32 %v412, %v514
      %v516 = vpop.f32.mrb[0].mxu0
      %517 = vdwg.mxu0
      %s518 = scalar_lea.vmem %s172, 8
      %v519 = vld [vmem:[%s518] sm:$0xf]
      %v520 = vld [vmem:[%s518 + $0x8] sm:$0xf]
      %v521 = vld [vmem:[%s518 + $0x10] sm:$0xf]
      %v522 = vld [vmem:[%s518 + $0x18] sm:$0xf]
      %v523 = vld [vmem:[%s518 + $0x20] sm:$0xf]
      %v524 = vld [vmem:[%s518 + $0x28] sm:$0xf]
      %v525 = vld [vmem:[%s518 + $0x30] sm:$0xf]
      %v526 = vld [vmem:[%s518 + $0x38] sm:$0xf]
      %s527 = scalar_lea.vmem %s1, 16
      %v528 = vld [vmem:[%s527] sm:$0xf]
      %v529 = vld [vmem:[%s527 + $0x4] sm:$0xf]
      %v538 = vunpack.c.l.b16 %v519
      %v539 = vunpack.c.l.b16 %v520
      %v540 = vunpack.c.l.b16 %v521
      %v541 = vunpack.c.l.b16 %v522
      %v542 = vunpack.c.l.b16 %v523
      %v543 = vunpack.c.l.b16 %v524
      %v544 = vunpack.c.l.b16 %v525
      %v545 = vunpack.c.l.b16 %v526
      %v546 = vpack.c.b16 %v539, %v538
      %v547 = vpack.c.b16 %v541, %v540
      %v548 = vpack.c.b16 %v543, %v542
      %v549 = vpack.c.b16 %v545, %v544
      %v552 = vunpack.c.l.b16 %v528
      %v553 = vunpack.c.l.b16 %v529
      %v554 = vpack.c.b16 %v553, %v552
      %v557 = vsel %vm337, %v546, 0
      %v560 = vsel %vm337, %v547, 0
      %v563 = vsel %vm337, %v548, 0
      %v566 = vsel %vm337, %v549, 0
      %568 = vmatprep.subr.bf16.mxu0 0
      %569 = vmatpush1.bf16.msra.mxu0 %v554
      %570 = vmatprep.subr.bf16.mxu0 0
      %571 = vmatpush1.bf16.msra.mxu0 0
      %572 = vmatprep.subr.bf16.mxu0 0
      %573 = vmatpush1.bf16.msra.mxu0 0
      %574 = vmatprep.subr.bf16.mxu0 0
      %575 = vmatpush1.bf16.msra.mxu0 0
      %576 = vmatprep.subr.bf16.mxu0 0
      %577 = vmatpush1.bf16.msra.mxu0 0
      %578 = vmatprep.subr.bf16.mxu0 0
      %579 = vmatpush1.bf16.msra.mxu0 0
      %580 = vmatprep.subr.bf16.mxu0 0
      %581 = vmatpush1.bf16.msra.mxu0 0
      %582 = vmatprep.subr.bf16.mxu0 0
      %583 = vmatpush1.bf16.msra.mxu0 0
      %584 = vmatprep.subr.bf16.mxu0 0
      %585 = vmatpush1.bf16.msra.mxu0 0
      %586 = vmatprep.subr.bf16.mxu0 0
      %587 = vmatpush1.bf16.msra.mxu0 0
      %588 = vmatprep.subr.bf16.mxu0 0
      %589 = vmatpush1.bf16.msra.mxu0 0
      %590 = vmatprep.subr.bf16.mxu0 0
      %591 = vmatpush1.bf16.msra.mxu0 0
      %592 = vmatprep.subr.bf16.mxu0 0
      %593 = vmatpush1.bf16.msra.mxu0 0
      %594 = vmatprep.subr.bf16.mxu0 0
      %595 = vmatpush1.bf16.msra.mxu0 0
      %596 = vmatprep.subr.bf16.mxu0 0
      %597 = vmatpush1.bf16.msra.mxu0 0
      %598 = vmatprep.subr.bf16.mxu0 0
      %599 = vmatpush1.bf16.msra.mxu0 0
      %600 = vmatprep.mubr.bf16.mxu0 0
      %601 = vmatmul.mubr.bf16.gmra.mrb[0].mxu0 %v557
      %v602 = vpop.f32.mrb[0].mxu0
      %v603 = vadd.f32 0.0, %v602
      %v604 = vpop.f32.mrb[0].mxu0
      %v605 = vpop.f32.mrb[0].mxu0
      %v606 = vadd.f32 0.0, %v605
      %v607 = vpop.f32.mrb[0].mxu0
      %608 = vmatprep.mubr.bf16.mxu0 0
      %609 = vmatmul.mubr.bf16.gmra.mrb[0].mxu0 %v560
      %v610 = vpop.f32.mrb[0].mxu0
      %v611 = vadd.f32 0.0, %v610
      %v612 = vpop.f32.mrb[0].mxu0
      %v613 = vpop.f32.mrb[0].mxu0
      %v614 = vadd.f32 0.0, %v613
      %v615 = vpop.f32.mrb[0].mxu0
      %616 = vmatprep.mubr.bf16.mxu0 0
      %617 = vmatmul.mubr.bf16.gmra.mrb[0].mxu0 %v563
      %v618 = vpop.f32.mrb[0].mxu0
      %v619 = vadd.f32 0.0, %v618
      %v620 = vpop.f32.mrb[0].mxu0
      %v621 = vpop.f32.mrb[0].mxu0
      %v622 = vadd.f32 0.0, %v621
      %v623 = vpop.f32.mrb[0].mxu0
      %624 = vmatprep.mubr.bf16.mxu0 0
      %625 = vmatmul.mubr.bf16.gmra.mrb[0].mxu0 %v566
      %v626 = vpop.f32.mrb[0].mxu0
      %v627 = vadd.f32 0.0, %v626
      %v628 = vpop.f32.mrb[0].mxu0
      %v629 = vpop.f32.mrb[0].mxu0
      %v630 = vadd.f32 0.0, %v629
      %v631 = vpop.f32.mrb[0].mxu0
      %632 = vdwg.mxu0
      %v633 = vadd.f32 %v488, %v603
      %v634 = vadd.f32 %v491, %v606
      %v635 = vadd.f32 %v496, %v611
      %v636 = vadd.f32 %v499, %v614
      %v637 = vadd.f32 %v504, %v619
      %v638 = vadd.f32 %v507, %v622
      %v639 = vadd.f32 %v512, %v627
      %v640 = vadd.f32 %v515, %v630
      %v641 = vld [vmem:[%s518] sm:$0xf]
      %v642 = vld [vmem:[%s518 + $0x4] sm:$0x1]
      %v643 = vld [vmem:[%s518 + $0x8] sm:$0xf]
      %v644 = vld [vmem:[%s518 + $0xc] sm:$0x1]
      %v645 = vld [vmem:[%s518 + $0x10] sm:$0xf]
      %v646 = vld [vmem:[%s518 + $0x14] sm:$0x1]
      %v647 = vld [vmem:[%s518 + $0x18] sm:$0xf]
      %v648 = vld [vmem:[%s518 + $0x1c] sm:$0x1]
      %v649 = vld [vmem:[%s518 + $0x20] sm:$0xf]
      %v650 = vld [vmem:[%s518 + $0x24] sm:$0x1]
      %v651 = vld [vmem:[%s518 + $0x28] sm:$0xf]
      %v652 = vld [vmem:[%s518 + $0x2c] sm:$0x1]
      %v653 = vld [vmem:[%s518 + $0x30] sm:$0xf]
      %v654 = vld [vmem:[%s518 + $0x34] sm:$0x1]
      %v655 = vld [vmem:[%s518 + $0x38] sm:$0xf]
      %v656 = vld [vmem:[%s518 + $0x3c] sm:$0x1]
      %v658 = vshrl.u32 %v641, 16
      %v660 = vrot.slane %v658, 4
      %v661 = vshll.u32 %v641, 16
      %v663 = vrot.slane %v661, 5
      %v664 = vor.u32 %v660, %v663
      %v665 = vrot.slane %v664, 4
      %v667 = vshll.u32 %v642, 16
      %v669 = vrot.slane %v667, 5
      %v670 = vsel %vm203, %v665, %v669
      %v672 = vshrl.u32 %v643, 16
      %v674 = vrot.slane %v672, 4
      %v675 = vshll.u32 %v643, 16
      %v677 = vrot.slane %v675, 5
      %v678 = vor.u32 %v674, %v677
      %v679 = vrot.slane %v678, 4
      %v681 = vshll.u32 %v644, 16
      %v683 = vrot.slane %v681, 5
      %v684 = vsel %vm203, %v679, %v683
      %v686 = vshrl.u32 %v645, 16
      %v688 = vrot.slane %v686, 4
      %v689 = vshll.u32 %v645, 16
      %v691 = vrot.slane %v689, 5
      %v692 = vor.u32 %v688, %v691
      %v693 = vrot.slane %v692, 4
      %v695 = vshll.u32 %v646, 16
      %v697 = vrot.slane %v695, 5
      %v698 = vsel %vm203, %v693, %v697
      %v700 = vshrl.u32 %v647, 16
      %v702 = vrot.slane %v700, 4
      %v703 = vshll.u32 %v647, 16
      %v705 = vrot.slane %v703, 5
      %v706 = vor.u32 %v702, %v705
      %v707 = vrot.slane %v706, 4
      %v709 = vshll.u32 %v648, 16
      %v711 = vrot.slane %v709, 5
      %v712 = vsel %vm203, %v707, %v711
      %v714 = vshrl.u32 %v649, 16
      %v716 = vrot.slane %v714, 4
      %v717 = vshll.u32 %v649, 16
      %v719 = vrot.slane %v717, 5
      %v720 = vor.u32 %v716, %v719
      %v721 = vrot.slane %v720, 4
      %v723 = vshll.u32 %v650, 16
      %v725 = vrot.slane %v723, 5
      %v726 = vsel %vm203, %v721, %v725
      %v728 = vshrl.u32 %v651, 16
      %v730 = vrot.slane %v728, 4
      %v731 = vshll.u32 %v651, 16
      %v733 = vrot.slane %v731, 5
      %v734 = vor.u32 %v730, %v733
      %v735 = vrot.slane %v734, 4
      %v737 = vshll.u32 %v652, 16
      %v739 = vrot.slane %v737, 5
      %v740 = vsel %vm203, %v735, %v739
      %v742 = vshrl.u32 %v653, 16
      %v744 = vrot.slane %v742, 4
      %v745 = vshll.u32 %v653, 16
      %v747 = vrot.slane %v745, 5
      %v748 = vor.u32 %v744, %v747
      %v749 = vrot.slane %v748, 4
      %v751 = vshll.u32 %v654, 16
      %v753 = vrot.slane %v751, 5
      %v754 = vsel %vm203, %v749, %v753
      %v756 = vshrl.u32 %v655, 16
      %v758 = vrot.slane %v756, 4
      %v759 = vshll.u32 %v655, 16
      %v761 = vrot.slane %v759, 5
      %v762 = vor.u32 %v758, %v761
      %v763 = vrot.slane %v762, 4
      %v765 = vshll.u32 %v656, 16
      %v767 = vrot.slane %v765, 5
      %v768 = vsel %vm203, %v763, %v767
      %s769 = scalar_lea.vmem %s1, 24
      %v770 = vld [vmem:[%s769] sm:$0xf]
      %v771 = vld [vmem:[%s769 + $0x4] sm:$0xf]
      %v772 = vunpack.c.l.b16 %v670
      %v773 = vunpack.c.l.b16 %v684
      %v774 = vunpack.c.l.b16 %v698
      %v775 = vunpack.c.l.b16 %v712
      %v776 = vunpack.c.l.b16 %v726
      %v777 = vunpack.c.l.b16 %v740
      %v778 = vunpack.c.l.b16 %v754
      %v779 = vunpack.c.l.b16 %v768
      %v780 = vpack.c.b16 %v773, %v772
      %v781 = vpack.c.b16 %v775, %v774
      %v782 = vpack.c.b16 %v777, %v776
      %v783 = vpack.c.b16 %v779, %v778
      %v786 = vunpack.c.l.b16 %v770
      %v787 = vunpack.c.l.b16 %v771
      %v788 = vpack.c.b16 %v787, %v786
      %v791 = vsel %vm337, %v780, 0
      %v794 = vsel %vm337, %v781, 0
      %v797 = vsel %vm337, %v782, 0
      %v800 = vsel %vm337, %v783, 0
      %802 = vmatprep.subr.bf16.mxu0 0
      %803 = vmatpush1.bf16.msra.mxu0 %v788
      %804 = vmatprep.subr.bf16.mxu0 0
      %805 = vmatpush1.bf16.msra.mxu0 0
      %806 = vmatprep.subr.bf16.mxu0 0
      %807 = vmatpush1.bf16.msra.mxu0 0
      %808 = vmatprep.subr.bf16.mxu0 0
      %809 = vmatpush1.bf16.msra.mxu0 0
      %810 = vmatprep.subr.bf16.mxu0 0
      %811 = vmatpush1.bf16.msra.mxu0 0
      %812 = vmatprep.subr.bf16.mxu0 0
      %813 = vmatpush1.bf16.msra.mxu0 0
      %814 = vmatprep.subr.bf16.mxu0 0
      %815 = vmatpush1.bf16.msra.mxu0 0
      %816 = vmatprep.subr.bf16.mxu0 0
      %817 = vmatpush1.bf16.msra.mxu0 0
      %818 = vmatprep.subr.bf16.mxu0 0
      %819 = vmatpush1.bf16.msra.mxu0 0
      %820 = vmatprep.subr.bf16.mxu0 0
      %821 = vmatpush1.bf16.msra.mxu0 0
      %822 = vmatprep.subr.bf16.mxu0 0
      %823 = vmatpush1.bf16.msra.mxu0 0
      %824 = vmatprep.subr.bf16.mxu0 0
      %825 = vmatpush1.bf16.msra.mxu0 0
      %826 = vmatprep.subr.bf16.mxu0 0
      %827 = vmatpush1.bf16.msra.mxu0 0
      %828 = vmatprep.subr.bf16.mxu0 0
      %829 = vmatpush1.bf16.msra.mxu0 0
      %830 = vmatprep.subr.bf16.mxu0 0
      %831 = vmatpush1.bf16.msra.mxu0 0
      %832 = vmatprep.subr.bf16.mxu0 0
      %833 = vmatpush1.bf16.msra.mxu0 0
      %834 = vmatprep.mubr.bf16.mxu0 0
      %835 = vmatmul.mubr.bf16.gmra.mrb[0].mxu0 %v791
      %v836 = vpop.f32.mrb[0].mxu0
      %v837 = vadd.f32 0.0, %v836
      %v838 = vpop.f32.mrb[0].mxu0
      %v839 = vpop.f32.mrb[0].mxu0
      %v840 = vadd.f32 0.0, %v839
      %v841 = vpop.f32.mrb[0].mxu0
      %842 = vmatprep.mubr.bf16.mxu0 0
      %843 = vmatmul.mubr.bf16.gmra.mrb[0].mxu0 %v794
      %v844 = vpop.f32.mrb[0].mxu0
      %v845 = vadd.f32 0.0, %v844
      %v846 = vpop.f32.mrb[0].mxu0
      %v847 = vpop.f32.mrb[0].mxu0
      %v848 = vadd.f32 0.0, %v847
      %v849 = vpop.f32.mrb[0].mxu0
      %850 = vmatprep.mubr.bf16.mxu0 0
      %851 = vmatmul.mubr.bf16.gmra.mrb[0].mxu0 %v797
      %v852 = vpop.f32.mrb[0].mxu0
      %v853 = vadd.f32 0.0, %v852
      %v854 = vpop.f32.mrb[0].mxu0
      %v855 = vpop.f32.mrb[0].mxu0
      %v856 = vadd.f32 0.0, %v855
      %v857 = vpop.f32.mrb[0].mxu0
      %858 = vmatprep.mubr.bf16.mxu0 0
      %859 = vmatmul.mubr.bf16.gmra.mrb[0].mxu0 %v800
      %v860 = vpop.f32.mrb[0].mxu0
      %v861 = vadd.f32 0.0, %v860
      %v862 = vpop.f32.mrb[0].mxu0
      %v863 = vpop.f32.mrb[0].mxu0
      %v864 = vadd.f32 0.0, %v863
      %v865 = vpop.f32.mrb[0].mxu0
      %866 = vdwg.mxu0
      %v867 = vadd.f32 %v633, %v837
      %v868 = vadd.f32 %v634, %v840
      %v869 = vadd.f32 %v635, %v845
      %v870 = vadd.f32 %v636, %v848
      %v871 = vadd.f32 %v637, %v853
      %v872 = vadd.f32 %v638, %v856
      %v873 = vadd.f32 %v639, %v861
      %v874 = vadd.f32 %v640, %v864
      %v875 = vpack.c.bf16 %v868, %v867
      %v876 = vpack.c.bf16 %v870, %v869
      %v877 = vpack.c.bf16 %v872, %v871
      %v878 = vpack.c.bf16 %v874, %v873
      %v883 = vunpack.c.l.b16 %v875
      %v884 = vunpack.c.h.b16 %v875
      %v885 = vunpack.c.l.b16 %v876
      %v886 = vunpack.c.h.b16 %v876
      %v887 = vunpack.c.l.b16 %v877
      %v888 = vunpack.c.h.b16 %v877
      %v889 = vunpack.c.l.b16 %v878
      %v890 = vunpack.c.h.b16 %v878
      %v891 = vpack.c.b16 %v883, %v883
      %v892 = vpack.c.b16 %v884, %v884
      %v893 = vpack.c.b16 %v885, %v885
      %v894 = vpack.c.b16 %v886, %v886
      %v895 = vpack.c.b16 %v887, %v887
      %v896 = vpack.c.b16 %v888, %v888
      %v897 = vpack.c.b16 %v889, %v889
      %v898 = vpack.c.b16 %v890, %v890
      %vm907 = vcmask 60416
      %908 = vst.msk [vmem:[%s177] sm:$0xf] %vm907, %v891
      %909 = vst.msk [vmem:[%s177 + $0x4] sm:$0xf] %vm907, %v892
      %910 = vst.msk [vmem:[%s177 + $0x8] sm:$0xf] %vm907, %v893
      %911 = vst.msk [vmem:[%s177 + $0xc] sm:$0xf] %vm907, %v894
      %912 = vst.msk [vmem:[%s177 + $0x10] sm:$0xf] %vm907, %v895
      %913 = vst.msk [vmem:[%s177 + $0x14] sm:$0xf] %vm907, %v896
      %914 = vst.msk [vmem:[%s177 + $0x18] sm:$0xf] %vm907, %v897
      %915 = vst.msk [vmem:[%s177 + $0x1c] sm:$0xf] %vm907, %v898
      %vm916 = vcmask 64512
      %v917 = vsel %vm916, %v867, 0.0
      %v918 = vsel %vm916, %v868, 0.0
      %v919 = vadd.f32 %v917, %v918
      %v920 = vsel %vm916, %v869, 0.0
      %v921 = vadd.f32 %v919, %v920
      %v922 = vsel %vm916, %v870, 0.0
      %v923 = vadd.f32 %v921, %v922
      %v924 = vsel %vm916, %v871, 0.0
      %v925 = vadd.f32 %v923, %v924
      %v926 = vsel %vm916, %v872, 0.0
      %v927 = vadd.f32 %v925, %v926
      %v928 = vsel %vm916, %v873, 0.0
      %v929 = vadd.f32 %v927, %v928
      %v930 = vsel %vm916, %v874, 0.0
      %v931 = vadd.f32 %v929, %v930
      %v932 = vrot.slane %v931, 4
      %v933 = vadd.f32 %v931, %v932
      %v934 = vrot.slane %v933, 2
      %v935 = vadd.f32 %v933, %v934
      %v936 = vrot.slane %v935, 1
      %v937 = vadd.f32 %v935, %v936
      %v938 = vmul.f32 %v867, %v867
      %v939 = vmul.f32 %v868, %v868
      %v940 = vmul.f32 %v869, %v869
      %v941 = vmul.f32 %v870, %v870
      %v942 = vmul.f32 %v871, %v871
      %v943 = vmul.f32 %v872, %v872
      %v944 = vmul.f32 %v873, %v873
      %v945 = vmul.f32 %v874, %v874
      %v946 = vsel %vm916, %v938, 0.0
      %v947 = vsel %vm916, %v939, 0.0
      %v948 = vadd.f32 %v946, %v947
      %v949 = vsel %vm916, %v940, 0.0
      %v950 = vadd.f32 %v948, %v949
      %v951 = vsel %vm916, %v941, 0.0
      %v952 = vadd.f32 %v950, %v951
      %v953 = vsel %vm916, %v942, 0.0
      %v954 = vadd.f32 %v952, %v953
      %v955 = vsel %vm916, %v943, 0.0
      %v956 = vadd.f32 %v954, %v955
      %v957 = vsel %vm916, %v944, 0.0
      %v958 = vadd.f32 %v956, %v957
      %v959 = vsel %vm916, %v945, 0.0
      %v960 = vadd.f32 %v958, %v959
      %v961 = vrot.slane %v960, 4
      %v962 = vadd.f32 %v960, %v961
      %v963 = vrot.slane %v962, 2
      %v964 = vadd.f32 %v962, %v963
      %v965 = vrot.slane %v964, 1
      %v966 = vadd.f32 %v964, %v965
      %vm967 = vcmask 1040384
      %v968 = vsel %vm967, %v937, %v966
      %vm969 = vcmask 58368
      %970 = vst.msk [vmem:[%s181] sm:$0x3] %vm969, %v968
      %p971 = scmp.lt.s32.totalorder %s15, 1
      %s972 = scalar_select %p971, %s15, 1
      %s973 = smul.addr %s972, 8
      %s974 = smul.addr %s973, 4
      %s975 = scalar_lea.vmem %s2, %s974
      %p976 = scmp.lt.s32.totalorder %s15, 1
      %s977 = scalar_select %p976, %s15, 1
      %s978 = smul.addr %s977, 2
      %s979 = scalar_lea.vmem %s3, %s978
      // Predicated region
      $region29: #{run.4} parent=27 // pred_check
        %p980 = pneg %p80
      $region30: #{run.4} parent=27 // pred_check_branch
        %982 = sbr.rel (%p980) target = $region32
      $region31: #{run.4} parent=27 // pred_region
        _
      $region32: #{run.4} parent=27 // pred_fallthru
        _
      // Predicated region
      $region33: #{run.4} parent=27 // pred_check
        %p983 = pneg %p106
      $region34: #{run.4} parent=27 // pred_check_branch
        %985 = sbr.rel (%p983) target = $region36
      $region35: #{run.4} parent=27 // pred_region
        _
      $region36: #{run.4} parent=27 // pred_fallthru
        _
    $region28: #{run.4} parent=5 // pred_fallthru
      _
    %p986 = scmp.le.s32.totalorder 2, %s10
    // Predicated region
    $region37: #{run.4} parent=5 // pred_check
      %p987 = pneg %p986
    $region38: #{run.4} parent=5 // pred_check_branch
      %989 = sbr.rel (%p987) target = $region40
    $region39: #{run.4} parent=5 // pred_region
      %s990 = ssub.s32 %s10, 2
      // Predicated region
      $region41: #{run.4} parent=39 // pred_check
        %p991 = pneg %p86
      $region42: #{run.4} parent=39 // pred_check_branch
        %993 = sbr.rel (%p991) target = $region44
      $region43: #{run.4} parent=39 // pred_region
        %p994 = scmp.lt.s32.totalorder %s16, 1
        %s995 = scalar_select %p994, %s16, 1
        %s996 = smul.addr %s995, 8
        %s997 = smul.addr %s996, 4
        %s998 = scalar_lea.vmem %s2, %s997
      $region44: #{run.4} parent=39 // pred_fallthru
        _
      // Predicated region
      $region45: #{run.4} parent=39 // pred_check
        %p999 = pneg %p112
      $region46: #{run.4} parent=39 // pred_check_branch
        %1001 = sbr.rel (%p999) target = $region48
      $region47: #{run.4} parent=39 // pred_region
        %p1002 = scmp.lt.s32.totalorder %s16, 1
        %s1003 = scalar_select %p1002, %s16, 1
        %s1004 = smul.addr %s1003, 2
        %s1005 = scalar_lea.vmem %s3, %s1004
      $region48: #{run.4} parent=39 // pred_fallthru
        _
    $region40: #{run.4} parent=5 // pred_fallthru
      _
  $region6: #{run.4} parent=0 // loop_footer
    %s14 = sadd.s32 1, %s10
  $region7: #{run.4} parent=0 // loop_footer_branch
    %9 = sbr.rel target = $region3
  $region8: #{run.4} parent=0 // loop_exit
    _

// kernel: run.7
$region0: #{run.7}
  #allocation0 [shape = 'u32[]', space=smem, size = 0x4, offset = 0x4, fixed_abs, tag = 'smem constant byte address 0x4 - core index']
  #allocation1 [shape = 'u32[144,128]{1,0:T(1,128)}', space=vmem, size = 0x12000, scoped, tag = 'internal scratch']
  #allocation2 [shape = 's32[1]{0}', space=sflag, size = 0x4, scoped, tag = 'scoped memory for run.7']
  #allocation3 [shape = 's32[1]{0:T(128)S(6)}', space=smem, size = 0x200, scoped, tag = 'prefetched SMEM operand 0']
  %s0 = inlined_call_operand.<no memory space> [shape: s32[1], index: 0, kind: input, shape index: {}]
  %s1 = inlined_call_operand.vmem [shape: bf16[8,256], index: 1, kind: input, shape index: {}]
  %s2 = inlined_call_operand.vmem [shape: f32[1,256], index: 2, kind: input, shape index: {}]
  %s3 = inlined_call_operand.vmem [shape: f32[1,256], index: 3, kind: input, shape index: {}]
  %s4 = inlined_call_operand.vmem [shape: bf16[8,256], index: 4, kind: output, shape index: {}]
  %s5 = sld [smem:[#allocation0]]
  $region22: #{run.7} parent=0
    _
  %s7 = ssub.s32 1, %s5
  %s8 = scalar_select 0, %s7, %s5
  %9 = sst [smem:[#allocation3]] %s0
  // Predicated region
  $region2: #{run.7} parent=0 // pred_check
    _
  $region3: #{run.7} parent=0 // pred_check_branch
    %11 = sbr.rel (0) target = $region5
  $region4: #{run.7} parent=0 // pred_region
    _
  $region5: #{run.7} parent=0 // pred_fallthru
    _
  // Predicated region
  $region6: #{run.7} parent=0 // pred_check
    _
  $region7: #{run.7} parent=0 // pred_check_branch
    %13 = sbr.rel (0) target = $region9
  $region8: #{run.7} parent=0 // pred_region
    _
  $region9: #{run.7} parent=0 // pred_fallthru
    _
  // Predicated region
  $region10: #{run.7} parent=0 // pred_check
    _
  $region11: #{run.7} parent=0 // pred_check_branch
    %15 = sbr.rel (0) target = $region13
  $region12: #{run.7} parent=0 // pred_region
    _
  $region13: #{run.7} parent=0 // pred_fallthru
    _
  %v16 = vld [vmem:[%s1] sm:$0xff]
  %v17 = vunpack.c.l.bf16 %v16
  %v18 = vunpack.c.h.bf16 %v16
  %v19 = vld [vmem:[%s2] sm:$0x3]
  %v21 = vlaneseq
  %v22 = vshrl.u32 %v21, 7
  %v23 = vsub.s32 0, %v22
  %v24 = vrot.slane %v19, %v23
  %v25 = vlaneseq
  %v26 = vshrl.u32 %v25, 7
  %v27 = vsub.s32 1, %v26
  %v28 = vrot.slane %v19, %v27
  %v31 = vmul.f32 %v17, %v24
  %v32 = vmul.f32 %v18, %v28
  %v33 = vld [vmem:[%s3] sm:$0x3]
  %v35 = vlaneseq
  %v36 = vshrl.u32 %v35, 7
  %v37 = vsub.s32 0, %v36
  %v38 = vrot.slane %v33, %v37
  %v39 = vlaneseq
  %v40 = vshrl.u32 %v39, 7
  %v41 = vsub.s32 1, %v40
  %v42 = vrot.slane %v33, %v41
  %v45 = vadd.f32 %v31, %v38
  %v46 = vadd.f32 %v32, %v42
  %v47 = vmax.f32 %v45, 0.0
  %v48 = vmax.f32 %v46, 0.0
  %v49 = vpack.c.bf16 %v47, %v47
  %v50 = vpack.c.bf16 %v48, %v48
  %v53 = vunpack.c.l.b16 %v49
  %v54 = vunpack.c.l.b16 %v50
  %v55 = vpack.c.b16 %v54, %v53
  %57 = vst [vmem:[%s4] sm:$0xff] %v55
  // Predicated region
  $region14: #{run.7} parent=0 // pred_check
    _
  $region15: #{run.7} parent=0 // pred_check_branch
    %59 = sbr.rel (0) target = $region17
  $region16: #{run.7} parent=0 // pred_region
    _
  $region17: #{run.7} parent=0 // pred_fallthru
    _
  // Predicated region
  $region18: #{run.7} parent=0 // pred_check
    _
  $region19: #{run.7} parent=0 // pred_check_branch
    %61 = sbr.rel (0) target = $region21
  $region20: #{run.7} parent=0 // pred_region
    _
  $region21: #{run.7} parent=0 // pred_fallthru
    _

// kernel: run.6
$region0: #{run.6}
  #allocation0 [shape = 'u32[]', space=smem, size = 0x4, offset = 0x4, fixed_abs, tag = 'smem constant byte address 0x4 - core index']
  #allocation1 [shape = 'u32[144,128]{1,0:T(1,128)}', space=vmem, size = 0x12000, scoped, tag = 'internal scratch']
  %s0 = inlined_call_operand.vmem [shape: bf16[2,10,10,8], index: 0, kind: input, shape index: {}]
  %s1 = inlined_call_operand.vmem [shape: bf16[9,8,16], index: 1, kind: input, shape index: {}]
  %s2 = inlined_call_operand.vmem [shape: bf16[2,64,16], index: 2, kind: output, shape index: {0}]
  %s3 = inlined_call_operand.vmem [shape: f32[2,2,16], index: 3, kind: output, shape index: {1}]
  %4 = xla_tuple %s2, %s3
  %s5 = sld [smem:[#allocation0]]
  $region49: #{run.6} parent=0
    _
  %s7 = ssub.s32 1, %s5
  %s8 = scalar_select 0, %s7, %s5
  loop: start=0, step=1, limit=4
  $region2: #{run.6} parent=0 // loop_pre_header
    _
  $region3: #{run.6} parent=0 // loop_header
    %s10 = sphi 0, %s14
    %p11 = scmp.ge.s32.totalorder %s10, 4
    %s20 = sphi 0, %s22
    %s23 = sphi 0, %s20
    %s24 = sphi 0, %s23
    %s40 = sphi 0, %s24
    %s44 = sphi 0, %s44
    %s46 = sphi 0, %s44
    %s47 = sphi 0, %s46
    %s61 = sphi 0, %s47
    %s67 = sphi 0, %s69
    %s70 = sphi 0, %s67
    %s71 = sphi 0, %s70
    %s87 = sphi 0, %s71
    %s93 = sphi 0, %s95
    %s96 = sphi 0, %s93
    %s97 = sphi 0, %s96
    %s113 = sphi 0, %s97
  $region4: #{run.6} parent=0 // loop_header_branch
    %13 = sbr.rel (%p11) target = $region8
  $region5: #{run.6} parent=0 // loop_body
    %s15 = ssub.s32 %s10, 1
    %s16 = ssub.s32 %s10, 2
    %s17 = sadd.s32 %s10, 1
    %s18 = ssub.s32 %s10, %s17
    %p19 = scmp.eq.s32.totalorder %s18, 0
    %s21 = sadd.s32 %s20, 1
    %s22 = scalar_select %p19, %s20, %s21
    %p25 = pneg %p19
    %p26 = scmp.eq.s32.totalorder %s10, 1
    %p27 = por %p25, %p26
    %p28 = scmp.ne.s32.totalorder %s20, %s23
    %p29 = scmp.eq.s32.totalorder %s10, 0
    %p30 = por %p28, %p29
    %p31 = scmp.ne.s32.totalorder %s20, %s23
    %p32 = scmp.eq.s32.totalorder %s15, 1
    %p33 = por %p31, %p32
    %p34 = scmp.ne.s32.totalorder %s23, %s24
    %p35 = scmp.eq.s32.totalorder %s15, 0
    %p36 = por %p34, %p35
    %p37 = scmp.ne.s32.totalorder %s23, %s24
    %p38 = scmp.eq.s32.totalorder %s16, 1
    %p39 = por %p37, %p38
    %p41 = scmp.ne.s32.totalorder %s24, %s40
    %p42 = scmp.eq.s32.totalorder %s16, 0
    %p43 = por %p41, %p42
    %s45 = sadd.s32 %s44, 1
    %p48 = scmp.eq.s32.totalorder %s10, 1
    %p49 = scmp.ne.s32.totalorder %s44, %s46
    %p50 = scmp.eq.s32.totalorder %s10, 0
    %p51 = por %p49, %p50
    %p52 = scmp.ne.s32.totalorder %s44, %s46
    %p53 = scmp.eq.s32.totalorder %s15, 1
    %p54 = por %p52, %p53
    %p55 = scmp.ne.s32.totalorder %s46, %s47
    %p56 = scmp.eq.s32.totalorder %s15, 0
    %p57 = por %p55, %p56
    %p58 = scmp.ne.s32.totalorder %s46, %s47
    %p59 = scmp.eq.s32.totalorder %s16, 1
    %p60 = por %p58, %p59
    %p62 = scmp.ne.s32.totalorder %s47, %s61
    %p63 = scmp.eq.s32.totalorder %s16, 0
    %p64 = por %p62, %p63
    %s65 = ssub.s32 %s10, %s17
    %p66 = scmp.eq.s32.totalorder %s65, 0
    %s68 = sadd.s32 %s67, 1
    %s69 = scalar_select %p66, %s67, %s68
    %p72 = pneg %p66
    %p73 = scmp.eq.s32.totalorder %s10, 1
    %p74 = por %p72, %p73
    %p75 = scmp.ne.s32.totalorder %s67, %s70
    %p76 = scmp.eq.s32.totalorder %s10, 0
    %p77 = por %p75, %p76
    %p78 = scmp.ne.s32.totalorder %s67, %s70
    %p79 = scmp.eq.s32.totalorder %s15, 1
    %p80 = por %p78, %p79
    %p81 = scmp.ne.s32.totalorder %s70, %s71
    %p82 = scmp.eq.s32.totalorder %s15, 0
    %p83 = por %p81, %p82
    %p84 = scmp.ne.s32.totalorder %s70, %s71
    %p85 = scmp.eq.s32.totalorder %s16, 1
    %p86 = por %p84, %p85
    %p88 = scmp.ne.s32.totalorder %s71, %s87
    %p89 = scmp.eq.s32.totalorder %s16, 0
    %p90 = por %p88, %p89
    %s91 = ssub.s32 %s10, %s17
    %p92 = scmp.eq.s32.totalorder %s91, 0
    %s94 = sadd.s32 %s93, 1
    %s95 = scalar_select %p92, %s93, %s94
    %p98 = pneg %p92
    %p99 = scmp.eq.s32.totalorder %s10, 1
    %p100 = por %p98, %p99
    %p101 = scmp.ne.s32.totalorder %s93, %s96
    %p102 = scmp.eq.s32.totalorder %s10, 0
    %p103 = por %p101, %p102
    %p104 = scmp.ne.s32.totalorder %s93, %s96
    %p105 = scmp.eq.s32.totalorder %s15, 1
    %p106 = por %p104, %p105
    %p107 = scmp.ne.s32.totalorder %s96, %s97
    %p108 = scmp.eq.s32.totalorder %s15, 0
    %p109 = por %p107, %p108
    %p110 = scmp.ne.s32.totalorder %s96, %s97
    %p111 = scmp.eq.s32.totalorder %s16, 1
    %p112 = por %p110, %p111
    %p114 = scmp.ne.s32.totalorder %s97, %s113
    %p115 = scmp.eq.s32.totalorder %s16, 0
    %p116 = por %p114, %p115
    %p117 = scmp.le.s32.totalorder 1, %s10
    %p118 = scmp.lt.s32.totalorder %s10, 3
    %p119 = pnand %p117, %p118
    %p120 = pneg %p119
    // Predicated region
    $region9: #{run.6} parent=5 // pred_check
      _
    $region10: #{run.6} parent=5 // pred_check_branch
      %122 = sbr.rel (%p119) target = $region12
    $region11: #{run.6} parent=5 // pred_region
      %s123 = ssub.s32 %s10, 1
      // Predicated region
      $region13: #{run.6} parent=11 // pred_check
        %p124 = pneg %p57
      $region14: #{run.6} parent=11 // pred_check_branch
        %126 = sbr.rel (%p124) target = $region16
      $region15: #{run.6} parent=11 // pred_region
        _
      $region16: #{run.6} parent=11 // pred_fallthru
        _
    $region12: #{run.6} parent=5 // pred_fallthru
      _
    %p127 = scmp.lt.s32.totalorder %s10, 2
    // Predicated region
    $region17: #{run.6} parent=5 // pred_check
      %p128 = pneg %p127
    $region18: #{run.6} parent=5 // pred_check_branch
      %130 = sbr.rel (%p128) target = $region20
    $region19: #{run.6} parent=5 // pred_region
      // Predicated region
      $region21: #{run.6} parent=19 // pred_check
        %p131 = pneg %p30
      $region22: #{run.6} parent=19 // pred_check_branch
        %133 = sbr.rel (%p131) target = $region24
      $region23: #{run.6} parent=19 // pred_region
        %p134 = scmp.lt.s32.totalorder %s10, 1
        %s135 = scalar_select %p134, %s10, 1
        %s136 = smul.addr %s135, 20
        %s137 = smul.addr %s136, 4
        %s138 = scalar_lea.vmem %s0, %s137
      $region24: #{run.6} parent=19 // pred_fallthru
        _
    $region20: #{run.6} parent=5 // pred_fallthru
      _
    %p139 = scmp.le.s32.totalorder 1, %s10
    %p140 = scmp.lt.s32.totalorder %s10, 3
    %p141 = pnand %p139, %p140
    %p142 = pneg %p141
    // Predicated region
    $region25: #{run.6} parent=5 // pred_check
      _
    $region26: #{run.6} parent=5 // pred_check_branch
      %144 = sbr.rel (%p141) target = $region28
    $region27: #{run.6} parent=5 // pred_region
      %s145 = ssub.s32 %s10, 1
      %p146 = scmp.lt.s32.totalorder %s15, 1
      %s147 = scalar_select %p146, %s15, 1
      %s148 = smul.addr %s147, 20
      %s149 = smul.addr %s148, 4
      %s150 = scalar_lea.vmem %s0, %s149
      %p151 = pneg %p36
      %p152 = pneg %p33
      %p153 = pneg %p57
      %p154 = pneg %p54
      %p155 = pneg %p83
      %p156 = pneg %p80
      %p157 = scmp.lt.s32.totalorder %s15, 1
      %s158 = scalar_select %p157, %s15, 1
      %s159 = smul.addr %s158, 8
      %s160 = smul.addr %s159, 4
      %s161 = scalar_lea.vmem %s2, %s160
      %p162 = pneg %p109
      %p163 = pneg %p106
      %p164 = scmp.lt.s32.totalorder %s15, 1
      %s165 = scalar_select %p164, %s15, 1
      %s166 = smul.addr %s165, 2
      %s167 = scalar_lea.vmem %s3, %s166
      %p168 = scmp.lt.s32.totalorder %s15, 1
      %s169 = scalar_select %p168, %s15, 1
      %s170 = smul.addr %s169, 20
      %s171 = smul.addr %s170, 4
      %s172 = scalar_lea.vmem %s0, %s171
      %p173 = scmp.lt.s32.totalorder %s15, 1
      %s174 = scalar_select %p173, %s15, 1
      %s175 = smul.addr %s174, 8
      %s176 = smul.addr %s175, 4
      %s177 = scalar_lea.vmem %s2, %s176
      %p178 = scmp.lt.s32.totalorder %s15, 1
      %s179 = scalar_select %p178, %s15, 1
      %s180 = smul.addr %s179, 2
      %s181 = scalar_lea.vmem %s3, %s180
      %v183 = vld [vmem:[%s172] sm:$0xf]
      %v184 = vld [vmem:[%s172 + $0x8] sm:$0xf]
      %v185 = vld [vmem:[%s172 + $0x10] sm:$0xf]
      %v186 = vld [vmem:[%s172 + $0x18] sm:$0xf]
      %v187 = vld [vmem:[%s172 + $0x20] sm:$0xf]
      %v188 = vld [vmem:[%s172 + $0x28] sm:$0xf]
      %v189 = vld [vmem:[%s172 + $0x30] sm:$0xf]
      %v190 = vld [vmem:[%s172 + $0x38] sm:$0xf]
      %v191 = vld [vmem:[%s1] sm:$0xf]
      %v192 = vld [vmem:[%s172 + $0x4] sm:$0x1]
      %v193 = vld [vmem:[%s172 + $0xc] sm:$0x1]
      %v194 = vld [vmem:[%s172 + $0x14] sm:$0x1]
      %v195 = vld [vmem:[%s172 + $0x1c] sm:$0x1]
      %v196 = vld [vmem:[%s172 + $0x24] sm:$0x1]
      %v197 = vld [vmem:[%s172 + $0x2c] sm:$0x1]
      %v198 = vld [vmem:[%s172 + $0x34] sm:$0x1]
      %v199 = vld [vmem:[%s172 + $0x3c] sm:$0x1]
      %vm200 = vsmask.f32 3328
      %vm201 = vsmask.f32 7440
      %vm202 = vmor %vm200, %vm201
      %v204 = vshrl.u32 %v183, 16
      %v206 = vrot.slane %v204, 4
      %v207 = vshll.u32 %v183, 16
      %v209 = vrot.slane %v207, 5
      %v210 = vor.u32 %v206, %v209
      %v211 = vrot.slane %v210, 4
      %v213 = vshll.u32 %v192, 16
      %v215 = vrot.slane %v213, 5
      %v216 = vsel %vm202, %v211, %v215
      %v218 = vshrl.u32 %v184, 16
      %v220 = vrot.slane %v218, 4
      %v221 = vshll.u32 %v184, 16
      %v223 = vrot.slane %v221, 5
      %v224 = vor.u32 %v220, %v223
      %v225 = vrot.slane %v224, 4
      %v227 = vshll.u32 %v193, 16
      %v229 = vrot.slane %v227, 5
      %v230 = vsel %vm202, %v225, %v229
      %v232 = vshrl.u32 %v185, 16
      %v234 = vrot.slane %v232, 4
      %v235 = vshll.u32 %v185, 16
      %v237 = vrot.slane %v235, 5
      %v238 = vor.u32 %v234, %v237
      %v239 = vrot.slane %v238, 4
      %v241 = vshll.u32 %v194, 16
      %v243 = vrot.slane %v241, 5
      %v244 = vsel %vm202, %v239, %v243
      %v246 = vshrl.u32 %v186, 16
      %v248 = vrot.slane %v246, 4
      %v249 = vshll.u32 %v186, 16
      %v251 = vrot.slane %v249, 5
      %v252 = vor.u32 %v248, %v251
      %v253 = vrot.slane %v252, 4
      %v255 = vshll.u32 %v195, 16
      %v257 = vrot.slane %v255, 5
      %v258 = vsel %vm202, %v253, %v257
      %v260 = vshrl.u32 %v187, 16
      %v262 = vrot.slane %v260, 4
      %v263 = vshll.u32 %v187, 16
      %v265 = vrot.slane %v263, 5
      %v266 = vor.u32 %v262, %v265
      %v267 = vrot.slane %v266, 4
      %v269 = vshll.u32 %v196, 16
      %v271 = vrot.slane %v269, 5
      %v272 = vsel %vm202, %v267, %v271
      %v274 = vshrl.u32 %v188, 16
      %v276 = vrot.slane %v274, 4
      %v277 = vshll.u32 %v188, 16
      %v279 = vrot.slane %v277, 5
      %v280 = vor.u32 %v276, %v279
      %v281 = vrot.slane %v280, 4
      %v283 = vshll.u32 %v197, 16
      %v285 = vrot.slane %v283, 5
      %v286 = vsel %vm202, %v281, %v285
      %v288 = vshrl.u32 %v189, 16
      %v290 = vrot.slane %v288, 4
      %v291 = vshll.u32 %v189, 16
      %v293 = vrot.slane %v291, 5
      %v294 = vor.u32 %v290, %v293
      %v295 = vrot.slane %v294, 4
      %v297 = vshll.u32 %v198, 16
      %v299 = vrot.slane %v297, 5
      %v300 = vsel %vm202, %v295, %v299
      %v302 = vshrl.u32 %v190, 16
      %v304 = vrot.slane %v302, 4
      %v305 = vshll.u32 %v190, 16
      %v307 = vrot.slane %v305, 5
      %v308 = vor.u32 %v304, %v307
      %v309 = vrot.slane %v308, 4
      %v311 = vshll.u32 %v199, 16
      %v313 = vrot.slane %v311, 5
      %v314 = vsel %vm202, %v309, %v313
      %s315 = scalar_lea.vmem %s1, 4
      %v316 = vld [vmem:[%s315] sm:$0xf]
      %v317 = vunpack.c.l.b16 %v216
      %v318 = vunpack.c.l.b16 %v230
      %v319 = vunpack.c.l.b16 %v244
      %v320 = vunpack.c.l.b16 %v258
      %v321 = vunpack.c.l.b16 %v272
      %v322 = vunpack.c.l.b16 %v286
      %v323 = vunpack.c.l.b16 %v300
      %v324 = vunpack.c.l.b16 %v314
      %v325 = vpack.c.b16 %v318, %v317
      %v326 = vpack.c.b16 %v320, %v319
      %v327 = vpack.c.b16 %v322, %v321
      %v328 = vpack.c.b16 %v324, %v323
      %vm329 = vcmask 64512
      %v331 = vsel %vm329, %v325, 0
      %v334 = vsel %vm329, %v326, 0
      %v337 = vsel %vm329, %v327, 0
      %v340 = vsel %vm329, %v328, 0
      %vm342 = vcmask 1043456
      %v344 = vsel %vm342, %v316, 0
      %346 = vmatprep.subr.bf16.mxu0 0
      %347 = vmatpush1.bf16.msra.mxu0 %v344
      %348 = vmatprep.subr.bf16.mxu0 0
      %349 = vmatpush1.bf16.msra.mxu0 0
      %350 = vmatprep.subr.bf16.mxu0 0
      %351 = vmatpush1.bf16.msra.mxu0 0
      %352 = vmatprep.subr.bf16.mxu0 0
      %353 = vmatpush1.bf16.msra.mxu0 0
      %354 = vmatprep.subr.bf16.mxu0 0
      %355 = vmatpush1.bf16.msra.mxu0 0
      %356 = vmatprep.subr.bf16.mxu0 0
      %357 = vmatpush1.bf16.msra.mxu0 0
      %358 = vmatprep.subr.bf16.mxu0 0
      %359 = vmatpush1.bf16.msra.mxu0 0
      %360 = vmatprep.subr.bf16.mxu0 0
      %361 = vmatpush1.bf16.msra.mxu0 0
      %362 = vmatprep.subr.bf16.mxu0 0
      %363 = vmatpush1.bf16.msra.mxu0 0
      %364 = vmatprep.subr.bf16.mxu0 0
      %365 = vmatpush1.bf16.msra.mxu0 0
      %366 = vmatprep.subr.bf16.mxu0 0
      %367 = vmatpush1.bf16.msra.mxu0 0
      %368 = vmatprep.subr.bf16.mxu0 0
      %369 = vmatpush1.bf16.msra.mxu0 0
      %370 = vmatprep.subr.bf16.mxu0 0
      %371 = vmatpush1.bf16.msra.mxu0 0
      %372 = vmatprep.subr.bf16.mxu0 0
      %373 = vmatpush1.bf16.msra.mxu0 0
      %374 = vmatprep.subr.bf16.mxu0 0
      %375 = vmatpush1.bf16.msra.mxu0 0
      %376 = vmatprep.subr.bf16.mxu0 0
      %377 = vmatpush1.bf16.msra.mxu0 0
      %378 = vmatprep.mubr.bf16.mxu0 0
      %379 = vmatmul.mubr.bf16.gmra.mrb[0].mxu0 %v331
      %v380 = vpop.f32.mrb[0].mxu0
      %v381 = vadd.f32 0.0, %v380
      %v382 = vpop.f32.mrb[0].mxu0
      %v383 = vpop.f32.mrb[0].mxu0
      %v384 = vadd.f32 0.0, %v383
      %v385 = vpop.f32.mrb[0].mxu0
      %386 = vmatprep.mubr.bf16.mxu0 0
      %387 = vmatmul.mubr.bf16.gmra.mrb[0].mxu0 %v334
      %v388 = vpop.f32.mrb[0].mxu0
      %v389 = vadd.f32 0.0, %v388
      %v390 = vpop.f32.mrb[0].mxu0
      %v391 = vpop.f32.mrb[0].mxu0
      %v392 = vadd.f32 0.0, %v391
      %v393 = vpop.f32.mrb[0].mxu0
      %394 = vmatprep.mubr.bf16.mxu0 0
      %395 = vmatmul.mubr.bf16.gmra.mrb[0].mxu0 %v337
      %v396 = vpop.f32.mrb[0].mxu0
      %v397 = vadd.f32 0.0, %v396
      %v398 = vpop.f32.mrb[0].mxu0
      %v399 = vpop.f32.mrb[0].mxu0
      %v400 = vadd.f32 0.0, %v399
      %v401 = vpop.f32.mrb[0].mxu0
      %402 = vmatprep.mubr.bf16.mxu0 0
      %403 = vmatmul.mubr.bf16.gmra.mrb[0].mxu0 %v340
      %v404 = vpop.f32.mrb[0].mxu0
      %v405 = vadd.f32 0.0, %v404
      %v406 = vpop.f32.mrb[0].mxu0
      %v407 = vpop.f32.mrb[0].mxu0
      %v408 = vadd.f32 0.0, %v407
      %v409 = vpop.f32.mrb[0].mxu0
      %410 = vdwg.mxu0
      %v419 = vunpack.c.l.b16 %v183
      %v420 = vunpack.c.l.b16 %v184
      %v421 = vunpack.c.l.b16 %v185
      %v422 = vunpack.c.l.b16 %v186
      %v423 = vunpack.c.l.b16 %v187
      %v424 = vunpack.c.l.b16 %v188
      %v425 = vunpack.c.l.b16 %v189
      %v426 = vunpack.c.l.b16 %v190
      %v427 = vpack.c.b16 %v420, %v419
      %v428 = vpack.c.b16 %v422, %v421
      %v429 = vpack.c.b16 %v424, %v423
      %v430 = vpack.c.b16 %v426, %v425
      %v432 = vsel %vm329, %v427, 0
      %v435 = vsel %vm329, %v428, 0
      %v438 = vsel %vm329, %v429, 0
      %v441 = vsel %vm329, %v430, 0
      %v444 = vsel %vm342, %v191, 0
      %446 = vmatprep.subr.bf16.mxu0 0
      %447 = vmatpush1.bf16.msra.mxu0 %v444
      %448 = vmatprep.subr.bf16.mxu0 0
      %449 = vmatpush1.bf16.msra.mxu0 0
      %450 = vmatprep.subr.bf16.mxu0 0
      %451 = vmatpush1.bf16.msra.mxu0 0
      %452 = vmatprep.subr.bf16.mxu0 0
      %453 = vmatpush1.bf16.msra.mxu0 0
      %454 = vmatprep.subr.bf16.mxu0 0
      %455 = vmatpush1.bf16.msra.mxu0 0
      %456 = vmatprep.subr.bf16.mxu0 0
      %457 = vmatpush1.bf16.msra.mxu0 0
      %458 = vmatprep.subr.bf16.mxu0 0
      %459 = vmatpush1.bf16.msra.mxu0 0
      %460 = vmatprep.subr.bf16.mxu0 0
      %461 = vmatpush1.bf16.msra.mxu0 0
      %462 = vmatprep.subr.bf16.mxu0 0
      %463 = vmatpush1.bf16.msra.mxu0 0
      %464 = vmatprep.subr.bf16.mxu0 0
      %465 = vmatpush1.bf16.msra.mxu0 0
      %466 = vmatprep.subr.bf16.mxu0 0
      %467 = vmatpush1.bf16.msra.mxu0 0
      %468 = vmatprep.subr.bf16.mxu0 0
      %469 = vmatpush1.bf16.msra.mxu0 0
      %470 = vmatprep.subr.bf16.mxu0 0
      %471 = vmatpush1.bf16.msra.mxu0 0
      %472 = vmatprep.subr.bf16.mxu0 0
      %473 = vmatpush1.bf16.msra.mxu0 0
      %474 = vmatprep.subr.bf16.mxu0 0
      %475 = vmatpush1.bf16.msra.mxu0 0
      %476 = vmatprep.subr.bf16.mxu0 0
      %477 = vmatpush1.bf16.msra.mxu0 0
      %478 = vmatprep.mubr.bf16.mxu0 0
      %479 = vmatmul.mubr.bf16.gmra.mrb[0].mxu0 %v432
      %v480 = vpop.f32.mrb[0].mxu0
      %v481 = vadd.f32 %v381, %v480
      %v482 = vpop.f32.mrb[0].mxu0
      %v483 = vpop.f32.mrb[0].mxu0
      %v484 = vadd.f32 %v384, %v483
      %v485 = vpop.f32.mrb[0].mxu0
      %486 = vmatprep.mubr.bf16.mxu0 0
      %487 = vmatmul.mubr.bf16.gmra.mrb[0].mxu0 %v435
      %v488 = vpop.f32.mrb[0].mxu0
      %v489 = vadd.f32 %v389, %v488
      %v490 = vpop.f32.mrb[0].mxu0
      %v491 = vpop.f32.mrb[0].mxu0
      %v492 = vadd.f32 %v392, %v491
      %v493 = vpop.f32.mrb[0].mxu0
      %494 = vmatprep.mubr.bf16.mxu0 0
      %495 = vmatmul.mubr.bf16.gmra.mrb[0].mxu0 %v438
      %v496 = vpop.f32.mrb[0].mxu0
      %v497 = vadd.f32 %v397, %v496
      %v498 = vpop.f32.mrb[0].mxu0
      %v499 = vpop.f32.mrb[0].mxu0
      %v500 = vadd.f32 %v400, %v499
      %v501 = vpop.f32.mrb[0].mxu0
      %502 = vmatprep.mubr.bf16.mxu0 0
      %503 = vmatmul.mubr.bf16.gmra.mrb[0].mxu0 %v441
      %v504 = vpop.f32.mrb[0].mxu0
      %v505 = vadd.f32 %v405, %v504
      %v506 = vpop.f32.mrb[0].mxu0
      %v507 = vpop.f32.mrb[0].mxu0
      %v508 = vadd.f32 %v408, %v507
      %v509 = vpop.f32.mrb[0].mxu0
      %510 = vdwg.mxu0
      %v511 = vld [vmem:[%s172] sm:$0xe]
      %v512 = vld [vmem:[%s172 + $0x8] sm:$0xe]
      %v513 = vld [vmem:[%s172 + $0x10] sm:$0xe]
      %v514 = vld [vmem:[%s172 + $0x18] sm:$0xe]
      %v515 = vld [vmem:[%s172 + $0x20] sm:$0xe]
      %v516 = vld [vmem:[%s172 + $0x28] sm:$0xe]
      %v517 = vld [vmem:[%s172 + $0x30] sm:$0xe]
      %v518 = vld [vmem:[%s172 + $0x38] sm:$0xe]
      %vm535 = vcmask 1042432
      %vm536 = vcmask 1046532
      %vm537 = vmor %vm535, %vm536
      %v538 = vrot.slane %v511, 5
      %v539 = vrot.slane %v538, 4
      %v540 = vrot.slane %v192, 5
      %v541 = vsel %vm537, %v539, %v540
      %v542 = vrot.slane %v512, 5
      %v543 = vrot.slane %v542, 4
      %v544 = vrot.slane %v193, 5
      %v545 = vsel %vm537, %v543, %v544
      %v546 = vrot.slane %v513, 5
      %v547 = vrot.slane %v546, 4
      %v548 = vrot.slane %v194, 5
      %v549 = vsel %vm537, %v547, %v548
      %v550 = vrot.slane %v514, 5
      %v551 = vrot.slane %v550, 4
      %v552 = vrot.slane %v195, 5
      %v553 = vsel %vm537, %v551, %v552
      %v554 = vrot.slane %v515, 5
      %v555 = vrot.slane %v554, 4
      %v556 = vrot.slane %v196, 5
      %v557 = vsel %vm537, %v555, %v556
      %v558 = vrot.slane %v516, 5
      %v559 = vrot.slane %v558, 4
      %v560 = vrot.slane %v197, 5
      %v561 = vsel %vm537, %v559, %v560
      %v562 = vrot.slane %v517, 5
      %v563 = vrot.slane %v562, 4
      %v564 = vrot.slane %v198, 5
      %v565 = vsel %vm537, %v563, %v564
      %v566 = vrot.slane %v518, 5
      %v567 = vrot.slane %v566, 4
      %v568 = vrot.slane %v199, 5
      %v569 = vsel %vm537, %v567, %v568
      %s570 = scalar_lea.vmem %s1, 8
      %v571 = vld [vmem:[%s570] sm:$0xf]
      %v572 = vunpack.c.l.b16 %v541
      %v573 = vunpack.c.l.b16 %v545
      %v574 = vunpack.c.l.b16 %v549
      %v575 = vunpack.c.l.b16 %v553
      %v576 = vunpack.c.l.b16 %v557
      %v577 = vunpack.c.l.b16 %v561
      %v578 = vunpack.c.l.b16 %v565
      %v579 = vunpack.c.l.b16 %v569
      %v580 = vpack.c.b16 %v573, %v572
      %v581 = vpack.c.b16 %v575, %v574
      %v582 = vpack.c.b16 %v577, %v576
      %v583 = vpack.c.b16 %v579, %v578
      %v585 = vsel %vm329, %v580, 0
      %v588 = vsel %vm329, %v581, 0
      %v591 = vsel %vm329, %v582, 0
      %v594 = vsel %vm329, %v583, 0
      %v597 = vsel %vm342, %v571, 0
      %599 = vmatprep.subr.bf16.mxu0 0
      %600 = vmatpush1.bf16.msra.mxu0 %v597
      %601 = vmatprep.subr.bf16.mxu0 0
      %602 = vmatpush1.bf16.msra.mxu0 0
      %603 = vmatprep.subr.bf16.mxu0 0
      %604 = vmatpush1.bf16.msra.mxu0 0
      %605 = vmatprep.subr.bf16.mxu0 0
      %606 = vmatpush1.bf16.msra.mxu0 0
      %607 = vmatprep.subr.bf16.mxu0 0
      %608 = vmatpush1.bf16.msra.mxu0 0
      %609 = vmatprep.subr.bf16.mxu0 0
      %610 = vmatpush1.bf16.msra.mxu0 0
      %611 = vmatprep.subr.bf16.mxu0 0
      %612 = vmatpush1.bf16.msra.mxu0 0
      %613 = vmatprep.subr.bf16.mxu0 0
      %614 = vmatpush1.bf16.msra.mxu0 0
      %615 = vmatprep.subr.bf16.mxu0 0
      %616 = vmatpush1.bf16.msra.mxu0 0
      %617 = vmatprep.subr.bf16.mxu0 0
      %618 = vmatpush1.bf16.msra.mxu0 0
      %619 = vmatprep.subr.bf16.mxu0 0
      %620 = vmatpush1.bf16.msra.mxu0 0
      %621 = vmatprep.subr.bf16.mxu0 0
      %622 = vmatpush1.bf16.msra.mxu0 0
      %623 = vmatprep.subr.bf16.mxu0 0
      %624 = vmatpush1.bf16.msra.mxu0 0
      %625 = vmatprep.subr.bf16.mxu0 0
      %626 = vmatpush1.bf16.msra.mxu0 0
      %627 = vmatprep.subr.bf16.mxu0 0
      %628 = vmatpush1.bf16.msra.mxu0 0
      %629 = vmatprep.subr.bf16.mxu0 0
      %630 = vmatpush1.bf16.msra.mxu0 0
      %631 = vmatprep.mubr.bf16.mxu0 0
      %632 = vmatmul.mubr.bf16.gmra.mrb[0].mxu0 %v585
      %v633 = vpop.f32.mrb[0].mxu0
      %v634 = vadd.f32 0.0, %v633
      %v635 = vpop.f32.mrb[0].mxu0
      %v636 = vpop.f32.mrb[0].mxu0
      %v637 = vadd.f32 0.0, %v636
      %v638 = vpop.f32.mrb[0].mxu0
      %639 = vmatprep.mubr.bf16.mxu0 0
      %640 = vmatmul.mubr.bf16.gmra.mrb[0].mxu0 %v588
      %v641 = vpop.f32.mrb[0].mxu0
      %v642 = vadd.f32 0.0, %v641
      %v643 = vpop.f32.mrb[0].mxu0
      %v644 = vpop.f32.mrb[0].mxu0
      %v645 = vadd.f32 0.0, %v644
      %v646 = vpop.f32.mrb[0].mxu0
      %647 = vmatprep.mubr.bf16.mxu0 0
      %648 = vmatmul.mubr.bf16.gmra.mrb[0].mxu0 %v591
      %v649 = vpop.f32.mrb[0].mxu0
      %v650 = vadd.f32 0.0, %v649
      %v651 = vpop.f32.mrb[0].mxu0
      %v652 = vpop.f32.mrb[0].mxu0
      %v653 = vadd.f32 0.0, %v652
      %v654 = vpop.f32.mrb[0].mxu0
      %655 = vmatprep.mubr.bf16.mxu0 0
      %656 = vmatmul.mubr.bf16.gmra.mrb[0].mxu0 %v594
      %v657 = vpop.f32.mrb[0].mxu0
      %v658 = vadd.f32 0.0, %v657
      %v659 = vpop.f32.mrb[0].mxu0
      %v660 = vpop.f32.mrb[0].mxu0
      %v661 = vadd.f32 0.0, %v660
      %v662 = vpop.f32.mrb[0].mxu0
      %663 = vdwg.mxu0
      %v664 = vadd.f32 %v481, %v634
      %v665 = vadd.f32 %v484, %v637
      %v666 = vadd.f32 %v489, %v642
      %v667 = vadd.f32 %v492, %v645
      %v668 = vadd.f32 %v497, %v650
      %v669 = vadd.f32 %v500, %v653
      %v670 = vadd.f32 %v505, %v658
      %v671 = vadd.f32 %v508, %v661
      %s672 = scalar_lea.vmem %s172, 8
      %v673 = vld [vmem:[%s672] sm:$0xf]
      %v674 = vld [vmem:[%s672 + $0x8] sm:$0xf]
      %v675 = vld [vmem:[%s672 + $0x10] sm:$0xf]
      %v676 = vld [vmem:[%s672 + $0x18] sm:$0xf]
      %v677 = vld [vmem:[%s672 + $0x20] sm:$0xf]
      %v678 = vld [vmem:[%s672 + $0x28] sm:$0xf]
      %v679 = vld [vmem:[%s672 + $0x30] sm:$0xf]
      %v680 = vld [vmem:[%s672 + $0x38] sm:$0xf]
      %s681 = scalar_lea.vmem %s1, 12
      %v682 = vld [vmem:[%s681] sm:$0xf]
      %v691 = vunpack.c.l.b16 %v673
      %v692 = vunpack.c.l.b16 %v674
      %v693 = vunpack.c.l.b16 %v675
      %v694 = vunpack.c.l.b16 %v676
      %v695 = vunpack.c.l.b16 %v677
      %v696 = vunpack.c.l.b16 %v678
      %v697 = vunpack.c.l.b16 %v679
      %v698 = vunpack.c.l.b16 %v680
      %v699 = vpack.c.b16 %v692, %v691
      %v700 = vpack.c.b16 %v694, %v693
      %v701 = vpack.c.b16 %v696, %v695
      %v702 = vpack.c.b16 %v698, %v697
      %v704 = vsel %vm329, %v699, 0
      %v707 = vsel %vm329, %v700, 0
      %v710 = vsel %vm329, %v701, 0
      %v713 = vsel %vm329, %v702, 0
      %v716 = vsel %vm342, %v682, 0
      %718 = vmatprep.subr.bf16.mxu0 0
      %719 = vmatpush1.bf16.msra.mxu0 %v716
      %720 = vmatprep.subr.bf16.mxu0 0
      %721 = vmatpush1.bf16.msra.mxu0 0
      %722 = vmatprep.subr.bf16.mxu0 0
      %723 = vmatpush1.bf16.msra.mxu0 0
      %724 = vmatprep.subr.bf16.mxu0 0
      %725 = vmatpush1.bf16.msra.mxu0 0
      %726 = vmatprep.subr.bf16.mxu0 0
      %727 = vmatpush1.bf16.msra.mxu0 0
      %728 = vmatprep.subr.bf16.mxu0 0
      %729 = vmatpush1.bf16.msra.mxu0 0
      %730 = vmatprep.subr.bf16.mxu0 0
      %731 = vmatpush1.bf16.msra.mxu0 0
      %732 = vmatprep.subr.bf16.mxu0 0
      %733 = vmatpush1.bf16.msra.mxu0 0
      %734 = vmatprep.subr.bf16.mxu0 0
      %735 = vmatpush1.bf16.msra.mxu0 0
      %736 = vmatprep.subr.bf16.mxu0 0
      %737 = vmatpush1.bf16.msra.mxu0 0
      %738 = vmatprep.subr.bf16.mxu0 0
      %739 = vmatpush1.bf16.msra.mxu0 0
      %740 = vmatprep.subr.bf16.mxu0 0
      %741 = vmatpush1.bf16.msra.mxu0 0
      %742 = vmatprep.subr.bf16.mxu0 0
      %743 = vmatpush1.bf16.msra.mxu0 0
      %744 = vmatprep.subr.bf16.mxu0 0
      %745 = vmatpush1.bf16.msra.mxu0 0
      %746 = vmatprep.subr.bf16.mxu0 0
      %747 = vmatpush1.bf16.msra.mxu0 0
      %748 = vmatprep.subr.bf16.mxu0 0
      %749 = vmatpush1.bf16.msra.mxu0 0
      %750 = vmatprep.mubr.bf16.mxu0 0
      %751 = vmatmul.mubr.bf16.gmra.mrb[0].mxu0 %v704
      %v752 = vpop.f32.mrb[0].mxu0
      %v753 = vadd.f32 0.0, %v752
      %v754 = vpop.f32.mrb[0].mxu0
      %v755 = vpop.f32.mrb[0].mxu0
      %v756 = vadd.f32 0.0, %v755
      %v757 = vpop.f32.mrb[0].mxu0
      %758 = vmatprep.mubr.bf16.mxu0 0
      %759 = vmatmul.mubr.bf16.gmra.mrb[0].mxu0 %v707
      %v760 = vpop.f32.mrb[0].mxu0
      %v761 = vadd.f32 0.0, %v760
      %v762 = vpop.f32.mrb[0].mxu0
      %v763 = vpop.f32.mrb[0].mxu0
      %v764 = vadd.f32 0.0, %v763
      %v765 = vpop.f32.mrb[0].mxu0
      %766 = vmatprep.mubr.bf16.mxu0 0
      %767 = vmatmul.mubr.bf16.gmra.mrb[0].mxu0 %v710
      %v768 = vpop.f32.mrb[0].mxu0
      %v769 = vadd.f32 0.0, %v768
      %v770 = vpop.f32.mrb[0].mxu0
      %v771 = vpop.f32.mrb[0].mxu0
      %v772 = vadd.f32 0.0, %v771
      %v773 = vpop.f32.mrb[0].mxu0
      %774 = vmatprep.mubr.bf16.mxu0 0
      %775 = vmatmul.mubr.bf16.gmra.mrb[0].mxu0 %v713
      %v776 = vpop.f32.mrb[0].mxu0
      %v777 = vadd.f32 0.0, %v776
      %v778 = vpop.f32.mrb[0].mxu0
      %v779 = vpop.f32.mrb[0].mxu0
      %v780 = vadd.f32 0.0, %v779
      %v781 = vpop.f32.mrb[0].mxu0
      %782 = vdwg.mxu0
      %v783 = vadd.f32 %v664, %v753
      %v784 = vadd.f32 %v665, %v756
      %v785 = vadd.f32 %v666, %v761
      %v786 = vadd.f32 %v667, %v764
      %v787 = vadd.f32 %v668, %v769
      %v788 = vadd.f32 %v669, %v772
      %v789 = vadd.f32 %v670, %v777
      %v790 = vadd.f32 %v671, %v780
      %v791 = vld [vmem:[%s672] sm:$0xf]
      %v792 = vld [vmem:[%s672 + $0x4] sm:$0x1]
      %v793 = vld [vmem:[%s672 + $0x8] sm:$0xf]
      %v794 = vld [vmem:[%s672 + $0xc] sm:$0x1]
      %v795 = vld [vmem:[%s672 + $0x10] sm:$0xf]
      %v796 = vld [vmem:[%s672 + $0x14] sm:$0x1]
      %v797 = vld [vmem:[%s672 + $0x18] sm:$0xf]
      %v798 = vld [vmem:[%s672 + $0x1c] sm:$0x1]
      %v799 = vld [vmem:[%s672 + $0x20] sm:$0xf]
      %v800 = vld [vmem:[%s672 + $0x24] sm:$0x1]
      %v801 = vld [vmem:[%s672 + $0x28] sm:$0xf]
      %v802 = vld [vmem:[%s672 + $0x2c] sm:$0x1]
      %v803 = vld [vmem:[%s672 + $0x30] sm:$0xf]
      %v804 = vld [vmem:[%s672 + $0x34] sm:$0x1]
      %v805 = vld [vmem:[%s672 + $0x38] sm:$0xf]
      %v806 = vld [vmem:[%s672 + $0x3c] sm:$0x1]
      %v808 = vshrl.u32 %v791, 16
      %v810 = vrot.slane %v808, 4
      %v811 = vshll.u32 %v791, 16
      %v813 = vrot.slane %v811, 5
      %v814 = vor.u32 %v810, %v813
      %v815 = vrot.slane %v814, 4
      %v817 = vshll.u32 %v792, 16
      %v819 = vrot.slane %v817, 5
      %v820 = vsel %vm202, %v815, %v819
      %v822 = vshrl.u32 %v793, 16
      %v824 = vrot.slane %v822, 4
      %v825 = vshll.u32 %v793, 16
      %v827 = vrot.slane %v825, 5
      %v828 = vor.u32 %v824, %v827
      %v829 = vrot.slane %v828, 4
      %v831 = vshll.u32 %v794, 16
      %v833 = vrot.slane %v831, 5
      %v834 = vsel %vm202, %v829, %v833
      %v836 = vshrl.u32 %v795, 16
      %v838 = vrot.slane %v836, 4
      %v839 = vshll.u32 %v795, 16
      %v841 = vrot.slane %v839, 5
      %v842 = vor.u32 %v838, %v841
      %v843 = vrot.slane %v842, 4
      %v845 = vshll.u32 %v796, 16
      %v847 = vrot.slane %v845, 5
      %v848 = vsel %vm202, %v843, %v847
      %v850 = vshrl.u32 %v797, 16
      %v852 = vrot.slane %v850, 4
      %v853 = vshll.u32 %v797, 16
      %v855 = vrot.slane %v853, 5
      %v856 = vor.u32 %v852, %v855
      %v857 = vrot.slane %v856, 4
      %v859 = vshll.u32 %v798, 16
      %v861 = vrot.slane %v859, 5
      %v862 = vsel %vm202, %v857, %v861
      %v864 = vshrl.u32 %v799, 16
      %v866 = vrot.slane %v864, 4
      %v867 = vshll.u32 %v799, 16
      %v869 = vrot.slane %v867, 5
      %v870 = vor.u32 %v866, %v869
      %v871 = vrot.slane %v870, 4
      %v873 = vshll.u32 %v800, 16
      %v875 = vrot.slane %v873, 5
      %v876 = vsel %vm202, %v871, %v875
      %v878 = vshrl.u32 %v801, 16
      %v880 = vrot.slane %v878, 4
      %v881 = vshll.u32 %v801, 16
      %v883 = vrot.slane %v881, 5
      %v884 = vor.u32 %v880, %v883
      %v885 = vrot.slane %v884, 4
      %v887 = vshll.u32 %v802, 16
      %v889 = vrot.slane %v887, 5
      %v890 = vsel %vm202, %v885, %v889
      %v892 = vshrl.u32 %v803, 16
      %v894 = vrot.slane %v892, 4
      %v895 = vshll.u32 %v803, 16
      %v897 = vrot.slane %v895, 5
      %v898 = vor.u32 %v894, %v897
      %v899 = vrot.slane %v898, 4
      %v901 = vshll.u32 %v804, 16
      %v903 = vrot.slane %v901, 5
      %v904 = vsel %vm202, %v899, %v903
      %v906 = vshrl.u32 %v805, 16
      %v908 = vrot.slane %v906, 4
      %v909 = vshll.u32 %v805, 16
      %v911 = vrot.slane %v909, 5
      %v912 = vor.u32 %v908, %v911
      %v913 = vrot.slane %v912, 4
      %v915 = vshll.u32 %v806, 16
      %v917 = vrot.slane %v915, 5
      %v918 = vsel %vm202, %v913, %v917
      %s919 = scalar_lea.vmem %s1, 16
      %v920 = vld [vmem:[%s919] sm:$0xf]
      %v921 = vunpack.c.l.b16 %v820
      %v922 = vunpack.c.l.b16 %v834
      %v923 = vunpack.c.l.b16 %v848
      %v924 = vunpack.c.l.b16 %v862
      %v925 = vunpack.c.l.b16 %v876
      %v926 = vunpack.c.l.b16 %v890
      %v927 = vunpack.c.l.b16 %v904
      %v928 = vunpack.c.l.b16 %v918
      %v929 = vpack.c.b16 %v922, %v921
      %v930 = vpack.c.b16 %v924, %v923
      %v931 = vpack.c.b16 %v926, %v925
      %v932 = vpack.c.b16 %v928, %v927
      %v934 = vsel %vm329, %v929, 0
      %v937 = vsel %vm329, %v930, 0
      %v940 = vsel %vm329, %v931, 0
      %v943 = vsel %vm329, %v932, 0
      %v946 = vsel %vm342, %v920, 0
      %948 = vmatprep.subr.bf16.mxu0 0
      %949 = vmatpush1.bf16.msra.mxu0 %v946
      %950 = vmatprep.subr.bf16.mxu0 0
      %951 = vmatpush1.bf16.msra.mxu0 0
      %952 = vmatprep.subr.bf16.mxu0 0
      %953 = vmatpush1.bf16.msra.mxu0 0
      %954 = vmatprep.subr.bf16.mxu0 0
      %955 = vmatpush1.bf16.msra.mxu0 0
      %956 = vmatprep.subr.bf16.mxu0 0
      %957 = vmatpush1.bf16.msra.mxu0 0
      %958 = vmatprep.subr.bf16.mxu0 0
      %959 = vmatpush1.bf16.msra.mxu0 0
      %960 = vmatprep.subr.bf16.mxu0 0
      %961 = vmatpush1.bf16.msra.mxu0 0
      %962 = vmatprep.subr.bf16.mxu0 0
      %963 = vmatpush1.bf16.msra.mxu0 0
      %964 = vmatprep.subr.bf16.mxu0 0
      %965 = vmatpush1.bf16.msra.mxu0 0
      %966 = vmatprep.subr.bf16.mxu0 0
      %967 = vmatpush1.bf16.msra.mxu0 0
      %968 = vmatprep.subr.bf16.mxu0 0
      %969 = vmatpush1.bf16.msra.mxu0 0
      %970 = vmatprep.subr.bf16.mxu0 0
      %971 = vmatpush1.bf16.msra.mxu0 0
      %972 = vmatprep.subr.bf16.mxu0 0
      %973 = vmatpush1.bf16.msra.mxu0 0
      %974 = vmatprep.subr.bf16.mxu0 0
      %975 = vmatpush1.bf16.msra.mxu0 0
      %976 = vmatprep.subr.bf16.mxu0 0
      %977 = vmatpush1.bf16.msra.mxu0 0
      %978 = vmatprep.subr.bf16.mxu0 0
      %979 = vmatpush1.bf16.msra.mxu0 0
      %980 = vmatprep.mubr.bf16.mxu0 0
      %981 = vmatmul.mubr.bf16.gmra.mrb[0].mxu0 %v934
      %v982 = vpop.f32.mrb[0].mxu0
      %v983 = vadd.f32 0.0, %v982
      %v984 = vpop.f32.mrb[0].mxu0
      %v985 = vpop.f32.mrb[0].mxu0
      %v986 = vadd.f32 0.0, %v985
      %v987 = vpop.f32.mrb[0].mxu0
      %988 = vmatprep.mubr.bf16.mxu0 0
      %989 = vmatmul.mubr.bf16.gmra.mrb[0].mxu0 %v937
      %v990 = vpop.f32.mrb[0].mxu0
      %v991 = vadd.f32 0.0, %v990
      %v992 = vpop.f32.mrb[0].mxu0
      %v993 = vpop.f32.mrb[0].mxu0
      %v994 = vadd.f32 0.0, %v993
      %v995 = vpop.f32.mrb[0].mxu0
      %996 = vmatprep.mubr.bf16.mxu0 0
      %997 = vmatmul.mubr.bf16.gmra.mrb[0].mxu0 %v940
      %v998 = vpop.f32.mrb[0].mxu0
      %v999 = vadd.f32 0.0, %v998
      %v1000 = vpop.f32.mrb[0].mxu0
      %v1001 = vpop.f32.mrb[0].mxu0
      %v1002 = vadd.f32 0.0, %v1001
      %v1003 = vpop.f32.mrb[0].mxu0
      %1004 = vmatprep.mubr.bf16.mxu0 0
      %1005 = vmatmul.mubr.bf16.gmra.mrb[0].mxu0 %v943
      %v1006 = vpop.f32.mrb[0].mxu0
      %v1007 = vadd.f32 0.0, %v1006
      %v1008 = vpop.f32.mrb[0].mxu0
      %v1009 = vpop.f32.mrb[0].mxu0
      %v1010 = vadd.f32 0.0, %v1009
      %v1011 = vpop.f32.mrb[0].mxu0
      %1012 = vdwg.mxu0
      %v1013 = vadd.f32 %v783, %v983
      %v1014 = vadd.f32 %v784, %v986
      %v1015 = vadd.f32 %v785, %v991
      %v1016 = vadd.f32 %v786, %v994
      %v1017 = vadd.f32 %v787, %v999
      %v1018 = vadd.f32 %v788, %v1002
      %v1019 = vadd.f32 %v789, %v1007
      %v1020 = vadd.f32 %v790, %v1010
      %v1021 = vld [vmem:[%s672] sm:$0xe]
      %v1022 = vld [vmem:[%s672 + $0x8] sm:$0xe]
      %v1023 = vld [vmem:[%s672 + $0x10] sm:$0xe]
      %v1024 = vld [vmem:[%s672 + $0x18] sm:$0xe]
      %v1025 = vld [vmem:[%s672 + $0x20] sm:$0xe]
      %v1026 = vld [vmem:[%s672 + $0x28] sm:$0xe]
      %v1027 = vld [vmem:[%s672 + $0x30] sm:$0xe]
      %v1028 = vld [vmem:[%s672 + $0x38] sm:$0xe]
      %v1045 = vrot.slane %v1021, 5
      %v1046 = vrot.slane %v1045, 4
      %v1047 = vrot.slane %v792, 5
      %v1048 = vsel %vm537, %v1046, %v1047
      %v1049 = vrot.slane %v1022, 5
      %v1050 = vrot.slane %v1049, 4
      %v1051 = vrot.slane %v794, 5
      %v1052 = vsel %vm537, %v1050, %v1051
      %v1053 = vrot.slane %v1023, 5
      %v1054 = vrot.slane %v1053, 4
      %v1055 = vrot.slane %v796, 5
      %v1056 = vsel %vm537, %v1054, %v1055
      %v1057 = vrot.slane %v1024, 5
      %v1058 = vrot.slane %v1057, 4
      %v1059 = vrot.slane %v798, 5
      %v1060 = vsel %vm537, %v1058, %v1059
      %v1061 = vrot.slane %v1025, 5
      %v1062 = vrot.slane %v1061, 4
      %v1063 = vrot.slane %v800, 5
      %v1064 = vsel %vm537, %v1062, %v1063
      %v1065 = vrot.slane %v1026, 5
      %v1066 = vrot.slane %v1065, 4
      %v1067 = vrot.slane %v802, 5
      %v1068 = vsel %vm537, %v1066, %v1067
      %v1069 = vrot.slane %v1027, 5
      %v1070 = vrot.slane %v1069, 4
      %v1071 = vrot.slane %v804, 5
      %v1072 = vsel %vm537, %v1070, %v1071
      %v1073 = vrot.slane %v1028, 5
      %v1074 = vrot.slane %v1073, 4
      %v1075 = vrot.slane %v806, 5
      %v1076 = vsel %vm537, %v1074, %v1075
      %s1077 = scalar_lea.vmem %s1, 20
      %v1078 = vld [vmem:[%s1077] sm:$0xf]
      %v1079 = vunpack.c.l.b16 %v1048
      %v1080 = vunpack.c.l.b16 %v1052
      %v1081 = vunpack.c.l.b16 %v1056
      %v1082 = vunpack.c.l.b16 %v1060
      %v1083 = vunpack.c.l.b16 %v1064
      %v1084 = vunpack.c.l.b16 %v1068
      %v1085 = vunpack.c.l.b16 %v1072
      %v1086 = vunpack.c.l.b16 %v1076
      %v1087 = vpack.c.b16 %v1080, %v1079
      %v1088 = vpack.c.b16 %v1082, %v1081
      %v1089 = vpack.c.b16 %v1084, %v1083
      %v1090 = vpack.c.b16 %v1086, %v1085
      %v1092 = vsel %vm329, %v1087, 0
      %v1095 = vsel %vm329, %v1088, 0
      %v1098 = vsel %vm329, %v1089, 0
      %v1101 = vsel %vm329, %v1090, 0
      %v1104 = vsel %vm342, %v1078, 0
      %1106 = vmatprep.subr.bf16.mxu0 0
      %1107 = vmatpush1.bf16.msra.mxu0 %v1104
      %1108 = vmatprep.subr.bf16.mxu0 0
      %1109 = vmatpush1.bf16.msra.mxu0 0
      %1110 = vmatprep.subr.bf16.mxu0 0
      %1111 = vmatpush1.bf16.msra.mxu0 0
      %1112 = vmatprep.subr.bf16.mxu0 0
      %1113 = vmatpush1.bf16.msra.mxu0 0
      %1114 = vmatprep.subr.bf16.mxu0 0
      %1115 = vmatpush1.bf16.msra.mxu0 0
      %1116 = vmatprep.subr.bf16.mxu0 0
      %1117 = vmatpush1.bf16.msra.mxu0 0
      %1118 = vmatprep.subr.bf16.mxu0 0
      %1119 = vmatpush1.bf16.msra.mxu0 0
      %1120 = vmatprep.subr.bf16.mxu0 0
      %1121 = vmatpush1.bf16.msra.mxu0 0
      %1122 = vmatprep.subr.bf16.mxu0 0
      %1123 = vmatpush1.bf16.msra.mxu0 0
      %1124 = vmatprep.subr.bf16.mxu0 0
      %1125 = vmatpush1.bf16.msra.mxu0 0
      %1126 = vmatprep.subr.bf16.mxu0 0
      %1127 = vmatpush1.bf16.msra.mxu0 0
      %1128 = vmatprep.subr.bf16.mxu0 0
      %1129 = vmatpush1.bf16.msra.mxu0 0
      %1130 = vmatprep.subr.bf16.mxu0 0
      %1131 = vmatpush1.bf16.msra.mxu0 0
      %1132 = vmatprep.subr.bf16.mxu0 0
      %1133 = vmatpush1.bf16.msra.mxu0 0
      %1134 = vmatprep.subr.bf16.mxu0 0
      %1135 = vmatpush1.bf16.msra.mxu0 0
      %1136 = vmatprep.subr.bf16.mxu0 0
      %1137 = vmatpush1.bf16.msra.mxu0 0
      %1138 = vmatprep.mubr.bf16.mxu0 0
      %1139 = vmatmul.mubr.bf16.gmra.mrb[0].mxu0 %v1092
      %v1140 = vpop.f32.mrb[0].mxu0
      %v1141 = vadd.f32 0.0, %v1140
      %v1142 = vpop.f32.mrb[0].mxu0
      %v1143 = vpop.f32.mrb[0].mxu0
      %v1144 = vadd.f32 0.0, %v1143
      %v1145 = vpop.f32.mrb[0].mxu0
      %1146 = vmatprep.mubr.bf16.mxu0 0
      %1147 = vmatmul.mubr.bf16.gmra.mrb[0].mxu0 %v1095
      %v1148 = vpop.f32.mrb[0].mxu0
      %v1149 = vadd.f32 0.0, %v1148
      %v1150 = vpop.f32.mrb[0].mxu0
      %v1151 = vpop.f32.mrb[0].mxu0
      %v1152 = vadd.f32 0.0, %v1151
      %v1153 = vpop.f32.mrb[0].mxu0
      %1154 = vmatprep.mubr.bf16.mxu0 0
      %1155 = vmatmul.mubr.bf16.gmra.mrb[0].mxu0 %v1098
      %v1156 = vpop.f32.mrb[0].mxu0
      %v1157 = vadd.f32 0.0, %v1156
      %v1158 = vpop.f32.mrb[0].mxu0
      %v1159 = vpop.f32.mrb[0].mxu0
      %v1160 = vadd.f32 0.0, %v1159
      %v1161 = vpop.f32.mrb[0].mxu0
      %1162 = vmatprep.mubr.bf16.mxu0 0
      %1163 = vmatmul.mubr.bf16.gmra.mrb[0].mxu0 %v1101
      %v1164 = vpop.f32.mrb[0].mxu0
      %v1165 = vadd.f32 0.0, %v1164
      %v1166 = vpop.f32.mrb[0].mxu0
      %v1167 = vpop.f32.mrb[0].mxu0
      %v1168 = vadd.f32 0.0, %v1167
      %v1169 = vpop.f32.mrb[0].mxu0
      %1170 = vdwg.mxu0
      %v1171 = vadd.f32 %v1013, %v1141
      %v1172 = vadd.f32 %v1014, %v1144
      %v1173 = vadd.f32 %v1015, %v1149
      %v1174 = vadd.f32 %v1016, %v1152
      %v1175 = vadd.f32 %v1017, %v1157
      %v1176 = vadd.f32 %v1018, %v1160
      %v1177 = vadd.f32 %v1019, %v1165
      %v1178 = vadd.f32 %v1020, %v1168
      %s1179 = scalar_lea.vmem %s172, 16
      %v1180 = vld [vmem:[%s1179] sm:$0xf]
      %v1181 = vld [vmem:[%s1179 + $0x8] sm:$0xf]
      %v1182 = vld [vmem:[%s1179 + $0x10] sm:$0xf]
      %v1183 = vld [vmem:[%s1179 + $0x18] sm:$0xf]
      %v1184 = vld [vmem:[%s1179 + $0x20] sm:$0xf]
      %v1185 = vld [vmem:[%s1179 + $0x28] sm:$0xf]
      %v1186 = vld [vmem:[%s1179 + $0x30] sm:$0xf]
      %v1187 = vld [vmem:[%s1179 + $0x38] sm:$0xf]
      %s1188 = scalar_lea.vmem %s1, 24
      %v1189 = vld [vmem:[%s1188] sm:$0xf]
      %v1198 = vunpack.c.l.b16 %v1180
      %v1199 = vunpack.c.l.b16 %v1181
      %v1200 = vunpack.c.l.b16 %v1182
      %v1201 = vunpack.c.l.b16 %v1183
      %v1202 = vunpack.c.l.b16 %v1184
      %v1203 = vunpack.c.l.b16 %v1185
      %v1204 = vunpack.c.l.b16 %v1186
      %v1205 = vunpack.c.l.b16 %v1187
      %v1206 = vpack.c.b16 %v1199, %v1198
      %v1207 = vpack.c.b16 %v1201, %v1200
      %v1208 = vpack.c.b16 %v1203, %v1202
      %v1209 = vpack.c.b16 %v1205, %v1204
      %v1211 = vsel %vm329, %v1206, 0
      %v1214 = vsel %vm329, %v1207, 0
      %v1217 = vsel %vm329, %v1208, 0
      %v1220 = vsel %vm329, %v1209, 0
      %v1223 = vsel %vm342, %v1189, 0
      %1225 = vmatprep.subr.bf16.mxu0 0
      %1226 = vmatpush1.bf16.msra.mxu0 %v1223
      %1227 = vmatprep.subr.bf16.mxu0 0
      %1228 = vmatpush1.bf16.msra.mxu0 0
      %1229 = vmatprep.subr.bf16.mxu0 0
      %1230 = vmatpush1.bf16.msra.mxu0 0
      %1231 = vmatprep.subr.bf16.mxu0 0
      %1232 = vmatpush1.bf16.msra.mxu0 0
      %1233 = vmatprep.subr.bf16.mxu0 0
      %1234 = vmatpush1.bf16.msra.mxu0 0
      %1235 = vmatprep.subr.bf16.mxu0 0
      %1236 = vmatpush1.bf16.msra.mxu0 0
      %1237 = vmatprep.subr.bf16.mxu0 0
      %1238 = vmatpush1.bf16.msra.mxu0 0
      %1239 = vmatprep.subr.bf16.mxu0 0
      %1240 = vmatpush1.bf16.msra.mxu0 0
      %1241 = vmatprep.subr.bf16.mxu0 0
      %1242 = vmatpush1.bf16.msra.mxu0 0
      %1243 = vmatprep.subr.bf16.mxu0 0
      %1244 = vmatpush1.bf16.msra.mxu0 0
      %1245 = vmatprep.subr.bf16.mxu0 0
      %1246 = vmatpush1.bf16.msra.mxu0 0
      %1247 = vmatprep.subr.bf16.mxu0 0
      %1248 = vmatpush1.bf16.msra.mxu0 0
      %1249 = vmatprep.subr.bf16.mxu0 0
      %1250 = vmatpush1.bf16.msra.mxu0 0
      %1251 = vmatprep.subr.bf16.mxu0 0
      %1252 = vmatpush1.bf16.msra.mxu0 0
      %1253 = vmatprep.subr.bf16.mxu0 0
      %1254 = vmatpush1.bf16.msra.mxu0 0
      %1255 = vmatprep.subr.bf16.mxu0 0
      %1256 = vmatpush1.bf16.msra.mxu0 0
      %1257 = vmatprep.mubr.bf16.mxu0 0
      %1258 = vmatmul.mubr.bf16.gmra.mrb[0].mxu0 %v1211
      %v1259 = vpop.f32.mrb[0].mxu0
      %v1260 = vadd.f32 0.0, %v1259
      %v1261 = vpop.f32.mrb[0].mxu0
      %v1262 = vpop.f32.mrb[0].mxu0
      %v1263 = vadd.f32 0.0, %v1262
      %v1264 = vpop.f32.mrb[0].mxu0
      %1265 = vmatprep.mubr.bf16.mxu0 0
      %1266 = vmatmul.mubr.bf16.gmra.mrb[0].mxu0 %v1214
      %v1267 = vpop.f32.mrb[0].mxu0
      %v1268 = vadd.f32 0.0, %v1267
      %v1269 = vpop.f32.mrb[0].mxu0
      %v1270 = vpop.f32.mrb[0].mxu0
      %v1271 = vadd.f32 0.0, %v1270
      %v1272 = vpop.f32.mrb[0].mxu0
      %1273 = vmatprep.mubr.bf16.mxu0 0
      %1274 = vmatmul.mubr.bf16.gmra.mrb[0].mxu0 %v1217
      %v1275 = vpop.f32.mrb[0].mxu0
      %v1276 = vadd.f32 0.0, %v1275
      %v1277 = vpop.f32.mrb[0].mxu0
      %v1278 = vpop.f32.mrb[0].mxu0
      %v1279 = vadd.f32 0.0, %v1278
      %v1280 = vpop.f32.mrb[0].mxu0
      %1281 = vmatprep.mubr.bf16.mxu0 0
      %1282 = vmatmul.mubr.bf16.gmra.mrb[0].mxu0 %v1220
      %v1283 = vpop.f32.mrb[0].mxu0
      %v1284 = vadd.f32 0.0, %v1283
      %v1285 = vpop.f32.mrb[0].mxu0
      %v1286 = vpop.f32.mrb[0].mxu0
      %v1287 = vadd.f32 0.0, %v1286
      %v1288 = vpop.f32.mrb[0].mxu0
      %1289 = vdwg.mxu0
      %v1290 = vadd.f32 %v1171, %v1260
      %v1291 = vadd.f32 %v1172, %v1263
      %v1292 = vadd.f32 %v1173, %v1268
      %v1293 = vadd.f32 %v1174, %v1271
      %v1294 = vadd.f32 %v1175, %v1276
      %v1295 = vadd.f32 %v1176, %v1279
      %v1296 = vadd.f32 %v1177, %v1284
      %v1297 = vadd.f32 %v1178, %v1287
      %v1298 = vld [vmem:[%s1179] sm:$0xf]
      %v1299 = vld [vmem:[%s1179 + $0x4] sm:$0x1]
      %v1300 = vld [vmem:[%s1179 + $0x8] sm:$0xf]
      %v1301 = vld [vmem:[%s1179 + $0xc] sm:$0x1]
      %v1302 = vld [vmem:[%s1179 + $0x10] sm:$0xf]
      %v1303 = vld [vmem:[%s1179 + $0x14] sm:$0x1]
      %v1304 = vld [vmem:[%s1179 + $0x18] sm:$0xf]
      %v1305 = vld [vmem:[%s1179 + $0x1c] sm:$0x1]
      %v1306 = vld [vmem:[%s1179 + $0x20] sm:$0xf]
      %v1307 = vld [vmem:[%s1179 + $0x24] sm:$0x1]
      %v1308 = vld [vmem:[%s1179 + $0x28] sm:$0xf]
      %v1309 = vld [vmem:[%s1179 + $0x2c] sm:$0x1]
      %v1310 = vld [vmem:[%s1179 + $0x30] sm:$0xf]
      %v1311 = vld [vmem:[%s1179 + $0x34] sm:$0x1]
      %v1312 = vld [vmem:[%s1179 + $0x38] sm:$0xf]
      %v1313 = vld [vmem:[%s1179 + $0x3c] sm:$0x1]
      %v1315 = vshrl.u32 %v1298, 16
      %v1317 = vrot.slane %v1315, 4
      %v1318 = vshll.u32 %v1298, 16
      %v1320 = vrot.slane %v1318, 5
      %v1321 = vor.u32 %v1317, %v1320
      %v1322 = vrot.slane %v1321, 4
      %v1324 = vshll.u32 %v1299, 16
      %v1326 = vrot.slane %v1324, 5
      %v1327 = vsel %vm202, %v1322, %v1326
      %v1329 = vshrl.u32 %v1300, 16
      %v1331 = vrot.slane %v1329, 4
      %v1332 = vshll.u32 %v1300, 16
      %v1334 = vrot.slane %v1332, 5
      %v1335 = vor.u32 %v1331, %v1334
      %v1336 = vrot.slane %v1335, 4
      %v1338 = vshll.u32 %v1301, 16
      %v1340 = vrot.slane %v1338, 5
      %v1341 = vsel %vm202, %v1336, %v1340
      %v1343 = vshrl.u32 %v1302, 16
      %v1345 = vrot.slane %v1343, 4
      %v1346 = vshll.u32 %v1302, 16
      %v1348 = vrot.slane %v1346, 5
      %v1349 = vor.u32 %v1345, %v1348
      %v1350 = vrot.slane %v1349, 4
      %v1352 = vshll.u32 %v1303, 16
      %v1354 = vrot.slane %v1352, 5
      %v1355 = vsel %vm202, %v1350, %v1354
      %v1357 = vshrl.u32 %v1304, 16
      %v1359 = vrot.slane %v1357, 4
      %v1360 = vshll.u32 %v1304, 16
      %v1362 = vrot.slane %v1360, 5
      %v1363 = vor.u32 %v1359, %v1362
      %v1364 = vrot.slane %v1363, 4
      %v1366 = vshll.u32 %v1305, 16
      %v1368 = vrot.slane %v1366, 5
      %v1369 = vsel %vm202, %v1364, %v1368
      %v1371 = vshrl.u32 %v1306, 16
      %v1373 = vrot.slane %v1371, 4
      %v1374 = vshll.u32 %v1306, 16
      %v1376 = vrot.slane %v1374, 5
      %v1377 = vor.u32 %v1373, %v1376
      %v1378 = vrot.slane %v1377, 4
      %v1380 = vshll.u32 %v1307, 16
      %v1382 = vrot.slane %v1380, 5
      %v1383 = vsel %vm202, %v1378, %v1382
      %v1385 = vshrl.u32 %v1308, 16
      %v1387 = vrot.slane %v1385, 4
      %v1388 = vshll.u32 %v1308, 16
      %v1390 = vrot.slane %v1388, 5
      %v1391 = vor.u32 %v1387, %v1390
      %v1392 = vrot.slane %v1391, 4
      %v1394 = vshll.u32 %v1309, 16
      %v1396 = vrot.slane %v1394, 5
      %v1397 = vsel %vm202, %v1392, %v1396
      %v1399 = vshrl.u32 %v1310, 16
      %v1401 = vrot.slane %v1399, 4
      %v1402 = vshll.u32 %v1310, 16
      %v1404 = vrot.slane %v1402, 5
      %v1405 = vor.u32 %v1401, %v1404
      %v1406 = vrot.slane %v1405, 4
      %v1408 = vshll.u32 %v1311, 16
      %v1410 = vrot.slane %v1408, 5
      %v1411 = vsel %vm202, %v1406, %v1410
      %v1413 = vshrl.u32 %v1312, 16
      %v1415 = vrot.slane %v1413, 4
      %v1416 = vshll.u32 %v1312, 16
      %v1418 = vrot.slane %v1416, 5
      %v1419 = vor.u32 %v1415, %v1418
      %v1420 = vrot.slane %v1419, 4
      %v1422 = vshll.u32 %v1313, 16
      %v1424 = vrot.slane %v1422, 5
      %v1425 = vsel %vm202, %v1420, %v1424
      %s1426 = scalar_lea.vmem %s1, 28
      %v1427 = vld [vmem:[%s1426] sm:$0xf]
      %v1428 = vunpack.c.l.b16 %v1327
      %v1429 = vunpack.c.l.b16 %v1341
      %v1430 = vunpack.c.l.b16 %v1355
      %v1431 = vunpack.c.l.b16 %v1369
      %v1432 = vunpack.c.l.b16 %v1383
      %v1433 = vunpack.c.l.b16 %v1397
      %v1434 = vunpack.c.l.b16 %v1411
      %v1435 = vunpack.c.l.b16 %v1425
      %v1436 = vpack.c.b16 %v1429, %v1428
      %v1437 = vpack.c.b16 %v1431, %v1430
      %v1438 = vpack.c.b16 %v1433, %v1432
      %v1439 = vpack.c.b16 %v1435, %v1434
      %v1441 = vsel %vm329, %v1436, 0
      %v1444 = vsel %vm329, %v1437, 0
      %v1447 = vsel %vm329, %v1438, 0
      %v1450 = vsel %vm329, %v1439, 0
      %v1453 = vsel %vm342, %v1427, 0
      %1455 = vmatprep.subr.bf16.mxu0 0
      %1456 = vmatpush1.bf16.msra.mxu0 %v1453
      %1457 = vmatprep.subr.bf16.mxu0 0
      %1458 = vmatpush1.bf16.msra.mxu0 0
      %1459 = vmatprep.subr.bf16.mxu0 0
      %1460 = vmatpush1.bf16.msra.mxu0 0
      %1461 = vmatprep.subr.bf16.mxu0 0
      %1462 = vmatpush1.bf16.msra.mxu0 0
      %1463 = vmatprep.subr.bf16.mxu0 0
      %1464 = vmatpush1.bf16.msra.mxu0 0
      %1465 = vmatprep.subr.bf16.mxu0 0
      %1466 = vmatpush1.bf16.msra.mxu0 0
      %1467 = vmatprep.subr.bf16.mxu0 0
      %1468 = vmatpush1.bf16.msra.mxu0 0
      %1469 = vmatprep.subr.bf16.mxu0 0
      %1470 = vmatpush1.bf16.msra.mxu0 0
      %1471 = vmatprep.subr.bf16.mxu0 0
      %1472 = vmatpush1.bf16.msra.mxu0 0
      %1473 = vmatprep.subr.bf16.mxu0 0
      %1474 = vmatpush1.bf16.msra.mxu0 0
      %1475 = vmatprep.subr.bf16.mxu0 0
      %1476 = vmatpush1.bf16.msra.mxu0 0
      %1477 = vmatprep.subr.bf16.mxu0 0
      %1478 = vmatpush1.bf16.msra.mxu0 0
      %1479 = vmatprep.subr.bf16.mxu0 0
      %1480 = vmatpush1.bf16.msra.mxu0 0
      %1481 = vmatprep.subr.bf16.mxu0 0
      %1482 = vmatpush1.bf16.msra.mxu0 0
      %1483 = vmatprep.subr.bf16.mxu0 0
      %1484 = vmatpush1.bf16.msra.mxu0 0
      %1485 = vmatprep.subr.bf16.mxu0 0
      %1486 = vmatpush1.bf16.msra.mxu0 0
      %1487 = vmatprep.mubr.bf16.mxu0 0
      %1488 = vmatmul.mubr.bf16.gmra.mrb[0].mxu0 %v1441
      %v1489 = vpop.f32.mrb[0].mxu0
      %v1490 = vadd.f32 0.0, %v1489
      %v1491 = vpop.f32.mrb[0].mxu0
      %v1492 = vpop.f32.mrb[0].mxu0
      %v1493 = vadd.f32 0.0, %v1492
      %v1494 = vpop.f32.mrb[0].mxu0
      %1495 = vmatprep.mubr.bf16.mxu0 0
      %1496 = vmatmul.mubr.bf16.gmra.mrb[0].mxu0 %v1444
      %v1497 = vpop.f32.mrb[0].mxu0
      %v1498 = vadd.f32 0.0, %v1497
      %v1499 = vpop.f32.mrb[0].mxu0
      %v1500 = vpop.f32.mrb[0].mxu0
      %v1501 = vadd.f32 0.0, %v1500
      %v1502 = vpop.f32.mrb[0].mxu0
      %1503 = vmatprep.mubr.bf16.mxu0 0
      %1504 = vmatmul.mubr.bf16.gmra.mrb[0].mxu0 %v1447
      %v1505 = vpop.f32.mrb[0].mxu0
      %v1506 = vadd.f32 0.0, %v1505
      %v1507 = vpop.f32.mrb[0].mxu0
      %v1508 = vpop.f32.mrb[0].mxu0
      %v1509 = vadd.f32 0.0, %v1508
      %v1510 = vpop.f32.mrb[0].mxu0
      %1511 = vmatprep.mubr.bf16.mxu0 0
      %1512 = vmatmul.mubr.bf16.gmra.mrb[0].mxu0 %v1450
      %v1513 = vpop.f32.mrb[0].mxu0
      %v1514 = vadd.f32 0.0, %v1513
      %v1515 = vpop.f32.mrb[0].mxu0
      %v1516 = vpop.f32.mrb[0].mxu0
      %v1517 = vadd.f32 0.0, %v1516
      %v1518 = vpop.f32.mrb[0].mxu0
      %1519 = vdwg.mxu0
      %v1520 = vadd.f32 %v1290, %v1490
      %v1521 = vadd.f32 %v1291, %v1493
      %v1522 = vadd.f32 %v1292, %v1498
      %v1523 = vadd.f32 %v1293, %v1501
      %v1524 = vadd.f32 %v1294, %v1506
      %v1525 = vadd.f32 %v1295, %v1509
      %v1526 = vadd.f32 %v1296, %v1514
      %v1527 = vadd.f32 %v1297, %v1517
      %v1528 = vld [vmem:[%s1179] sm:$0xe]
      %v1529 = vld [vmem:[%s1179 + $0x8] sm:$0xe]
      %v1530 = vld [vmem:[%s1179 + $0x10] sm:$0xe]
      %v1531 = vld [vmem:[%s1179 + $0x18] sm:$0xe]
      %v1532 = vld [vmem:[%s1179 + $0x20] sm:$0xe]
      %v1533 = vld [vmem:[%s1179 + $0x28] sm:$0xe]
      %v1534 = vld [vmem:[%s1179 + $0x30] sm:$0xe]
      %v1535 = vld [vmem:[%s1179 + $0x38] sm:$0xe]
      %v1552 = vrot.slane %v1528, 5
      %v1553 = vrot.slane %v1552, 4
      %v1554 = vrot.slane %v1299, 5
      %v1555 = vsel %vm537, %v1553, %v1554
      %v1556 = vrot.slane %v1529, 5
      %v1557 = vrot.slane %v1556, 4
      %v1558 = vrot.slane %v1301, 5
      %v1559 = vsel %vm537, %v1557, %v1558
      %v1560 = vrot.slane %v1530, 5
      %v1561 = vrot.slane %v1560, 4
      %v1562 = vrot.slane %v1303, 5
      %v1563 = vsel %vm537, %v1561, %v1562
      %v1564 = vrot.slane %v1531, 5
      %v1565 = vrot.slane %v1564, 4
      %v1566 = vrot.slane %v1305, 5
      %v1567 = vsel %vm537, %v1565, %v1566
      %v1568 = vrot.slane %v1532, 5
      %v1569 = vrot.slane %v1568, 4
      %v1570 = vrot.slane %v1307, 5
      %v1571 = vsel %vm537, %v1569, %v1570
      %v1572 = vrot.slane %v1533, 5
      %v1573 = vrot.slane %v1572, 4
      %v1574 = vrot.slane %v1309, 5
      %v1575 = vsel %vm537, %v1573, %v1574
      %v1576 = vrot.slane %v1534, 5
      %v1577 = vrot.slane %v1576, 4
      %v1578 = vrot.slane %v1311, 5
      %v1579 = vsel %vm537, %v1577, %v1578
      %v1580 = vrot.slane %v1535, 5
      %v1581 = vrot.slane %v1580, 4
      %v1582 = vrot.slane %v1313, 5
      %v1583 = vsel %vm537, %v1581, %v1582
      %s1584 = scalar_lea.vmem %s1, 32
      %v1585 = vld [vmem:[%s1584] sm:$0xf]
      %v1586 = vunpack.c.l.b16 %v1555
      %v1587 = vunpack.c.l.b16 %v1559
      %v1588 = vunpack.c.l.b16 %v1563
      %v1589 = vunpack.c.l.b16 %v1567
      %v1590 = vunpack.c.l.b16 %v1571
      %v1591 = vunpack.c.l.b16 %v1575
      %v1592 = vunpack.c.l.b16 %v1579
      %v1593 = vunpack.c.l.b16 %v1583
      %v1594 = vpack.c.b16 %v1587, %v1586
      %v1595 = vpack.c.b16 %v1589, %v1588
      %v1596 = vpack.c.b16 %v1591, %v1590
      %v1597 = vpack.c.b16 %v1593, %v1592
      %v1599 = vsel %vm329, %v1594, 0
      %v1602 = vsel %vm329, %v1595, 0
      %v1605 = vsel %vm329, %v1596, 0
      %v1608 = vsel %vm329, %v1597, 0
      %v1611 = vsel %vm342, %v1585, 0
      %1613 = vmatprep.subr.bf16.mxu0 0
      %1614 = vmatpush1.bf16.msra.mxu0 %v1611
      %1615 = vmatprep.subr.bf16.mxu0 0
      %1616 = vmatpush1.bf16.msra.mxu0 0
      %1617 = vmatprep.subr.bf16.mxu0 0
      %1618 = vmatpush1.bf16.msra.mxu0 0
      %1619 = vmatprep.subr.bf16.mxu0 0
      %1620 = vmatpush1.bf16.msra.mxu0 0
      %1621 = vmatprep.subr.bf16.mxu0 0
      %1622 = vmatpush1.bf16.msra.mxu0 0
      %1623 = vmatprep.subr.bf16.mxu0 0
      %1624 = vmatpush1.bf16.msra.mxu0 0
      %1625 = vmatprep.subr.bf16.mxu0 0
      %1626 = vmatpush1.bf16.msra.mxu0 0
      %1627 = vmatprep.subr.bf16.mxu0 0
      %1628 = vmatpush1.bf16.msra.mxu0 0
      %1629 = vmatprep.subr.bf16.mxu0 0
      %1630 = vmatpush1.bf16.msra.mxu0 0
      %1631 = vmatprep.subr.bf16.mxu0 0
      %1632 = vmatpush1.bf16.msra.mxu0 0
      %1633 = vmatprep.subr.bf16.mxu0 0
      %1634 = vmatpush1.bf16.msra.mxu0 0
      %1635 = vmatprep.subr.bf16.mxu0 0
      %1636 = vmatpush1.bf16.msra.mxu0 0
      %1637 = vmatprep.subr.bf16.mxu0 0
      %1638 = vmatpush1.bf16.msra.mxu0 0
      %1639 = vmatprep.subr.bf16.mxu0 0
      %1640 = vmatpush1.bf16.msra.mxu0 0
      %1641 = vmatprep.subr.bf16.mxu0 0
      %1642 = vmatpush1.bf16.msra.mxu0 0
      %1643 = vmatprep.subr.bf16.mxu0 0
      %1644 = vmatpush1.bf16.msra.mxu0 0
      %1645 = vmatprep.mubr.bf16.mxu0 0
      %1646 = vmatmul.mubr.bf16.gmra.mrb[0].mxu0 %v1599
      %v1647 = vpop.f32.mrb[0].mxu0
      %v1648 = vadd.f32 0.0, %v1647
      %v1649 = vpop.f32.mrb[0].mxu0
      %v1650 = vpop.f32.mrb[0].mxu0
      %v1651 = vadd.f32 0.0, %v1650
      %v1652 = vpop.f32.mrb[0].mxu0
      %1653 = vmatprep.mubr.bf16.mxu0 0
      %1654 = vmatmul.mubr.bf16.gmra.mrb[0].mxu0 %v1602
      %v1655 = vpop.f32.mrb[0].mxu0
      %v1656 = vadd.f32 0.0, %v1655
      %v1657 = vpop.f32.mrb[0].mxu0
      %v1658 = vpop.f32.mrb[0].mxu0
      %v1659 = vadd.f32 0.0, %v1658
      %v1660 = vpop.f32.mrb[0].mxu0
      %1661 = vmatprep.mubr.bf16.mxu0 0
      %1662 = vmatmul.mubr.bf16.gmra.mrb[0].mxu0 %v1605
      %v1663 = vpop.f32.mrb[0].mxu0
      %v1664 = vadd.f32 0.0, %v1663
      %v1665 = vpop.f32.mrb[0].mxu0
      %v1666 = vpop.f32.mrb[0].mxu0
      %v1667 = vadd.f32 0.0, %v1666
      %v1668 = vpop.f32.mrb[0].mxu0
      %1669 = vmatprep.mubr.bf16.mxu0 0
      %1670 = vmatmul.mubr.bf16.gmra.mrb[0].mxu0 %v1608
      %v1671 = vpop.f32.mrb[0].mxu0
      %v1672 = vadd.f32 0.0, %v1671
      %v1673 = vpop.f32.mrb[0].mxu0
      %v1674 = vpop.f32.mrb[0].mxu0
      %v1675 = vadd.f32 0.0, %v1674
      %v1676 = vpop.f32.mrb[0].mxu0
      %1677 = vdwg.mxu0
      %v1678 = vadd.f32 %v1520, %v1648
      %v1679 = vadd.f32 %v1521, %v1651
      %v1680 = vadd.f32 %v1522, %v1656
      %v1681 = vadd.f32 %v1523, %v1659
      %v1682 = vadd.f32 %v1524, %v1664
      %v1683 = vadd.f32 %v1525, %v1667
      %v1684 = vadd.f32 %v1526, %v1672
      %v1685 = vadd.f32 %v1527, %v1675
      %v1686 = vpack.c.bf16 %v1679, %v1678
      %v1687 = vpack.c.bf16 %v1681, %v1680
      %v1688 = vpack.c.bf16 %v1683, %v1682
      %v1689 = vpack.c.bf16 %v1685, %v1684
      %v1694 = vunpack.c.l.b16 %v1686
      %v1695 = vunpack.c.h.b16 %v1686
      %v1696 = vunpack.c.l.b16 %v1687
      %v1697 = vunpack.c.h.b16 %v1687
      %v1698 = vunpack.c.l.b16 %v1688
      %v1699 = vunpack.c.h.b16 %v1688
      %v1700 = vunpack.c.l.b16 %v1689
      %v1701 = vunpack.c.h.b16 %v1689
      %v1702 = vpack.c.b16 %v1694, %v1694
      %v1703 = vpack.c.b16 %v1695, %v1695
      %v1704 = vpack.c.b16 %v1696, %v1696
      %v1705 = vpack.c.b16 %v1697, %v1697
      %v1706 = vpack.c.b16 %v1698, %v1698
      %v1707 = vpack.c.b16 %v1699, %v1699
      %v1708 = vpack.c.b16 %v1700, %v1700
      %v1709 = vpack.c.b16 %v1701, %v1701
      %vm1718 = vcmask 125952
      %1719 = vst.msk [vmem:[%s177] sm:$0xf] %vm1718, %v1702
      %1720 = vst.msk [vmem:[%s177 + $0x4] sm:$0xf] %vm1718, %v1703
      %1721 = vst.msk [vmem:[%s177 + $0x8] sm:$0xf] %vm1718, %v1704
      %1722 = vst.msk [vmem:[%s177 + $0xc] sm:$0xf] %vm1718, %v1705
      %1723 = vst.msk [vmem:[%s177 + $0x10] sm:$0xf] %vm1718, %v1706
      %1724 = vst.msk [vmem:[%s177 + $0x14] sm:$0xf] %vm1718, %v1707
      %1725 = vst.msk [vmem:[%s177 + $0x18] sm:$0xf] %vm1718, %v1708
      %1726 = vst.msk [vmem:[%s177 + $0x1c] sm:$0xf] %vm1718, %v1709
      %vm1727 = vcmask 130048
      %v1728 = vsel %vm1727, %v1678, 0.0
      %v1729 = vsel %vm1727, %v1679, 0.0
      %v1730 = vadd.f32 %v1728, %v1729
      %v1731 = vsel %vm1727, %v1680, 0.0
      %v1732 = vadd.f32 %v1730, %v1731
      %v1733 = vsel %vm1727, %v1681, 0.0
      %v1734 = vadd.f32 %v1732, %v1733
      %v1735 = vsel %vm1727, %v1682, 0.0
      %v1736 = vadd.f32 %v1734, %v1735
      %v1737 = vsel %vm1727, %v1683, 0.0
      %v1738 = vadd.f32 %v1736, %v1737
      %v1739 = vsel %vm1727, %v1684, 0.0
      %v1740 = vadd.f32 %v1738, %v1739
      %v1741 = vsel %vm1727, %v1685, 0.0
      %v1742 = vadd.f32 %v1740, %v1741
      %v1743 = vrot.slane %v1742, 4
      %v1744 = vadd.f32 %v1742, %v1743
      %v1745 = vrot.slane %v1744, 2
      %v1746 = vadd.f32 %v1744, %v1745
      %v1747 = vrot.slane %v1746, 1
      %v1748 = vadd.f32 %v1746, %v1747
      %v1749 = vmul.f32 %v1678, %v1678
      %v1750 = vmul.f32 %v1679, %v1679
      %v1751 = vmul.f32 %v1680, %v1680
      %v1752 = vmul.f32 %v1681, %v1681
      %v1753 = vmul.f32 %v1682, %v1682
      %v1754 = vmul.f32 %v1683, %v1683
      %v1755 = vmul.f32 %v1684, %v1684
      %v1756 = vmul.f32 %v1685, %v1685
      %v1757 = vsel %vm1727, %v1749, 0.0
      %v1758 = vsel %vm1727, %v1750, 0.0
      %v1759 = vadd.f32 %v1757, %v1758
      %v1760 = vsel %vm1727, %v1751, 0.0
      %v1761 = vadd.f32 %v1759, %v1760
      %v1762 = vsel %vm1727, %v1752, 0.0
      %v1763 = vadd.f32 %v1761, %v1762
      %v1764 = vsel %vm1727, %v1753, 0.0
      %v1765 = vadd.f32 %v1763, %v1764
      %v1766 = vsel %vm1727, %v1754, 0.0
      %v1767 = vadd.f32 %v1765, %v1766
      %v1768 = vsel %vm1727, %v1755, 0.0
      %v1769 = vadd.f32 %v1767, %v1768
      %v1770 = vsel %vm1727, %v1756, 0.0
      %v1771 = vadd.f32 %v1769, %v1770
      %v1772 = vrot.slane %v1771, 4
      %v1773 = vadd.f32 %v1771, %v1772
      %v1774 = vrot.slane %v1773, 2
      %v1775 = vadd.f32 %v1773, %v1774
      %v1776 = vrot.slane %v1775, 1
      %v1777 = vadd.f32 %v1775, %v1776
      %vm1778 = vcmask 1040384
      %v1779 = vsel %vm1778, %v1748, %v1777
      %vm1780 = vcmask 123904
      %1781 = vst.msk [vmem:[%s181] sm:$0x3] %vm1780, %v1779
      %p1782 = scmp.lt.s32.totalorder %s15, 1
      %s1783 = scalar_select %p1782, %s15, 1
      %s1784 = smul.addr %s1783, 8
      %s1785 = smul.addr %s1784, 4
      %s1786 = scalar_lea.vmem %s2, %s1785
      %p1787 = scmp.lt.s32.totalorder %s15, 1
      %s1788 = scalar_select %p1787, %s15, 1
      %s1789 = smul.addr %s1788, 2
      %s1790 = scalar_lea.vmem %s3, %s1789
      // Predicated region
      $region29: #{run.6} parent=27 // pred_check
        %p1791 = pneg %p80
      $region30: #{run.6} parent=27 // pred_check_branch
        %1793 = sbr.rel (%p1791) target = $region32
      $region31: #{run.6} parent=27 // pred_region
        _
      $region32: #{run.6} parent=27 // pred_fallthru
        _
      // Predicated region
      $region33: #{run.6} parent=27 // pred_check
        %p1794 = pneg %p106
      $region34: #{run.6} parent=27 // pred_check_branch
        %1796 = sbr.rel (%p1794) target = $region36
      $region35: #{run.6} parent=27 // pred_region
        _
      $region36: #{run.6} parent=27 // pred_fallthru
        _
    $region28: #{run.6} parent=5 // pred_fallthru
      _
    %p1797 = scmp.le.s32.totalorder 2, %s10
    // Predicated region
    $region37: #{run.6} parent=5 // pred_check
      %p1798 = pneg %p1797
    $region38: #{run.6} parent=5 // pred_check_branch
      %1800 = sbr.rel (%p1798) target = $region40
    $region39: #{run.6} parent=5 // pred_region
      %s1801 = ssub.s32 %s10, 2
      // Predicated region
      $region41: #{run.6} parent=39 // pred_check
        %p1802 = pneg %p86
      $region42: #{run.6} parent=39 // pred_check_branch
        %1804 = sbr.rel (%p1802) target = $region44
      $region43: #{run.6} parent=39 // pred_region
        %p1805 = scmp.lt.s32.totalorder %s16, 1
        %s1806 = scalar_select %p1805, %s16, 1
        %s1807 = smul.addr %s1806, 8
        %s1808 = smul.addr %s1807, 4
        %s1809 = scalar_lea.vmem %s2, %s1808
      $region44: #{run.6} parent=39 // pred_fallthru
        _
      // Predicated region
      $region45: #{run.6} parent=39 // pred_check
        %p1810 = pneg %p112
      $region46: #{run.6} parent=39 // pred_check_branch
        %1812 = sbr.rel (%p1810) target = $region48
      $region47: #{run.6} parent=39 // pred_region
        %p1813 = scmp.lt.s32.totalorder %s16, 1
        %s1814 = scalar_select %p1813, %s16, 1
        %s1815 = smul.addr %s1814, 2
        %s1816 = scalar_lea.vmem %s3, %s1815
      $region48: #{run.6} parent=39 // pred_fallthru
        _
    $region40: #{run.6} parent=5 // pred_fallthru
      _
  $region6: #{run.6} parent=0 // loop_footer
    %s14 = sadd.s32 1, %s10
  $region7: #{run.6} parent=0 // loop_footer_branch
    %9 = sbr.rel target = $region3
  $region8: #{run.6} parent=0 // loop_exit
    _

</llo_original>
